<compile_context>
chip_gen: v6e
topology: v6e:2x2x1
jax: 0.10.0
libtpu: 0.0.40
codegen_flags: <defaults>
</compile_context>

<pallas_src>
import jax
import jax.numpy as jnp
from jax.experimental import pallas as pl
from jax.experimental.pallas import tpu as pltpu


# ----------------------------------------------------------------------------
# Kernel factory (static geometry closed over)
# ----------------------------------------------------------------------------
def make_conn4_kernel(Wp, ML, Cmax, Ppad, Kp, L, Co):
    """Build the fused 8-block kernel.

    Refs seen by the kernel:
      x_ref   : (1, Cmax, Ppad)   pre-padded, channel-major, lane-dense input
      wf_ref  : (L, Co, Kp)       fused [conv3x3 | conv1x1 | bias] weights
      mask_ref: (1, Ppad)         1.0 at interior positions of the padded frame
      out_ref : (1, Co, Ppad)     lane-dense output slab (halo cropped by wrapper)
      buf_ref : (Cmax, ML+Ppad+128) VMEM-resident padded activation (+margins)
      cols_ref: (Kp, Ppad)        im2col scratch (+ constant-1 bias row)
    """
    taps = [(ky, kx) for ky in range(3) for kx in range(3)]

    def kernel(x_ref, wf_ref, mask_ref, out_ref, buf_ref, cols_ref):
        # ---- one-time init for this batch element --------------------------
        # Zero the whole frame (margins + tail must stay zero), then drop the
        # pre-padded input into the interior with a single aligned store.
        buf_ref[...] = jnp.zeros(buf_ref.shape, buf_ref.dtype)
        buf_ref[:, pl.ds(ML, Ppad)] = x_ref[0]

        # Constant-1 bias row at cols row 9*Cmax, zero filler rows above it.
        # Written once; the per-layer im2col only touches rows [0, 9*Cmax).
        row_id = jax.lax.broadcasted_iota(jnp.int32, (Kp - 9 * Cmax, Ppad), 0)
        cols_ref[9 * Cmax:Kp, :] = (row_id == 0).astype(jnp.float32)

        mask = mask_ref[...]                                  # (1, Ppad)

        # ---- 8 connection blocks; activations never leave VMEM -------------
        # NOTE: the nine tap reads are lane-offset ref loads.  A pltpu.roll
        # based variant (load frame once, XLU-shift) was considered per the
        # review but kept out for robustness; stores stay fully lane-dense.
        for layer in range(L):
            for t, (ky, kx) in enumerate(taps):
                d = (ky - 1) * Wp + (kx - 1)
                cols_ref[t * Cmax:(t + 1) * Cmax, :] = \
                    buf_ref[:, pl.ds(ML + d, Ppad)]

            # One fused MXU matmul per block: rows [0, Co/2) of the weight are
            # the 3x3 taps, rows [Co/2, Co) the 1x1 weights (centre-tap
            # columns), column 9*Cmax the bias -> channel-concat + bias add are
            # folded into the matmul.
            out = jnp.dot(wf_ref[layer], cols_ref[...],
                          preferred_element_type=jnp.float32)      # (Co, Ppad)

            # Re-zero halo + tail so the next block sees proper zero padding.
            buf_ref[0:Co, pl.ds(ML, Ppad)] = out * mask

        out_ref[0] = buf_ref[0:Co, pl.ds(ML, Ppad)]

    return kernel


# ----------------------------------------------------------------------------
# Wrapper
# ----------------------------------------------------------------------------
def conn4_pallas(x_nchw, wf_all, mask):
    """x_nchw: (N, Cin, H, W) f32.  Returns (N, Co, H, W) f32 (NCHW)."""
    N, Cin, H, W = x_nchw.shape
    L, Co, Kp = wf_all.shape
    Hp, Wp = H + 2, W + 2
    P = Hp * Wp
    Ppad = mask.shape[1]                     # lane-padded spatial extent
    ML = 128                                 # lane-aligned left margin in buf

    # Review correctness concern: the activation buffer is reused across blocks
    # assuming every block's output channel count equals Cmax.
    Cmax = Co
    assert Kp >= 9 * Cmax + 1 and Kp % 8 == 0
    assert Ppad % 128 == 0 and Ppad >= P

    # Pre-pad input: channels -> Cmax, spatial -> zero halo, flatten, lane-pad.
    xpk = jnp.pad(x_nchw, ((0, 0), (0, Cmax - Cin), (1, 1), (1, 1)))
    xpk = xpk.reshape(N, Cmax, P)
    xpk = jnp.pad(xpk, ((0, 0), (0, 0), (0, Ppad - P)))          # (N, Cmax, Ppad)

    kernel = make_conn4_kernel(Wp=Wp, ML=ML, Cmax=Cmax, Ppad=Ppad,
                               Kp=Kp, L=L, Co=Co)

    y = pl.pallas_call(
        kernel,
        out_shape=jax.ShapeDtypeStruct((N, Co, Ppad), jnp.float32),
        grid=(N,),
        in_specs=[
            pl.BlockSpec((1, Cmax, Ppad), lambda n: (n, 0, 0)),
            pl.BlockSpec((L, Co, Kp), lambda n: (0, 0, 0)),
            pl.BlockSpec((1, Ppad), lambda n: (0, 0)),
        ],
        out_specs=pl.BlockSpec((1, Co, Ppad), lambda n: (n, 0, 0)),
        scratch_shapes=[
            pltpu.VMEM((Cmax, ML + Ppad + 128), jnp.float32),   # padded activation
            pltpu.VMEM((Kp, Ppad), jnp.float32),                # im2col (+bias row)
        ],
        compiler_params=pltpu.CompilerParams(
            dimension_semantics=("parallel",)),
    )(xpk, wf_all, mask)

    # Crop lane padding and the zero halo; result is already channel-major.
    return y[:, :, :P].reshape(N, Co, Hp, Wp)[:, :, 1:1 + H, 1:1 + W]


# ----------------------------------------------------------------------------
# Parameter construction / packing
# ----------------------------------------------------------------------------
def init_connection_params(key, in_ch, ou_ch):
    """Deterministic synthetic params for one 'connection' block."""
    ou2 = ou_ch // 2
    k3w, k3b, k1w, k1b = jax.random.split(key, 4)
    s3 = 1.0 / jnp.sqrt(in_ch * 9.0)
    s1 = 1.0 / jnp.sqrt(in_ch * 1.0)
    w3 = jax.random.uniform(k3w, (3, 3, in_ch, ou2), jnp.float32, -s3, s3)  # HWIO
    b3 = jax.random.uniform(k3b, (ou2,), jnp.float32, -s3, s3)
    w1 = jax.random.uniform(k1w, (in_ch, ou2), jnp.float32, -s1, s1)
    b1 = jax.random.uniform(k1b, (ou2,), jnp.float32, -s1, s1)
    return dict(w3=w3, b3=b3, w1=w1, b1=b1)


def pack_params(params_list, cmax):
    """Fused per-block (Co, Kp) weights: [9 taps x cmax | bias | zero pad]."""
    kpad = ((9 * cmax + 1 + 7) // 8) * 8          # 72 + 1 bias col -> 80
    wfs = []
    for p in params_list:
        w3, b3, w1, b1 = p["w3"], p["b3"], p["w1"], p["b1"]
        cin, co2 = w1.shape
        pad_c = cmax - cin
        w3p = jnp.pad(w3, ((0, 0), (0, 0), (0, pad_c), (0, 0)))   # (3,3,cmax,co2)
        w1p = jnp.pad(w1, ((0, pad_c), (0, 0)))                    # (cmax,co2)
        # rows [0, co2): 3x3 taps; column layout t*cmax + c with t = ky*3 + kx
        top = jnp.transpose(w3p, (3, 0, 1, 2)).reshape(co2, 9 * cmax)
        # rows [co2, 2*co2): 1x1 weights in the centre-tap (t = 4) columns
        bot = jnp.zeros((co2, 9 * cmax), jnp.float32)
        bot = bot.at[:, 4 * cmax:5 * cmax].set(w1p.T)
        w = jnp.concatenate([top, bot], axis=0)                    # (2*co2, 9*cmax)
        b = jnp.concatenate([b3, b1])[:, None]                     # (2*co2, 1)
        filler = jnp.zeros((2 * co2, kpad - 9 * cmax - 1), jnp.float32)
        wfs.append(jnp.concatenate([w, b, filler], axis=1))        # (Co, kpad)
    return jnp.stack(wfs)                                          # (L, Co, kpad)


def make_interior_mask(H, W):
    """1.0 at interior positions of the flattened (H+2)x(W+2) frame, padded
    with zeros out to the next multiple of 128 lanes."""
    Hp, Wp = H + 2, W + 2
    P = Hp * Wp
    Ppad = ((P + 127) // 128) * 128
    idx = jnp.arange(Ppad)
    r, c = idx // Wp, idx % Wp
    m = ((idx < P) & (r >= 1) & (r <= H) & (c >= 1) & (c <= W)).astype(jnp.float32)
    return m[None, :]                                              # (1, Ppad)


# ----------------------------------------------------------------------------
# Pure-JAX reference
# ----------------------------------------------------------------------------
def ref_connection(x, p):
    y3 = jax.lax.conv_general_dilated(
        x, p["w3"], window_strides=(1, 1), padding="SAME",
        dimension_numbers=("NCHW", "HWIO", "NCHW"))
    y3 = y3 + p["b3"][None, :, None, None]
    y1 = jnp.einsum("nchw,cd->ndhw", x, p["w1"]) + p["b1"][None, :, None, None]
    return jnp.concatenate([y3, y1], axis=1)


def ref_conn4(x, params_list):
    for p in params_list:
        x = ref_connection(x, p)
    return x


# ----------------------------------------------------------------------------
if __name__ == "__main__":
    in_ch, ou_ch = 4, 8
    N, H, W = 2, 16, 16

    root = jax.random.PRNGKey(0)
    kx, *pkeys = jax.random.split(root, 1 + 8)
    x = jax.random.normal(kx, (N, in_ch, H, W), jnp.float32)   # NCHW input

    # conn: in_ch -> ou_ch ; conn1..conn7: ou_ch -> ou_ch
    chans = [(in_ch, ou_ch)] + [(ou_ch, ou_ch)] * 7
    params_list = [init_connection_params(k, ci, co)
                   for k, (ci, co) in zip(pkeys, chans)]

    cmax = max(max(ci, co) for ci, co in chans)                # 8
    wf_all = pack_params(params_list, cmax)                    # (8, 8, 80)
    mask = make_interior_mask(H, W)                            # (1, 384)

    run = jax.jit(conn4_pallas)
    out = run(x, wf_all, mask)
    out = jax.block_until_ready(out)

    ref = ref_conn4(x, params_list)
    assert out.shape == (N, ou_ch, H, W), out.shape
    max_err = float(jnp.max(jnp.abs(out - ref)))
    assert jnp.allclose(out, ref, atol=2e-4, rtol=2e-4), max_err

    print("KERNEL_OK")
</pallas_src>

<mosaic_0001>
module attributes {stable_mosaic.version = 11 : i64} {
  func.func @kernel(%arg0: i32, %arg1: memref<1x8x384xf32, #tpu.memory_space<vmem>>, %arg2: memref<8x8x80xf32, #tpu.memory_space<vmem>>, %arg3: memref<1x384xf32, #tpu.memory_space<vmem>>, %arg4: memref<1x8x384xf32, #tpu.memory_space<vmem>>, %arg5: memref<8x640xf32, #tpu.memory_space<vmem>>, %arg6: memref<80x384xf32, #tpu.memory_space<vmem>>) attributes {dimension_semantics = [#tpu.dimension_semantics<parallel>], iteration_bounds = array<i64: 2>, scalar_prefetch = 0 : i64, scratch_operands = 2 : i64, tpu.core_type = #tpu.core_type<tc>, window_params = [{transform_indices = @transform_0, window_bounds = array<i64: 1, 8, 384>}, {pipeline_mode = #tpu.pipeline_mode<synchronous>, transform_indices = @transform_1, window_bounds = array<i64: 8, 8, 80>}, {pipeline_mode = #tpu.pipeline_mode<synchronous>, transform_indices = @transform_2, window_bounds = array<i64: 1, 384>}, {transform_indices = @transform_3, window_bounds = array<i64: 1, 8, 384>}]} {
    %cst = arith.constant 0.000000e+00 : f32
    %0 = vector.broadcast %cst : f32 to vector<8x640xf32>
    %c0 = arith.constant 0 : index
    %c0_0 = arith.constant 0 : index
    %1 = vector.load %arg5[%c0, %c0_0] : memref<8x640xf32, #tpu.memory_space<vmem>>, vector<8x640xf32>
    tpu.vector_store %arg5[%c0, %c0_0], %0 {strides = array<i32>} : memref<8x640xf32, #tpu.memory_space<vmem>>, vector<8x640xf32>,
    %c0_1 = arith.constant 0 : index
    %c0_2 = arith.constant 0 : index
    %c0_3 = arith.constant 0 : index
    %2 = vector.load %arg1[%c0_1, %c0_2, %c0_3] : memref<1x8x384xf32, #tpu.memory_space<vmem>>, vector<1x8x384xf32>
    %3 = vector.shape_cast %2 : vector<1x8x384xf32> to vector<8x384xf32>
    %c0_4 = arith.constant 0 : index
    %c128 = arith.constant 128 : index
    %4 = vector.load %arg5[%c0_4, %c128] : memref<8x640xf32, #tpu.memory_space<vmem>>, vector<8x384xf32>
    tpu.vector_store %arg5[%c0_4, %c128], %3 {strides = array<i32>} : memref<8x640xf32, #tpu.memory_space<vmem>>, vector<8x384xf32>,
    %5 = tpu.iota {dimensions = array<i32: 0>} : vector<8x384xi32>
    %c0_i32 = arith.constant 0 : i32
    %6 = vector.broadcast %c0_i32 : i32 to vector<8x384xi32>
    %7 = arith.cmpi eq, %5, %6 : vector<8x384xi32>
    %8 = arith.extui %7 : vector<8x384xi1> to vector<8x384xi32>
    %9 = arith.sitofp %8 : vector<8x384xi32> to vector<8x384xf32>
    %c72 = arith.constant 72 : index
    %c0_5 = arith.constant 0 : index
    %10 = vector.load %arg6[%c72, %c0_5] : memref<80x384xf32, #tpu.memory_space<vmem>>, vector<8x384xf32>
    tpu.vector_store %arg6[%c72, %c0_5], %9 {strides = array<i32>} : memref<80x384xf32, #tpu.memory_space<vmem>>, vector<8x384xf32>,
    %c0_6 = arith.constant 0 : index
    %c0_7 = arith.constant 0 : index
    %11 = vector.load %arg3[%c0_6, %c0_7] : memref<1x384xf32, #tpu.memory_space<vmem>>, vector<1x384xf32>
    %c0_8 = arith.constant 0 : index
    %c109 = arith.constant 109 : index
    %12 = vector.load %arg5[%c0_8, %c109] : memref<8x640xf32, #tpu.memory_space<vmem>>, vector<8x384xf32>
    %c0_9 = arith.constant 0 : index
    %c0_10 = arith.constant 0 : index
    %13 = vector.load %arg6[%c0_9, %c0_10] : memref<80x384xf32, #tpu.memory_space<vmem>>, vector<8x384xf32>
    tpu.vector_store %arg6[%c0_9, %c0_10], %12 {strides = array<i32>} : memref<80x384xf32, #tpu.memory_space<vmem>>, vector<8x384xf32>,
    %c0_11 = arith.constant 0 : index
    %c110 = arith.constant 110 : index
    %14 = vector.load %arg5[%c0_11, %c110] : memref<8x640xf32, #tpu.memory_space<vmem>>, vector<8x384xf32>
    %c8 = arith.constant 8 : index
    %c0_12 = arith.constant 0 : index
    %15 = vector.load %arg6[%c8, %c0_12] : memref<80x384xf32, #tpu.memory_space<vmem>>, vector<8x384xf32>
    tpu.vector_store %arg6[%c8, %c0_12], %14 {strides = array<i32>} : memref<80x384xf32, #tpu.memory_space<vmem>>, vector<8x384xf32>,
    %c0_13 = arith.constant 0 : index
    %c111 = arith.constant 111 : index
    %16 = vector.load %arg5[%c0_13, %c111] : memref<8x640xf32, #tpu.memory_space<vmem>>, vector<8x384xf32>
    %c16 = arith.constant 16 : index
    %c0_14 = arith.constant 0 : index
    %17 = vector.load %arg6[%c16, %c0_14] : memref<80x384xf32, #tpu.memory_space<vmem>>, vector<8x384xf32>
    tpu.vector_store %arg6[%c16, %c0_14], %16 {strides = array<i32>} : memref<80x384xf32, #tpu.memory_space<vmem>>, vector<8x384xf32>,
    %c0_15 = arith.constant 0 : index
    %c127 = arith.constant 127 : index
    %18 = vector.load %arg5[%c0_15, %c127] : memref<8x640xf32, #tpu.memory_space<vmem>>, vector<8x384xf32>
    %c24 = arith.constant 24 : index
    %c0_16 = arith.constant 0 : index
    %19 = vector.load %arg6[%c24, %c0_16] : memref<80x384xf32, #tpu.memory_space<vmem>>, vector<8x384xf32>
    tpu.vector_store %arg6[%c24, %c0_16], %18 {strides = array<i32>} : memref<80x384xf32, #tpu.memory_space<vmem>>, vector<8x384xf32>,
    %c0_17 = arith.constant 0 : index
    %c128_18 = arith.constant 128 : index
    %20 = vector.load %arg5[%c0_17, %c128_18] : memref<8x640xf32, #tpu.memory_space<vmem>>, vector<8x384xf32>
    %c32 = arith.constant 32 : index
    %c0_19 = arith.constant 0 : index
    %21 = vector.load %arg6[%c32, %c0_19] : memref<80x384xf32, #tpu.memory_space<vmem>>, vector<8x384xf32>
    tpu.vector_store %arg6[%c32, %c0_19], %20 {strides = array<i32>} : memref<80x384xf32, #tpu.memory_space<vmem>>, vector<8x384xf32>,
    %c0_20 = arith.constant 0 : index
    %c129 = arith.constant 129 : index
    %22 = vector.load %arg5[%c0_20, %c129] : memref<8x640xf32, #tpu.memory_space<vmem>>, vector<8x384xf32>
    %c40 = arith.constant 40 : index
    %c0_21 = arith.constant 0 : index
    %23 = vector.load %arg6[%c40, %c0_21] : memref<80x384xf32, #tpu.memory_space<vmem>>, vector<8x384xf32>
    tpu.vector_store %arg6[%c40, %c0_21], %22 {strides = array<i32>} : memref<80x384xf32, #tpu.memory_space<vmem>>, vector<8x384xf32>,
    %c0_22 = arith.constant 0 : index
    %c145 = arith.constant 145 : index
    %24 = vector.load %arg5[%c0_22, %c145] : memref<8x640xf32, #tpu.memory_space<vmem>>, vector<8x384xf32>
    %c48 = arith.constant 48 : index
    %c0_23 = arith.constant 0 : index
    %25 = vector.load %arg6[%c48, %c0_23] : memref<80x384xf32, #tpu.memory_space<vmem>>, vector<8x384xf32>
    tpu.vector_store %arg6[%c48, %c0_23], %24 {strides = array<i32>} : memref<80x384xf32, #tpu.memory_space<vmem>>, vector<8x384xf32>,
    %c0_24 = arith.constant 0 : index
    %c146 = arith.constant 146 : index
    %26 = vector.load %arg5[%c0_24, %c146] : memref<8x640xf32, #tpu.memory_space<vmem>>, vector<8x384xf32>
    %c56 = arith.constant 56 : index
    %c0_25 = arith.constant 0 : index
    %27 = vector.load %arg6[%c56, %c0_25] : memref<80x384xf32, #tpu.memory_space<vmem>>, vector<8x384xf32>
    tpu.vector_store %arg6[%c56, %c0_25], %26 {strides = array<i32>} : memref<80x384xf32, #tpu.memory_space<vmem>>, vector<8x384xf32>,
    %c0_26 = arith.constant 0 : index
    %c147 = arith.constant 147 : index
    %28 = vector.load %arg5[%c0_26, %c147] : memref<8x640xf32, #tpu.memory_space<vmem>>, vector<8x384xf32>
    %c64 = arith.constant 64 : index
    %c0_27 = arith.constant 0 : index
    %29 = vector.load %arg6[%c64, %c0_27] : memref<80x384xf32, #tpu.memory_space<vmem>>, vector<8x384xf32>
    tpu.vector_store %arg6[%c64, %c0_27], %28 {strides = array<i32>} : memref<80x384xf32, #tpu.memory_space<vmem>>, vector<8x384xf32>,
    %c0_28 = arith.constant 0 : index
    %c0_29 = arith.constant 0 : index
    %c0_30 = arith.constant 0 : index
    %30 = vector.load %arg2[%c0_28, %c0_29, %c0_30] : memref<8x8x80xf32, #tpu.memory_space<vmem>>, vector<1x8x80xf32>
    %31 = vector.shape_cast %30 : vector<1x8x80xf32> to vector<8x80xf32>
    %c0_31 = arith.constant 0 : index
    %c0_32 = arith.constant 0 : index
    %32 = vector.load %arg6[%c0_31, %c0_32] : memref<80x384xf32, #tpu.memory_space<vmem>>, vector<80x384xf32>
    %cst_33 = arith.constant dense<0.000000e+00> : vector<8x384xf32>
    %33 = tpu.matmul %31, %32, %cst_33 {dimension_numbers = #tpu.dot_dimension_numbers<[1], [0], [0], [1], [0, 0, 1, 1], [], []>} : vector<8x80xf32>, vector<80x384xf32>, vector<8x384xf32> -> vector<8x384xf32>
    %34 = vector.broadcast %11 : vector<1x384xf32> to vector<8x384xf32>
    %35 = arith.mulf %33, %34 : vector<8x384xf32>
    %c0_34 = arith.constant 0 : index
    %c128_35 = arith.constant 128 : index
    %36 = vector.load %arg5[%c0_34, %c128_35] : memref<8x640xf32, #tpu.memory_space<vmem>>, vector<8x384xf32>
    tpu.vector_store %arg5[%c0_34, %c128_35], %35 {strides = array<i32>} : memref<8x640xf32, #tpu.memory_space<vmem>>, vector<8x384xf32>,
    %c0_36 = arith.constant 0 : index
    %c109_37 = arith.constant 109 : index
    %37 = vector.load %arg5[%c0_36, %c109_37] : memref<8x640xf32, #tpu.memory_space<vmem>>, vector<8x384xf32>
    %c0_38 = arith.constant 0 : index
    %c0_39 = arith.constant 0 : index
    %38 = vector.load %arg6[%c0_38, %c0_39] : memref<80x384xf32, #tpu.memory_space<vmem>>, vector<8x384xf32>
    tpu.vector_store %arg6[%c0_38, %c0_39], %37 {strides = array<i32>} : memref<80x384xf32, #tpu.memory_space<vmem>>, vector<8x384xf32>,
    %c0_40 = arith.constant 0 : index
    %c110_41 = arith.constant 110 : index
    %39 = vector.load %arg5[%c0_40, %c110_41] : memref<8x640xf32, #tpu.memory_space<vmem>>, vector<8x384xf32>
    %c8_42 = arith.constant 8 : index
    %c0_43 = arith.constant 0 : index
    %40 = vector.load %arg6[%c8_42, %c0_43] : memref<80x384xf32, #tpu.memory_space<vmem>>, vector<8x384xf32>
    tpu.vector_store %arg6[%c8_42, %c0_43], %39 {strides = array<i32>} : memref<80x384xf32, #tpu.memory_space<vmem>>, vector<8x384xf32>,
    %c0_44 = arith.constant 0 : index
    %c111_45 = arith.constant 111 : index
    %41 = vector.load %arg5[%c0_44, %c111_45] : memref<8x640xf32, #tpu.memory_space<vmem>>, vector<8x384xf32>
    %c16_46 = arith.constant 16 : index
    %c0_47 = arith.constant 0 : index
    %42 = vector.load %arg6[%c16_46, %c0_47] : memref<80x384xf32, #tpu.memory_space<vmem>>, vector<8x384xf32>
    tpu.vector_store %arg6[%c16_46, %c0_47], %41 {strides = array<i32>} : memref<80x384xf32, #tpu.memory_space<vmem>>, vector<8x384xf32>,
    %c0_48 = arith.constant 0 : index
    %c127_49 = arith.constant 127 : index
    %43 = vector.load %arg5[%c0_48, %c127_49] : memref<8x640xf32, #tpu.memory_space<vmem>>, vector<8x384xf32>
    %c24_50 = arith.constant 24 : index
    %c0_51 = arith.constant 0 : index
    %44 = vector.load %arg6[%c24_50, %c0_51] : memref<80x384xf32, #tpu.memory_space<vmem>>, vector<8x384xf32>
    tpu.vector_store %arg6[%c24_50, %c0_51], %43 {strides = array<i32>} : memref<80x384xf32, #tpu.memory_space<vmem>>, vector<8x384xf32>,
    %c0_52 = arith.constant 0 : index
    %c128_53 = arith.constant 128 : index
    %45 = vector.load %arg5[%c0_52, %c128_53] : memref<8x640xf32, #tpu.memory_space<vmem>>, vector<8x384xf32>
    %c32_54 = arith.constant 32 : index
    %c0_55 = arith.constant 0 : index
    %46 = vector.load %arg6[%c32_54, %c0_55] : memref<80x384xf32, #tpu.memory_space<vmem>>, vector<8x384xf32>
    tpu.vector_store %arg6[%c32_54, %c0_55], %45 {strides = array<i32>} : memref<80x384xf32, #tpu.memory_space<vmem>>, vector<8x384xf32>,
    %c0_56 = arith.constant 0 : index
    %c129_57 = arith.constant 129 : index
    %47 = vector.load %arg5[%c0_56, %c129_57] : memref<8x640xf32, #tpu.memory_space<vmem>>, vector<8x384xf32>
    %c40_58 = arith.constant 40 : index
    %c0_59 = arith.constant 0 : index
    %48 = vector.load %arg6[%c40_58, %c0_59] : memref<80x384xf32, #tpu.memory_space<vmem>>, vector<8x384xf32>
    tpu.vector_store %arg6[%c40_58, %c0_59], %47 {strides = array<i32>} : memref<80x384xf32, #tpu.memory_space<vmem>>, vector<8x384xf32>,
    %c0_60 = arith.constant 0 : index
    %c145_61 = arith.constant 145 : index
    %49 = vector.load %arg5[%c0_60, %c145_61] : memref<8x640xf32, #tpu.memory_space<vmem>>, vector<8x384xf32>
    %c48_62 = arith.constant 48 : index
    %c0_63 = arith.constant 0 : index
    %50 = vector.load %arg6[%c48_62, %c0_63] : memref<80x384xf32, #tpu.memory_space<vmem>>, vector<8x384xf32>
    tpu.vector_store %arg6[%c48_62, %c0_63], %49 {strides = array<i32>} : memref<80x384xf32, #tpu.memory_space<vmem>>, vector<8x384xf32>,
    %c0_64 = arith.constant 0 : index
    %c146_65 = arith.constant 146 : index
    %51 = vector.load %arg5[%c0_64, %c146_65] : memref<8x640xf32, #tpu.memory_space<vmem>>, vector<8x384xf32>
    %c56_66 = arith.constant 56 : index
    %c0_67 = arith.constant 0 : index
    %52 = vector.load %arg6[%c56_66, %c0_67] : memref<80x384xf32, #tpu.memory_space<vmem>>, vector<8x384xf32>
    tpu.vector_store %arg6[%c56_66, %c0_67], %51 {strides = array<i32>} : memref<80x384xf32, #tpu.memory_space<vmem>>, vector<8x384xf32>,
    %c0_68 = arith.constant 0 : index
    %c147_69 = arith.constant 147 : index
    %53 = vector.load %arg5[%c0_68, %c147_69] : memref<8x640xf32, #tpu.memory_space<vmem>>, vector<8x384xf32>
    %c64_70 = arith.constant 64 : index
    %c0_71 = arith.constant 0 : index
    %54 = vector.load %arg6[%c64_70, %c0_71] : memref<80x384xf32, #tpu.memory_space<vmem>>, vector<8x384xf32>
    tpu.vector_store %arg6[%c64_70, %c0_71], %53 {strides = array<i32>} : memref<80x384xf32, #tpu.memory_space<vmem>>, vector<8x384xf32>,
    %c1 = arith.constant 1 : index
    %c0_72 = arith.constant 0 : index
    %c0_73 = arith.constant 0 : index
    %55 = vector.load %arg2[%c1, %c0_72, %c0_73] : memref<8x8x80xf32, #tpu.memory_space<vmem>>, vector<1x8x80xf32>
    %56 = vector.shape_cast %55 : vector<1x8x80xf32> to vector<8x80xf32>
    %c0_74 = arith.constant 0 : index
    %c0_75 = arith.constant 0 : index
    %57 = vector.load %arg6[%c0_74, %c0_75] : memref<80x384xf32, #tpu.memory_space<vmem>>, vector<80x384xf32>
    %cst_76 = arith.constant dense<0.000000e+00> : vector<8x384xf32>
    %58 = tpu.matmul %56, %57, %cst_76 {dimension_numbers = #tpu.dot_dimension_numbers<[1], [0], [0], [1], [0, 0, 1, 1], [], []>} : vector<8x80xf32>, vector<80x384xf32>, vector<8x384xf32> -> vector<8x384xf32>
    %59 = vector.broadcast %11 : vector<1x384xf32> to vector<8x384xf32>
    %60 = arith.mulf %58, %59 : vector<8x384xf32>
    %c0_77 = arith.constant 0 : index
    %c128_78 = arith.constant 128 : index
    %61 = vector.load %arg5[%c0_77, %c128_78] : memref<8x640xf32, #tpu.memory_space<vmem>>, vector<8x384xf32>
    tpu.vector_store %arg5[%c0_77, %c128_78], %60 {strides = array<i32>} : memref<8x640xf32, #tpu.memory_space<vmem>>, vector<8x384xf32>,
    %c0_79 = arith.constant 0 : index
    %c109_80 = arith.constant 109 : index
    %62 = vector.load %arg5[%c0_79, %c109_80] : memref<8x640xf32, #tpu.memory_space<vmem>>, vector<8x384xf32>
    %c0_81 = arith.constant 0 : index
    %c0_82 = arith.constant 0 : index
    %63 = vector.load %arg6[%c0_81, %c0_82] : memref<80x384xf32, #tpu.memory_space<vmem>>, vector<8x384xf32>
    tpu.vector_store %arg6[%c0_81, %c0_82], %62 {strides = array<i32>} : memref<80x384xf32, #tpu.memory_space<vmem>>, vector<8x384xf32>,
    %c0_83 = arith.constant 0 : index
    %c110_84 = arith.constant 110 : index
    %64 = vector.load %arg5[%c0_83, %c110_84] : memref<8x640xf32, #tpu.memory_space<vmem>>, vector<8x384xf32>
    %c8_85 = arith.constant 8 : index
    %c0_86 = arith.constant 0 : index
    %65 = vector.load %arg6[%c8_85, %c0_86] : memref<80x384xf32, #tpu.memory_space<vmem>>, vector<8x384xf32>
    tpu.vector_store %arg6[%c8_85, %c0_86], %64 {strides = array<i32>} : memref<80x384xf32, #tpu.memory_space<vmem>>, vector<8x384xf32>,
    %c0_87 = arith.constant 0 : index
    %c111_88 = arith.constant 111 : index
    %66 = vector.load %arg5[%c0_87, %c111_88] : memref<8x640xf32, #tpu.memory_space<vmem>>, vector<8x384xf32>
    %c16_89 = arith.constant 16 : index
    %c0_90 = arith.constant 0 : index
    %67 = vector.load %arg6[%c16_89, %c0_90] : memref<80x384xf32, #tpu.memory_space<vmem>>, vector<8x384xf32>
    tpu.vector_store %arg6[%c16_89, %c0_90], %66 {strides = array<i32>} : memref<80x384xf32, #tpu.memory_space<vmem>>, vector<8x384xf32>,
    %c0_91 = arith.constant 0 : index
    %c127_92 = arith.constant 127 : index
    %68 = vector.load %arg5[%c0_91, %c127_92] : memref<8x640xf32, #tpu.memory_space<vmem>>, vector<8x384xf32>
    %c24_93 = arith.constant 24 : index
    %c0_94 = arith.constant 0 : index
    %69 = vector.load %arg6[%c24_93, %c0_94] : memref<80x384xf32, #tpu.memory_space<vmem>>, vector<8x384xf32>
    tpu.vector_store %arg6[%c24_93, %c0_94], %68 {strides = array<i32>} : memref<80x384xf32, #tpu.memory_space<vmem>>, vector<8x384xf32>,
    %c0_95 = arith.constant 0 : index
    %c128_96 = arith.constant 128 : index
    %70 = vector.load %arg5[%c0_95, %c128_96] : memref<8x640xf32, #tpu.memory_space<vmem>>, vector<8x384xf32>
    %c32_97 = arith.constant 32 : index
    %c0_98 = arith.constant 0 : index
    %71 = vector.load %arg6[%c32_97, %c0_98] : memref<80x384xf32, #tpu.memory_space<vmem>>, vector<8x384xf32>
    tpu.vector_store %arg6[%c32_97, %c0_98], %70 {strides = array<i32>} : memref<80x384xf32, #tpu.memory_space<vmem>>, vector<8x384xf32>,
    %c0_99 = arith.constant 0 : index
    %c129_100 = arith.constant 129 : index
    %72 = vector.load %arg5[%c0_99, %c129_100] : memref<8x640xf32, #tpu.memory_space<vmem>>, vector<8x384xf32>
    %c40_101 = arith.constant 40 : index
    %c0_102 = arith.constant 0 : index
    %73 = vector.load %arg6[%c40_101, %c0_102] : memref<80x384xf32, #tpu.memory_space<vmem>>, vector<8x384xf32>
    tpu.vector_store %arg6[%c40_101, %c0_102], %72 {strides = array<i32>} : memref<80x384xf32, #tpu.memory_space<vmem>>, vector<8x384xf32>,
    %c0_103 = arith.constant 0 : index
    %c145_104 = arith.constant 145 : index
    %74 = vector.load %arg5[%c0_103, %c145_104] : memref<8x640xf32, #tpu.memory_space<vmem>>, vector<8x384xf32>
    %c48_105 = arith.constant 48 : index
    %c0_106 = arith.constant 0 : index
    %75 = vector.load %arg6[%c48_105, %c0_106] : memref<80x384xf32, #tpu.memory_space<vmem>>, vector<8x384xf32>
    tpu.vector_store %arg6[%c48_105, %c0_106], %74 {strides = array<i32>} : memref<80x384xf32, #tpu.memory_space<vmem>>, vector<8x384xf32>,
    %c0_107 = arith.constant 0 : index
    %c146_108 = arith.constant 146 : index
    %76 = vector.load %arg5[%c0_107, %c146_108] : memref<8x640xf32, #tpu.memory_space<vmem>>, vector<8x384xf32>
    %c56_109 = arith.constant 56 : index
    %c0_110 = arith.constant 0 : index
    %77 = vector.load %arg6[%c56_109, %c0_110] : memref<80x384xf32, #tpu.memory_space<vmem>>, vector<8x384xf32>
    tpu.vector_store %arg6[%c56_109, %c0_110], %76 {strides = array<i32>} : memref<80x384xf32, #tpu.memory_space<vmem>>, vector<8x384xf32>,
    %c0_111 = arith.constant 0 : index
    %c147_112 = arith.constant 147 : index
    %78 = vector.load %arg5[%c0_111, %c147_112] : memref<8x640xf32, #tpu.memory_space<vmem>>, vector<8x384xf32>
    %c64_113 = arith.constant 64 : index
    %c0_114 = arith.constant 0 : index
    %79 = vector.load %arg6[%c64_113, %c0_114] : memref<80x384xf32, #tpu.memory_space<vmem>>, vector<8x384xf32>
    tpu.vector_store %arg6[%c64_113, %c0_114], %78 {strides = array<i32>} : memref<80x384xf32, #tpu.memory_space<vmem>>, vector<8x384xf32>,
    %c2 = arith.constant 2 : index
    %c0_115 = arith.constant 0 : index
    %c0_116 = arith.constant 0 : index
    %80 = vector.load %arg2[%c2, %c0_115, %c0_116] : memref<8x8x80xf32, #tpu.memory_space<vmem>>, vector<1x8x80xf32>
    %81 = vector.shape_cast %80 : vector<1x8x80xf32> to vector<8x80xf32>
    %c0_117 = arith.constant 0 : index
    %c0_118 = arith.constant 0 : index
    %82 = vector.load %arg6[%c0_117, %c0_118] : memref<80x384xf32, #tpu.memory_space<vmem>>, vector<80x384xf32>
    %cst_119 = arith.constant dense<0.000000e+00> : vector<8x384xf32>
    %83 = tpu.matmul %81, %82, %cst_119 {dimension_numbers = #tpu.dot_dimension_numbers<[1], [0], [0], [1], [0, 0, 1, 1], [], []>} : vector<8x80xf32>, vector<80x384xf32>, vector<8x384xf32> -> vector<8x384xf32>
    %84 = vector.broadcast %11 : vector<1x384xf32> to vector<8x384xf32>
    %85 = arith.mulf %83, %84 : vector<8x384xf32>
    %c0_120 = arith.constant 0 : index
    %c128_121 = arith.constant 128 : index
    %86 = vector.load %arg5[%c0_120, %c128_121] : memref<8x640xf32, #tpu.memory_space<vmem>>, vector<8x384xf32>
    tpu.vector_store %arg5[%c0_120, %c128_121], %85 {strides = array<i32>} : memref<8x640xf32, #tpu.memory_space<vmem>>, vector<8x384xf32>,
    %c0_122 = arith.constant 0 : index
    %c109_123 = arith.constant 109 : index
    %87 = vector.load %arg5[%c0_122, %c109_123] : memref<8x640xf32, #tpu.memory_space<vmem>>, vector<8x384xf32>
    %c0_124 = arith.constant 0 : index
    %c0_125 = arith.constant 0 : index
    %88 = vector.load %arg6[%c0_124, %c0_125] : memref<80x384xf32, #tpu.memory_space<vmem>>, vector<8x384xf32>
    tpu.vector_store %arg6[%c0_124, %c0_125], %87 {strides = array<i32>} : memref<80x384xf32, #tpu.memory_space<vmem>>, vector<8x384xf32>,
    %c0_126 = arith.constant 0 : index
    %c110_127 = arith.constant 110 : index
    %89 = vector.load %arg5[%c0_126, %c110_127] : memref<8x640xf32, #tpu.memory_space<vmem>>, vector<8x384xf32>
    %c8_128 = arith.constant 8 : index
    %c0_129 = arith.constant 0 : index
    %90 = vector.load %arg6[%c8_128, %c0_129] : memref<80x384xf32, #tpu.memory_space<vmem>>, vector<8x384xf32>
    tpu.vector_store %arg6[%c8_128, %c0_129], %89 {strides = array<i32>} : memref<80x384xf32, #tpu.memory_space<vmem>>, vector<8x384xf32>,
    %c0_130 = arith.constant 0 : index
    %c111_131 = arith.constant 111 : index
    %91 = vector.load %arg5[%c0_130, %c111_131] : memref<8x640xf32, #tpu.memory_space<vmem>>, vector<8x384xf32>
    %c16_132 = arith.constant 16 : index
    %c0_133 = arith.constant 0 : index
    %92 = vector.load %arg6[%c16_132, %c0_133] : memref<80x384xf32, #tpu.memory_space<vmem>>, vector<8x384xf32>
    tpu.vector_store %arg6[%c16_132, %c0_133], %91 {strides = array<i32>} : memref<80x384xf32, #tpu.memory_space<vmem>>, vector<8x384xf32>,
    %c0_134 = arith.constant 0 : index
    %c127_135 = arith.constant 127 : index
    %93 = vector.load %arg5[%c0_134, %c127_135] : memref<8x640xf32, #tpu.memory_space<vmem>>, vector<8x384xf32>
    %c24_136 = arith.constant 24 : index
    %c0_137 = arith.constant 0 : index
    %94 = vector.load %arg6[%c24_136, %c0_137] : memref<80x384xf32, #tpu.memory_space<vmem>>, vector<8x384xf32>
    tpu.vector_store %arg6[%c24_136, %c0_137], %93 {strides = array<i32>} : memref<80x384xf32, #tpu.memory_space<vmem>>, vector<8x384xf32>,
    %c0_138 = arith.constant 0 : index
    %c128_139 = arith.constant 128 : index
    %95 = vector.load %arg5[%c0_138, %c128_139] : memref<8x640xf32, #tpu.memory_space<vmem>>, vector<8x384xf32>
    %c32_140 = arith.constant 32 : index
    %c0_141 = arith.constant 0 : index
    %96 = vector.load %arg6[%c32_140, %c0_141] : memref<80x384xf32, #tpu.memory_space<vmem>>, vector<8x384xf32>
    tpu.vector_store %arg6[%c32_140, %c0_141], %95 {strides = array<i32>} : memref<80x384xf32, #tpu.memory_space<vmem>>, vector<8x384xf32>,
    %c0_142 = arith.constant 0 : index
    %c129_143 = arith.constant 129 : index
    %97 = vector.load %arg5[%c0_142, %c129_143] : memref<8x640xf32, #tpu.memory_space<vmem>>, vector<8x384xf32>
    %c40_144 = arith.constant 40 : index
    %c0_145 = arith.constant 0 : index
    %98 = vector.load %arg6[%c40_144, %c0_145] : memref<80x384xf32, #tpu.memory_space<vmem>>, vector<8x384xf32>
    tpu.vector_store %arg6[%c40_144, %c0_145], %97 {strides = array<i32>} : memref<80x384xf32, #tpu.memory_space<vmem>>, vector<8x384xf32>,
    %c0_146 = arith.constant 0 : index
    %c145_147 = arith.constant 145 : index
    %99 = vector.load %arg5[%c0_146, %c145_147] : memref<8x640xf32, #tpu.memory_space<vmem>>, vector<8x384xf32>
    %c48_148 = arith.constant 48 : index
    %c0_149 = arith.constant 0 : index
    %100 = vector.load %arg6[%c48_148, %c0_149] : memref<80x384xf32, #tpu.memory_space<vmem>>, vector<8x384xf32>
    tpu.vector_store %arg6[%c48_148, %c0_149], %99 {strides = array<i32>} : memref<80x384xf32, #tpu.memory_space<vmem>>, vector<8x384xf32>,
    %c0_150 = arith.constant 0 : index
    %c146_151 = arith.constant 146 : index
    %101 = vector.load %arg5[%c0_150, %c146_151] : memref<8x640xf32, #tpu.memory_space<vmem>>, vector<8x384xf32>
    %c56_152 = arith.constant 56 : index
    %c0_153 = arith.constant 0 : index
    %102 = vector.load %arg6[%c56_152, %c0_153] : memref<80x384xf32, #tpu.memory_space<vmem>>, vector<8x384xf32>
    tpu.vector_store %arg6[%c56_152, %c0_153], %101 {strides = array<i32>} : memref<80x384xf32, #tpu.memory_space<vmem>>, vector<8x384xf32>,
    %c0_154 = arith.constant 0 : index
    %c147_155 = arith.constant 147 : index
    %103 = vector.load %arg5[%c0_154, %c147_155] : memref<8x640xf32, #tpu.memory_space<vmem>>, vector<8x384xf32>
    %c64_156 = arith.constant 64 : index
    %c0_157 = arith.constant 0 : index
    %104 = vector.load %arg6[%c64_156, %c0_157] : memref<80x384xf32, #tpu.memory_space<vmem>>, vector<8x384xf32>
    tpu.vector_store %arg6[%c64_156, %c0_157], %103 {strides = array<i32>} : memref<80x384xf32, #tpu.memory_space<vmem>>, vector<8x384xf32>,
    %c3 = arith.constant 3 : index
    %c0_158 = arith.constant 0 : index
    %c0_159 = arith.constant 0 : index
    %105 = vector.load %arg2[%c3, %c0_158, %c0_159] : memref<8x8x80xf32, #tpu.memory_space<vmem>>, vector<1x8x80xf32>
    %106 = vector.shape_cast %105 : vector<1x8x80xf32> to vector<8x80xf32>
    %c0_160 = arith.constant 0 : index
    %c0_161 = arith.constant 0 : index
    %107 = vector.load %arg6[%c0_160, %c0_161] : memref<80x384xf32, #tpu.memory_space<vmem>>, vector<80x384xf32>
    %cst_162 = arith.constant dense<0.000000e+00> : vector<8x384xf32>
    %108 = tpu.matmul %106, %107, %cst_162 {dimension_numbers = #tpu.dot_dimension_numbers<[1], [0], [0], [1], [0, 0, 1, 1], [], []>} : vector<8x80xf32>, vector<80x384xf32>, vector<8x384xf32> -> vector<8x384xf32>
    %109 = vector.broadcast %11 : vector<1x384xf32> to vector<8x384xf32>
    %110 = arith.mulf %108, %109 : vector<8x384xf32>
    %c0_163 = arith.constant 0 : index
    %c128_164 = arith.constant 128 : index
    %111 = vector.load %arg5[%c0_163, %c128_164] : memref<8x640xf32, #tpu.memory_space<vmem>>, vector<8x384xf32>
    tpu.vector_store %arg5[%c0_163, %c128_164], %110 {strides = array<i32>} : memref<8x640xf32, #tpu.memory_space<vmem>>, vector<8x384xf32>,
    %c0_165 = arith.constant 0 : index
    %c109_166 = arith.constant 109 : index
    %112 = vector.load %arg5[%c0_165, %c109_166] : memref<8x640xf32, #tpu.memory_space<vmem>>, vector<8x384xf32>
    %c0_167 = arith.constant 0 : index
    %c0_168 = arith.constant 0 : index
    %113 = vector.load %arg6[%c0_167, %c0_168] : memref<80x384xf32, #tpu.memory_space<vmem>>, vector<8x384xf32>
    tpu.vector_store %arg6[%c0_167, %c0_168], %112 {strides = array<i32>} : memref<80x384xf32, #tpu.memory_space<vmem>>, vector<8x384xf32>,
    %c0_169 = arith.constant 0 : index
    %c110_170 = arith.constant 110 : index
    %114 = vector.load %arg5[%c0_169, %c110_170] : memref<8x640xf32, #tpu.memory_space<vmem>>, vector<8x384xf32>
    %c8_171 = arith.constant 8 : index
    %c0_172 = arith.constant 0 : index
    %115 = vector.load %arg6[%c8_171, %c0_172] : memref<80x384xf32, #tpu.memory_space<vmem>>, vector<8x384xf32>
    tpu.vector_store %arg6[%c8_171, %c0_172], %114 {strides = array<i32>} : memref<80x384xf32, #tpu.memory_space<vmem>>, vector<8x384xf32>,
    %c0_173 = arith.constant 0 : index
    %c111_174 = arith.constant 111 : index
    %116 = vector.load %arg5[%c0_173, %c111_174] : memref<8x640xf32, #tpu.memory_space<vmem>>, vector<8x384xf32>
    %c16_175 = arith.constant 16 : index
    %c0_176 = arith.constant 0 : index
    %117 = vector.load %arg6[%c16_175, %c0_176] : memref<80x384xf32, #tpu.memory_space<vmem>>, vector<8x384xf32>
    tpu.vector_store %arg6[%c16_175, %c0_176], %116 {strides = array<i32>} : memref<80x384xf32, #tpu.memory_space<vmem>>, vector<8x384xf32>,
    %c0_177 = arith.constant 0 : index
    %c127_178 = arith.constant 127 : index
    %118 = vector.load %arg5[%c0_177, %c127_178] : memref<8x640xf32, #tpu.memory_space<vmem>>, vector<8x384xf32>
    %c24_179 = arith.constant 24 : index
    %c0_180 = arith.constant 0 : index
    %119 = vector.load %arg6[%c24_179, %c0_180] : memref<80x384xf32, #tpu.memory_space<vmem>>, vector<8x384xf32>
    tpu.vector_store %arg6[%c24_179, %c0_180], %118 {strides = array<i32>} : memref<80x384xf32, #tpu.memory_space<vmem>>, vector<8x384xf32>,
    %c0_181 = arith.constant 0 : index
    %c128_182 = arith.constant 128 : index
    %120 = vector.load %arg5[%c0_181, %c128_182] : memref<8x640xf32, #tpu.memory_space<vmem>>, vector<8x384xf32>
    %c32_183 = arith.constant 32 : index
    %c0_184 = arith.constant 0 : index
    %121 = vector.load %arg6[%c32_183, %c0_184] : memref<80x384xf32, #tpu.memory_space<vmem>>, vector<8x384xf32>
    tpu.vector_store %arg6[%c32_183, %c0_184], %120 {strides = array<i32>} : memref<80x384xf32, #tpu.memory_space<vmem>>, vector<8x384xf32>,
    %c0_185 = arith.constant 0 : index
    %c129_186 = arith.constant 129 : index
    %122 = vector.load %arg5[%c0_185, %c129_186] : memref<8x640xf32, #tpu.memory_space<vmem>>, vector<8x384xf32>
    %c40_187 = arith.constant 40 : index
    %c0_188 = arith.constant 0 : index
    %123 = vector.load %arg6[%c40_187, %c0_188] : memref<80x384xf32, #tpu.memory_space<vmem>>, vector<8x384xf32>
    tpu.vector_store %arg6[%c40_187, %c0_188], %122 {strides = array<i32>} : memref<80x384xf32, #tpu.memory_space<vmem>>, vector<8x384xf32>,
    %c0_189 = arith.constant 0 : index
    %c145_190 = arith.constant 145 : index
    %124 = vector.load %arg5[%c0_189, %c145_190] : memref<8x640xf32, #tpu.memory_space<vmem>>, vector<8x384xf32>
    %c48_191 = arith.constant 48 : index
    %c0_192 = arith.constant 0 : index
    %125 = vector.load %arg6[%c48_191, %c0_192] : memref<80x384xf32, #tpu.memory_space<vmem>>, vector<8x384xf32>
    tpu.vector_store %arg6[%c48_191, %c0_192], %124 {strides = array<i32>} : memref<80x384xf32, #tpu.memory_space<vmem>>, vector<8x384xf32>,
    %c0_193 = arith.constant 0 : index
    %c146_194 = arith.constant 146 : index
    %126 = vector.load %arg5[%c0_193, %c146_194] : memref<8x640xf32, #tpu.memory_space<vmem>>, vector<8x384xf32>
    %c56_195 = arith.constant 56 : index
    %c0_196 = arith.constant 0 : index
    %127 = vector.load %arg6[%c56_195, %c0_196] : memref<80x384xf32, #tpu.memory_space<vmem>>, vector<8x384xf32>
    tpu.vector_store %arg6[%c56_195, %c0_196], %126 {strides = array<i32>} : memref<80x384xf32, #tpu.memory_space<vmem>>, vector<8x384xf32>,
    %c0_197 = arith.constant 0 : index
    %c147_198 = arith.constant 147 : index
    %128 = vector.load %arg5[%c0_197, %c147_198] : memref<8x640xf32, #tpu.memory_space<vmem>>, vector<8x384xf32>
    %c64_199 = arith.constant 64 : index
    %c0_200 = arith.constant 0 : index
    %129 = vector.load %arg6[%c64_199, %c0_200] : memref<80x384xf32, #tpu.memory_space<vmem>>, vector<8x384xf32>
    tpu.vector_store %arg6[%c64_199, %c0_200], %128 {strides = array<i32>} : memref<80x384xf32, #tpu.memory_space<vmem>>, vector<8x384xf32>,
    %c4 = arith.constant 4 : index
    %c0_201 = arith.constant 0 : index
    %c0_202 = arith.constant 0 : index
    %130 = vector.load %arg2[%c4, %c0_201, %c0_202] : memref<8x8x80xf32, #tpu.memory_space<vmem>>, vector<1x8x80xf32>
    %131 = vector.shape_cast %130 : vector<1x8x80xf32> to vector<8x80xf32>
    %c0_203 = arith.constant 0 : index
    %c0_204 = arith.constant 0 : index
    %132 = vector.load %arg6[%c0_203, %c0_204] : memref<80x384xf32, #tpu.memory_space<vmem>>, vector<80x384xf32>
    %cst_205 = arith.constant dense<0.000000e+00> : vector<8x384xf32>
    %133 = tpu.matmul %131, %132, %cst_205 {dimension_numbers = #tpu.dot_dimension_numbers<[1], [0], [0], [1], [0, 0, 1, 1], [], []>} : vector<8x80xf32>, vector<80x384xf32>, vector<8x384xf32> -> vector<8x384xf32>
    %134 = vector.broadcast %11 : vector<1x384xf32> to vector<8x384xf32>
    %135 = arith.mulf %133, %134 : vector<8x384xf32>
    %c0_206 = arith.constant 0 : index
    %c128_207 = arith.constant 128 : index
    %136 = vector.load %arg5[%c0_206, %c128_207] : memref<8x640xf32, #tpu.memory_space<vmem>>, vector<8x384xf32>
    tpu.vector_store %arg5[%c0_206, %c128_207], %135 {strides = array<i32>} : memref<8x640xf32, #tpu.memory_space<vmem>>, vector<8x384xf32>,
    %c0_208 = arith.constant 0 : index
    %c109_209 = arith.constant 109 : index
    %137 = vector.load %arg5[%c0_208, %c109_209] : memref<8x640xf32, #tpu.memory_space<vmem>>, vector<8x384xf32>
    %c0_210 = arith.constant 0 : index
    %c0_211 = arith.constant 0 : index
    %138 = vector.load %arg6[%c0_210, %c0_211] : memref<80x384xf32, #tpu.memory_space<vmem>>, vector<8x384xf32>
    tpu.vector_store %arg6[%c0_210, %c0_211], %137 {strides = array<i32>} : memref<80x384xf32, #tpu.memory_space<vmem>>, vector<8x384xf32>,
    %c0_212 = arith.constant 0 : index
    %c110_213 = arith.constant 110 : index
    %139 = vector.load %arg5[%c0_212, %c110_213] : memref<8x640xf32, #tpu.memory_space<vmem>>, vector<8x384xf32>
    %c8_214 = arith.constant 8 : index
    %c0_215 = arith.constant 0 : index
    %140 = vector.load %arg6[%c8_214, %c0_215] : memref<80x384xf32, #tpu.memory_space<vmem>>, vector<8x384xf32>
    tpu.vector_store %arg6[%c8_214, %c0_215], %139 {strides = array<i32>} : memref<80x384xf32, #tpu.memory_space<vmem>>, vector<8x384xf32>,
    %c0_216 = arith.constant 0 : index
    %c111_217 = arith.constant 111 : index
    %141 = vector.load %arg5[%c0_216, %c111_217] : memref<8x640xf32, #tpu.memory_space<vmem>>, vector<8x384xf32>
    %c16_218 = arith.constant 16 : index
    %c0_219 = arith.constant 0 : index
    %142 = vector.load %arg6[%c16_218, %c0_219] : memref<80x384xf32, #tpu.memory_space<vmem>>, vector<8x384xf32>
    tpu.vector_store %arg6[%c16_218, %c0_219], %141 {strides = array<i32>} : memref<80x384xf32, #tpu.memory_space<vmem>>, vector<8x384xf32>,
    %c0_220 = arith.constant 0 : index
    %c127_221 = arith.constant 127 : index
    %143 = vector.load %arg5[%c0_220, %c127_221] : memref<8x640xf32, #tpu.memory_space<vmem>>, vector<8x384xf32>
    %c24_222 = arith.constant 24 : index
    %c0_223 = arith.constant 0 : index
    %144 = vector.load %arg6[%c24_222, %c0_223] : memref<80x384xf32, #tpu.memory_space<vmem>>, vector<8x384xf32>
    tpu.vector_store %arg6[%c24_222, %c0_223], %143 {strides = array<i32>} : memref<80x384xf32, #tpu.memory_space<vmem>>, vector<8x384xf32>,
    %c0_224 = arith.constant 0 : index
    %c128_225 = arith.constant 128 : index
    %145 = vector.load %arg5[%c0_224, %c128_225] : memref<8x640xf32, #tpu.memory_space<vmem>>, vector<8x384xf32>
    %c32_226 = arith.constant 32 : index
    %c0_227 = arith.constant 0 : index
    %146 = vector.load %arg6[%c32_226, %c0_227] : memref<80x384xf32, #tpu.memory_space<vmem>>, vector<8x384xf32>
    tpu.vector_store %arg6[%c32_226, %c0_227], %145 {strides = array<i32>} : memref<80x384xf32, #tpu.memory_space<vmem>>, vector<8x384xf32>,
    %c0_228 = arith.constant 0 : index
    %c129_229 = arith.constant 129 : index
    %147 = vector.load %arg5[%c0_228, %c129_229] : memref<8x640xf32, #tpu.memory_space<vmem>>, vector<8x384xf32>
    %c40_230 = arith.constant 40 : index
    %c0_231 = arith.constant 0 : index
    %148 = vector.load %arg6[%c40_230, %c0_231] : memref<80x384xf32, #tpu.memory_space<vmem>>, vector<8x384xf32>
    tpu.vector_store %arg6[%c40_230, %c0_231], %147 {strides = array<i32>} : memref<80x384xf32, #tpu.memory_space<vmem>>, vector<8x384xf32>,
    %c0_232 = arith.constant 0 : index
    %c145_233 = arith.constant 145 : index
    %149 = vector.load %arg5[%c0_232, %c145_233] : memref<8x640xf32, #tpu.memory_space<vmem>>, vector<8x384xf32>
    %c48_234 = arith.constant 48 : index
    %c0_235 = arith.constant 0 : index
    %150 = vector.load %arg6[%c48_234, %c0_235] : memref<80x384xf32, #tpu.memory_space<vmem>>, vector<8x384xf32>
    tpu.vector_store %arg6[%c48_234, %c0_235], %149 {strides = array<i32>} : memref<80x384xf32, #tpu.memory_space<vmem>>, vector<8x384xf32>,
    %c0_236 = arith.constant 0 : index
    %c146_237 = arith.constant 146 : index
    %151 = vector.load %arg5[%c0_236, %c146_237] : memref<8x640xf32, #tpu.memory_space<vmem>>, vector<8x384xf32>
    %c56_238 = arith.constant 56 : index
    %c0_239 = arith.constant 0 : index
    %152 = vector.load %arg6[%c56_238, %c0_239] : memref<80x384xf32, #tpu.memory_space<vmem>>, vector<8x384xf32>
    tpu.vector_store %arg6[%c56_238, %c0_239], %151 {strides = array<i32>} : memref<80x384xf32, #tpu.memory_space<vmem>>, vector<8x384xf32>,
    %c0_240 = arith.constant 0 : index
    %c147_241 = arith.constant 147 : index
    %153 = vector.load %arg5[%c0_240, %c147_241] : memref<8x640xf32, #tpu.memory_space<vmem>>, vector<8x384xf32>
    %c64_242 = arith.constant 64 : index
    %c0_243 = arith.constant 0 : index
    %154 = vector.load %arg6[%c64_242, %c0_243] : memref<80x384xf32, #tpu.memory_space<vmem>>, vector<8x384xf32>
    tpu.vector_store %arg6[%c64_242, %c0_243], %153 {strides = array<i32>} : memref<80x384xf32, #tpu.memory_space<vmem>>, vector<8x384xf32>,
    %c5 = arith.constant 5 : index
    %c0_244 = arith.constant 0 : index
    %c0_245 = arith.constant 0 : index
    %155 = vector.load %arg2[%c5, %c0_244, %c0_245] : memref<8x8x80xf32, #tpu.memory_space<vmem>>, vector<1x8x80xf32>
    %156 = vector.shape_cast %155 : vector<1x8x80xf32> to vector<8x80xf32>
    %c0_246 = arith.constant 0 : index
    %c0_247 = arith.constant 0 : index
    %157 = vector.load %arg6[%c0_246, %c0_247] : memref<80x384xf32, #tpu.memory_space<vmem>>, vector<80x384xf32>
    %cst_248 = arith.constant dense<0.000000e+00> : vector<8x384xf32>
    %158 = tpu.matmul %156, %157, %cst_248 {dimension_numbers = #tpu.dot_dimension_numbers<[1], [0], [0], [1], [0, 0, 1, 1], [], []>} : vector<8x80xf32>, vector<80x384xf32>, vector<8x384xf32> -> vector<8x384xf32>
    %159 = vector.broadcast %11 : vector<1x384xf32> to vector<8x384xf32>
    %160 = arith.mulf %158, %159 : vector<8x384xf32>
    %c0_249 = arith.constant 0 : index
    %c128_250 = arith.constant 128 : index
    %161 = vector.load %arg5[%c0_249, %c128_250] : memref<8x640xf32, #tpu.memory_space<vmem>>, vector<8x384xf32>
    tpu.vector_store %arg5[%c0_249, %c128_250], %160 {strides = array<i32>} : memref<8x640xf32, #tpu.memory_space<vmem>>, vector<8x384xf32>,
    %c0_251 = arith.constant 0 : index
    %c109_252 = arith.constant 109 : index
    %162 = vector.load %arg5[%c0_251, %c109_252] : memref<8x640xf32, #tpu.memory_space<vmem>>, vector<8x384xf32>
    %c0_253 = arith.constant 0 : index
    %c0_254 = arith.constant 0 : index
    %163 = vector.load %arg6[%c0_253, %c0_254] : memref<80x384xf32, #tpu.memory_space<vmem>>, vector<8x384xf32>
    tpu.vector_store %arg6[%c0_253, %c0_254], %162 {strides = array<i32>} : memref<80x384xf32, #tpu.memory_space<vmem>>, vector<8x384xf32>,
    %c0_255 = arith.constant 0 : index
    %c110_256 = arith.constant 110 : index
    %164 = vector.load %arg5[%c0_255, %c110_256] : memref<8x640xf32, #tpu.memory_space<vmem>>, vector<8x384xf32>
    %c8_257 = arith.constant 8 : index
    %c0_258 = arith.constant 0 : index
    %165 = vector.load %arg6[%c8_257, %c0_258] : memref<80x384xf32, #tpu.memory_space<vmem>>, vector<8x384xf32>
    tpu.vector_store %arg6[%c8_257, %c0_258], %164 {strides = array<i32>} : memref<80x384xf32, #tpu.memory_space<vmem>>, vector<8x384xf32>,
    %c0_259 = arith.constant 0 : index
    %c111_260 = arith.constant 111 : index
    %166 = vector.load %arg5[%c0_259, %c111_260] : memref<8x640xf32, #tpu.memory_space<vmem>>, vector<8x384xf32>
    %c16_261 = arith.constant 16 : index
    %c0_262 = arith.constant 0 : index
    %167 = vector.load %arg6[%c16_261, %c0_262] : memref<80x384xf32, #tpu.memory_space<vmem>>, vector<8x384xf32>
    tpu.vector_store %arg6[%c16_261, %c0_262], %166 {strides = array<i32>} : memref<80x384xf32, #tpu.memory_space<vmem>>, vector<8x384xf32>,
    %c0_263 = arith.constant 0 : index
    %c127_264 = arith.constant 127 : index
    %168 = vector.load %arg5[%c0_263, %c127_264] : memref<8x640xf32, #tpu.memory_space<vmem>>, vector<8x384xf32>
    %c24_265 = arith.constant 24 : index
    %c0_266 = arith.constant 0 : index
    %169 = vector.load %arg6[%c24_265, %c0_266] : memref<80x384xf32, #tpu.memory_space<vmem>>, vector<8x384xf32>
    tpu.vector_store %arg6[%c24_265, %c0_266], %168 {strides = array<i32>} : memref<80x384xf32, #tpu.memory_space<vmem>>, vector<8x384xf32>,
    %c0_267 = arith.constant 0 : index
    %c128_268 = arith.constant 128 : index
    %170 = vector.load %arg5[%c0_267, %c128_268] : memref<8x640xf32, #tpu.memory_space<vmem>>, vector<8x384xf32>
    %c32_269 = arith.constant 32 : index
    %c0_270 = arith.constant 0 : index
    %171 = vector.load %arg6[%c32_269, %c0_270] : memref<80x384xf32, #tpu.memory_space<vmem>>, vector<8x384xf32>
    tpu.vector_store %arg6[%c32_269, %c0_270], %170 {strides = array<i32>} : memref<80x384xf32, #tpu.memory_space<vmem>>, vector<8x384xf32>,
    %c0_271 = arith.constant 0 : index
    %c129_272 = arith.constant 129 : index
    %172 = vector.load %arg5[%c0_271, %c129_272] : memref<8x640xf32, #tpu.memory_space<vmem>>, vector<8x384xf32>
    %c40_273 = arith.constant 40 : index
    %c0_274 = arith.constant 0 : index
    %173 = vector.load %arg6[%c40_273, %c0_274] : memref<80x384xf32, #tpu.memory_space<vmem>>, vector<8x384xf32>
    tpu.vector_store %arg6[%c40_273, %c0_274], %172 {strides = array<i32>} : memref<80x384xf32, #tpu.memory_space<vmem>>, vector<8x384xf32>,
    %c0_275 = arith.constant 0 : index
    %c145_276 = arith.constant 145 : index
    %174 = vector.load %arg5[%c0_275, %c145_276] : memref<8x640xf32, #tpu.memory_space<vmem>>, vector<8x384xf32>
    %c48_277 = arith.constant 48 : index
    %c0_278 = arith.constant 0 : index
    %175 = vector.load %arg6[%c48_277, %c0_278] : memref<80x384xf32, #tpu.memory_space<vmem>>, vector<8x384xf32>
    tpu.vector_store %arg6[%c48_277, %c0_278], %174 {strides = array<i32>} : memref<80x384xf32, #tpu.memory_space<vmem>>, vector<8x384xf32>,
    %c0_279 = arith.constant 0 : index
    %c146_280 = arith.constant 146 : index
    %176 = vector.load %arg5[%c0_279, %c146_280] : memref<8x640xf32, #tpu.memory_space<vmem>>, vector<8x384xf32>
    %c56_281 = arith.constant 56 : index
    %c0_282 = arith.constant 0 : index
    %177 = vector.load %arg6[%c56_281, %c0_282] : memref<80x384xf32, #tpu.memory_space<vmem>>, vector<8x384xf32>
    tpu.vector_store %arg6[%c56_281, %c0_282], %176 {strides = array<i32>} : memref<80x384xf32, #tpu.memory_space<vmem>>, vector<8x384xf32>,
    %c0_283 = arith.constant 0 : index
    %c147_284 = arith.constant 147 : index
    %178 = vector.load %arg5[%c0_283, %c147_284] : memref<8x640xf32, #tpu.memory_space<vmem>>, vector<8x384xf32>
    %c64_285 = arith.constant 64 : index
    %c0_286 = arith.constant 0 : index
    %179 = vector.load %arg6[%c64_285, %c0_286] : memref<80x384xf32, #tpu.memory_space<vmem>>, vector<8x384xf32>
    tpu.vector_store %arg6[%c64_285, %c0_286], %178 {strides = array<i32>} : memref<80x384xf32, #tpu.memory_space<vmem>>, vector<8x384xf32>,
    %c6 = arith.constant 6 : index
    %c0_287 = arith.constant 0 : index
    %c0_288 = arith.constant 0 : index
    %180 = vector.load %arg2[%c6, %c0_287, %c0_288] : memref<8x8x80xf32, #tpu.memory_space<vmem>>, vector<1x8x80xf32>
    %181 = vector.shape_cast %180 : vector<1x8x80xf32> to vector<8x80xf32>
    %c0_289 = arith.constant 0 : index
    %c0_290 = arith.constant 0 : index
    %182 = vector.load %arg6[%c0_289, %c0_290] : memref<80x384xf32, #tpu.memory_space<vmem>>, vector<80x384xf32>
    %cst_291 = arith.constant dense<0.000000e+00> : vector<8x384xf32>
    %183 = tpu.matmul %181, %182, %cst_291 {dimension_numbers = #tpu.dot_dimension_numbers<[1], [0], [0], [1], [0, 0, 1, 1], [], []>} : vector<8x80xf32>, vector<80x384xf32>, vector<8x384xf32> -> vector<8x384xf32>
    %184 = vector.broadcast %11 : vector<1x384xf32> to vector<8x384xf32>
    %185 = arith.mulf %183, %184 : vector<8x384xf32>
    %c0_292 = arith.constant 0 : index
    %c128_293 = arith.constant 128 : index
    %186 = vector.load %arg5[%c0_292, %c128_293] : memref<8x640xf32, #tpu.memory_space<vmem>>, vector<8x384xf32>
    tpu.vector_store %arg5[%c0_292, %c128_293], %185 {strides = array<i32>} : memref<8x640xf32, #tpu.memory_space<vmem>>, vector<8x384xf32>,
    %c0_294 = arith.constant 0 : index
    %c109_295 = arith.constant 109 : index
    %187 = vector.load %arg5[%c0_294, %c109_295] : memref<8x640xf32, #tpu.memory_space<vmem>>, vector<8x384xf32>
    %c0_296 = arith.constant 0 : index
    %c0_297 = arith.constant 0 : index
    %188 = vector.load %arg6[%c0_296, %c0_297] : memref<80x384xf32, #tpu.memory_space<vmem>>, vector<8x384xf32>
    tpu.vector_store %arg6[%c0_296, %c0_297], %187 {strides = array<i32>} : memref<80x384xf32, #tpu.memory_space<vmem>>, vector<8x384xf32>,
    %c0_298 = arith.constant 0 : index
    %c110_299 = arith.constant 110 : index
    %189 = vector.load %arg5[%c0_298, %c110_299] : memref<8x640xf32, #tpu.memory_space<vmem>>, vector<8x384xf32>
    %c8_300 = arith.constant 8 : index
    %c0_301 = arith.constant 0 : index
    %190 = vector.load %arg6[%c8_300, %c0_301] : memref<80x384xf32, #tpu.memory_space<vmem>>, vector<8x384xf32>
    tpu.vector_store %arg6[%c8_300, %c0_301], %189 {strides = array<i32>} : memref<80x384xf32, #tpu.memory_space<vmem>>, vector<8x384xf32>,
    %c0_302 = arith.constant 0 : index
    %c111_303 = arith.constant 111 : index
    %191 = vector.load %arg5[%c0_302, %c111_303] : memref<8x640xf32, #tpu.memory_space<vmem>>, vector<8x384xf32>
    %c16_304 = arith.constant 16 : index
    %c0_305 = arith.constant 0 : index
    %192 = vector.load %arg6[%c16_304, %c0_305] : memref<80x384xf32, #tpu.memory_space<vmem>>, vector<8x384xf32>
    tpu.vector_store %arg6[%c16_304, %c0_305], %191 {strides = array<i32>} : memref<80x384xf32, #tpu.memory_space<vmem>>, vector<8x384xf32>,
    %c0_306 = arith.constant 0 : index
    %c127_307 = arith.constant 127 : index
    %193 = vector.load %arg5[%c0_306, %c127_307] : memref<8x640xf32, #tpu.memory_space<vmem>>, vector<8x384xf32>
    %c24_308 = arith.constant 24 : index
    %c0_309 = arith.constant 0 : index
    %194 = vector.load %arg6[%c24_308, %c0_309] : memref<80x384xf32, #tpu.memory_space<vmem>>, vector<8x384xf32>
    tpu.vector_store %arg6[%c24_308, %c0_309], %193 {strides = array<i32>} : memref<80x384xf32, #tpu.memory_space<vmem>>, vector<8x384xf32>,
    %c0_310 = arith.constant 0 : index
    %c128_311 = arith.constant 128 : index
    %195 = vector.load %arg5[%c0_310, %c128_311] : memref<8x640xf32, #tpu.memory_space<vmem>>, vector<8x384xf32>
    %c32_312 = arith.constant 32 : index
    %c0_313 = arith.constant 0 : index
    %196 = vector.load %arg6[%c32_312, %c0_313] : memref<80x384xf32, #tpu.memory_space<vmem>>, vector<8x384xf32>
    tpu.vector_store %arg6[%c32_312, %c0_313], %195 {strides = array<i32>} : memref<80x384xf32, #tpu.memory_space<vmem>>, vector<8x384xf32>,
    %c0_314 = arith.constant 0 : index
    %c129_315 = arith.constant 129 : index
    %197 = vector.load %arg5[%c0_314, %c129_315] : memref<8x640xf32, #tpu.memory_space<vmem>>, vector<8x384xf32>
    %c40_316 = arith.constant 40 : index
    %c0_317 = arith.constant 0 : index
    %198 = vector.load %arg6[%c40_316, %c0_317] : memref<80x384xf32, #tpu.memory_space<vmem>>, vector<8x384xf32>
    tpu.vector_store %arg6[%c40_316, %c0_317], %197 {strides = array<i32>} : memref<80x384xf32, #tpu.memory_space<vmem>>, vector<8x384xf32>,
    %c0_318 = arith.constant 0 : index
    %c145_319 = arith.constant 145 : index
    %199 = vector.load %arg5[%c0_318, %c145_319] : memref<8x640xf32, #tpu.memory_space<vmem>>, vector<8x384xf32>
    %c48_320 = arith.constant 48 : index
    %c0_321 = arith.constant 0 : index
    %200 = vector.load %arg6[%c48_320, %c0_321] : memref<80x384xf32, #tpu.memory_space<vmem>>, vector<8x384xf32>
    tpu.vector_store %arg6[%c48_320, %c0_321], %199 {strides = array<i32>} : memref<80x384xf32, #tpu.memory_space<vmem>>, vector<8x384xf32>,
    %c0_322 = arith.constant 0 : index
    %c146_323 = arith.constant 146 : index
    %201 = vector.load %arg5[%c0_322, %c146_323] : memref<8x640xf32, #tpu.memory_space<vmem>>, vector<8x384xf32>
    %c56_324 = arith.constant 56 : index
    %c0_325 = arith.constant 0 : index
    %202 = vector.load %arg6[%c56_324, %c0_325] : memref<80x384xf32, #tpu.memory_space<vmem>>, vector<8x384xf32>
    tpu.vector_store %arg6[%c56_324, %c0_325], %201 {strides = array<i32>} : memref<80x384xf32, #tpu.memory_space<vmem>>, vector<8x384xf32>,
    %c0_326 = arith.constant 0 : index
    %c147_327 = arith.constant 147 : index
    %203 = vector.load %arg5[%c0_326, %c147_327] : memref<8x640xf32, #tpu.memory_space<vmem>>, vector<8x384xf32>
    %c64_328 = arith.constant 64 : index
    %c0_329 = arith.constant 0 : index
    %204 = vector.load %arg6[%c64_328, %c0_329] : memref<80x384xf32, #tpu.memory_space<vmem>>, vector<8x384xf32>
    tpu.vector_store %arg6[%c64_328, %c0_329], %203 {strides = array<i32>} : memref<80x384xf32, #tpu.memory_space<vmem>>, vector<8x384xf32>,
    %c7 = arith.constant 7 : index
    %c0_330 = arith.constant 0 : index
    %c0_331 = arith.constant 0 : index
    %205 = vector.load %arg2[%c7, %c0_330, %c0_331] : memref<8x8x80xf32, #tpu.memory_space<vmem>>, vector<1x8x80xf32>
    %206 = vector.shape_cast %205 : vector<1x8x80xf32> to vector<8x80xf32>
    %c0_332 = arith.constant 0 : index
    %c0_333 = arith.constant 0 : index
    %207 = vector.load %arg6[%c0_332, %c0_333] : memref<80x384xf32, #tpu.memory_space<vmem>>, vector<80x384xf32>
    %cst_334 = arith.constant dense<0.000000e+00> : vector<8x384xf32>
    %208 = tpu.matmul %206, %207, %cst_334 {dimension_numbers = #tpu.dot_dimension_numbers<[1], [0], [0], [1], [0, 0, 1, 1], [], []>} : vector<8x80xf32>, vector<80x384xf32>, vector<8x384xf32> -> vector<8x384xf32>
    %209 = vector.broadcast %11 : vector<1x384xf32> to vector<8x384xf32>
    %210 = arith.mulf %208, %209 : vector<8x384xf32>
    %c0_335 = arith.constant 0 : index
    %c128_336 = arith.constant 128 : index
    %211 = vector.load %arg5[%c0_335, %c128_336] : memref<8x640xf32, #tpu.memory_space<vmem>>, vector<8x384xf32>
    tpu.vector_store %arg5[%c0_335, %c128_336], %210 {strides = array<i32>} : memref<8x640xf32, #tpu.memory_space<vmem>>, vector<8x384xf32>,
    %c0_337 = arith.constant 0 : index
    %c128_338 = arith.constant 128 : index
    %212 = vector.load %arg5[%c0_337, %c128_338] : memref<8x640xf32, #tpu.memory_space<vmem>>, vector<8x384xf32>
    %c0_339 = arith.constant 0 : index
    %c0_340 = arith.constant 0 : index
    %c0_341 = arith.constant 0 : index
    %213 = vector.load %arg4[%c0_339, %c0_340, %c0_341] : memref<1x8x384xf32, #tpu.memory_space<vmem>>, vector<1x8x384xf32>
    %214 = vector.shape_cast %213 : vector<1x8x384xf32> to vector<8x384xf32>
    %215 = vector.shape_cast %212 : vector<8x384xf32> to vector<1x8x384xf32>
    tpu.vector_store %arg4[%c0_339, %c0_340, %c0_341], %215 {strides = array<i32>} : memref<1x8x384xf32, #tpu.memory_space<vmem>>, vector<1x8x384xf32>,
    return
  }
  func.func @transform_0(%arg0: i32) -> (i32, i32, i32) {
    %c0_i32 = arith.constant 0 : i32
    %c0_i32_0 = arith.constant 0 : i32
    %c0_i32_1 = arith.constant 0 : i32
    return %arg0, %c0_i32, %c0_i32_0 : i32, i32, i32
  }
  func.func @transform_1(%arg0: i32) -> (i32, i32, i32) {
    %c0_i32 = arith.constant 0 : i32
    %c0_i32_0 = arith.constant 0 : i32
    %c0_i32_1 = arith.constant 0 : i32
    %c0_i32_2 = arith.constant 0 : i32
    return %c0_i32, %c0_i32_0, %c0_i32_1 : i32, i32, i32
  }
  func.func @transform_2(%arg0: i32) -> (i32, i32) {
    %c0_i32 = arith.constant 0 : i32
    %c0_i32_0 = arith.constant 0 : i32
    %c0_i32_1 = arith.constant 0 : i32
    return %c0_i32, %c0_i32_0 : i32, i32
  }
  func.func @transform_3(%arg0: i32) -> (i32, i32, i32) {
    %c0_i32 = arith.constant 0 : i32
    %c0_i32_0 = arith.constant 0 : i32
    %c0_i32_1 = arith.constant 0 : i32
    return %arg0, %c0_i32, %c0_i32_0 : i32, i32, i32
  }
}

</mosaic_0001>

<llo_original>
// kernel: conn4_pallas.1
$region0: #{conn4_pallas.1}
  #allocation0 [shape = 'u32[]', space=smem, size = 0x4, offset = 0x4, fixed_abs, tag = 'smem constant byte address 0x4 - core index']
  #allocation1 [shape = 'u32[144,128]{1,0:T(1,128)}', space=vmem, size = 0x12000, scoped, tag = 'internal scratch']
  #allocation2 [shape = 'f32[8,640]{1,0:T(8,128)}', space=vmem, size = 0x5000, scoped, tag = 'scratch operand']
  #allocation3 [shape = 'f32[80,384]{1,0:T(8,128)}', space=vmem, size = 0x1e000, scoped, tag = 'scratch operand']
  %s0 = inlined_call_operand.vmem [shape: f32[2,8,384], index: 0, kind: input, shape index: {}]
  %s1 = inlined_call_operand.vmem [shape: f32[8,8,80], index: 1, kind: input, shape index: {}]
  %s2 = inlined_call_operand.vmem [shape: f32[1,384], index: 2, kind: input, shape index: {}]
  %s3 = inlined_call_operand.vmem [shape: f32[2,8,384], index: 3, kind: output, shape index: {}]
  %s4 = sld [smem:[#allocation0]]
  $region45: #{conn4_pallas.1} parent=0
    _
  %s6 = ssub.s32 1, %s4
  %s7 = scalar_select 0, %s6, %s4
  loop: start=0, step=1, limit=4
  $region2: #{conn4_pallas.1} parent=0 // loop_pre_header
    _
  $region3: #{conn4_pallas.1} parent=0 // loop_header
    %s9 = sphi 0, %s13
    %p10 = scmp.ge.s32.totalorder %s9, 4
    %s19 = sphi 0, %s21
    %s22 = sphi 0, %s19
    %s23 = sphi 0, %s22
    %s39 = sphi 0, %s23
    %s43 = sphi 0, %s43
    %s45 = sphi 0, %s43
    %s46 = sphi 0, %s45
    %s60 = sphi 0, %s46
    %s64 = sphi 0, %s64
    %s66 = sphi 0, %s64
    %s67 = sphi 0, %s66
    %s81 = sphi 0, %s67
    %s87 = sphi 0, %s89
    %s90 = sphi 0, %s87
    %s91 = sphi 0, %s90
    %s107 = sphi 0, %s91
  $region4: #{conn4_pallas.1} parent=0 // loop_header_branch
    %12 = sbr.rel (%p10) target = $region8
  $region5: #{conn4_pallas.1} parent=0 // loop_body
    %s14 = ssub.s32 %s9, 1
    %s15 = ssub.s32 %s9, 2
    %s16 = sadd.s32 %s9, 1
    %s17 = ssub.s32 %s9, %s16
    %p18 = scmp.eq.s32.totalorder %s17, 0
    %s20 = sadd.s32 %s19, 1
    %s21 = scalar_select %p18, %s19, %s20
    %p24 = pneg %p18
    %p25 = scmp.eq.s32.totalorder %s9, 1
    %p26 = por %p24, %p25
    %p27 = scmp.ne.s32.totalorder %s19, %s22
    %p28 = scmp.eq.s32.totalorder %s9, 0
    %p29 = por %p27, %p28
    %p30 = scmp.ne.s32.totalorder %s19, %s22
    %p31 = scmp.eq.s32.totalorder %s14, 1
    %p32 = por %p30, %p31
    %p33 = scmp.ne.s32.totalorder %s22, %s23
    %p34 = scmp.eq.s32.totalorder %s14, 0
    %p35 = por %p33, %p34
    %p36 = scmp.ne.s32.totalorder %s22, %s23
    %p37 = scmp.eq.s32.totalorder %s15, 1
    %p38 = por %p36, %p37
    %p40 = scmp.ne.s32.totalorder %s23, %s39
    %p41 = scmp.eq.s32.totalorder %s15, 0
    %p42 = por %p40, %p41
    %s44 = sadd.s32 %s43, 1
    %p47 = scmp.eq.s32.totalorder %s9, 1
    %p48 = scmp.ne.s32.totalorder %s43, %s45
    %p49 = scmp.eq.s32.totalorder %s9, 0
    %p50 = por %p48, %p49
    %p51 = scmp.ne.s32.totalorder %s43, %s45
    %p52 = scmp.eq.s32.totalorder %s14, 1
    %p53 = por %p51, %p52
    %p54 = scmp.ne.s32.totalorder %s45, %s46
    %p55 = scmp.eq.s32.totalorder %s14, 0
    %p56 = por %p54, %p55
    %p57 = scmp.ne.s32.totalorder %s45, %s46
    %p58 = scmp.eq.s32.totalorder %s15, 1
    %p59 = por %p57, %p58
    %p61 = scmp.ne.s32.totalorder %s46, %s60
    %p62 = scmp.eq.s32.totalorder %s15, 0
    %p63 = por %p61, %p62
    %s65 = sadd.s32 %s64, 1
    %p68 = scmp.eq.s32.totalorder %s9, 1
    %p69 = scmp.ne.s32.totalorder %s64, %s66
    %p70 = scmp.eq.s32.totalorder %s9, 0
    %p71 = por %p69, %p70
    %p72 = scmp.ne.s32.totalorder %s64, %s66
    %p73 = scmp.eq.s32.totalorder %s14, 1
    %p74 = por %p72, %p73
    %p75 = scmp.ne.s32.totalorder %s66, %s67
    %p76 = scmp.eq.s32.totalorder %s14, 0
    %p77 = por %p75, %p76
    %p78 = scmp.ne.s32.totalorder %s66, %s67
    %p79 = scmp.eq.s32.totalorder %s15, 1
    %p80 = por %p78, %p79
    %p82 = scmp.ne.s32.totalorder %s67, %s81
    %p83 = scmp.eq.s32.totalorder %s15, 0
    %p84 = por %p82, %p83
    %s85 = ssub.s32 %s9, %s16
    %p86 = scmp.eq.s32.totalorder %s85, 0
    %s88 = sadd.s32 %s87, 1
    %s89 = scalar_select %p86, %s87, %s88
    %p92 = pneg %p86
    %p93 = scmp.eq.s32.totalorder %s9, 1
    %p94 = por %p92, %p93
    %p95 = scmp.ne.s32.totalorder %s87, %s90
    %p96 = scmp.eq.s32.totalorder %s9, 0
    %p97 = por %p95, %p96
    %p98 = scmp.ne.s32.totalorder %s87, %s90
    %p99 = scmp.eq.s32.totalorder %s14, 1
    %p100 = por %p98, %p99
    %p101 = scmp.ne.s32.totalorder %s90, %s91
    %p102 = scmp.eq.s32.totalorder %s14, 0
    %p103 = por %p101, %p102
    %p104 = scmp.ne.s32.totalorder %s90, %s91
    %p105 = scmp.eq.s32.totalorder %s15, 1
    %p106 = por %p104, %p105
    %p108 = scmp.ne.s32.totalorder %s91, %s107
    %p109 = scmp.eq.s32.totalorder %s15, 0
    %p110 = por %p108, %p109
    %p111 = scmp.le.s32.totalorder 1, %s9
    %p112 = scmp.lt.s32.totalorder %s9, 3
    %p113 = pnand %p111, %p112
    %p114 = pneg %p113
    // Predicated region
    $region9: #{conn4_pallas.1} parent=5 // pred_check
      _
    $region10: #{conn4_pallas.1} parent=5 // pred_check_branch
      %116 = sbr.rel (%p113) target = $region12
    $region11: #{conn4_pallas.1} parent=5 // pred_region
      %s117 = ssub.s32 %s9, 1
      // Predicated region
      $region13: #{conn4_pallas.1} parent=11 // pred_check
        %p118 = pneg %p56
      $region14: #{conn4_pallas.1} parent=11 // pred_check_branch
        %120 = sbr.rel (%p118) target = $region16
      $region15: #{conn4_pallas.1} parent=11 // pred_region
        _
      $region16: #{conn4_pallas.1} parent=11 // pred_fallthru
        _
      // Predicated region
      $region17: #{conn4_pallas.1} parent=11 // pred_check
        %p121 = pneg %p77
      $region18: #{conn4_pallas.1} parent=11 // pred_check_branch
        %123 = sbr.rel (%p121) target = $region20
      $region19: #{conn4_pallas.1} parent=11 // pred_region
        _
      $region20: #{conn4_pallas.1} parent=11 // pred_fallthru
        _
    $region12: #{conn4_pallas.1} parent=5 // pred_fallthru
      _
    %p124 = scmp.lt.s32.totalorder %s9, 2
    // Predicated region
    $region21: #{conn4_pallas.1} parent=5 // pred_check
      %p125 = pneg %p124
    $region22: #{conn4_pallas.1} parent=5 // pred_check_branch
      %127 = sbr.rel (%p125) target = $region24
    $region23: #{conn4_pallas.1} parent=5 // pred_region
      // Predicated region
      $region25: #{conn4_pallas.1} parent=23 // pred_check
        %p128 = pneg %p29
      $region26: #{conn4_pallas.1} parent=23 // pred_check_branch
        %130 = sbr.rel (%p128) target = $region28
      $region27: #{conn4_pallas.1} parent=23 // pred_region
        %p131 = scmp.lt.s32.totalorder %s9, 1
        %s132 = scalar_select %p131, %s9, 1
        %s133 = smul.addr %s132, 3
        %s134 = smul.addr %s133, 8
        %s135 = scalar_lea.vmem %s0, %s134
      $region28: #{conn4_pallas.1} parent=23 // pred_fallthru
        _
    $region24: #{conn4_pallas.1} parent=5 // pred_fallthru
      _
    %p136 = scmp.le.s32.totalorder 1, %s9
    %p137 = scmp.lt.s32.totalorder %s9, 3
    %p138 = pnand %p136, %p137
    %p139 = pneg %p138
    // Predicated region
    $region29: #{conn4_pallas.1} parent=5 // pred_check
      _
    $region30: #{conn4_pallas.1} parent=5 // pred_check_branch
      %141 = sbr.rel (%p138) target = $region32
    $region31: #{conn4_pallas.1} parent=5 // pred_region
      %s142 = ssub.s32 %s9, 1
      %p143 = scmp.lt.s32.totalorder %s14, 1
      %s144 = scalar_select %p143, %s14, 1
      %s145 = smul.addr %s144, 3
      %s146 = smul.addr %s145, 8
      %s147 = scalar_lea.vmem %s0, %s146
      %p148 = pneg %p35
      %p149 = pneg %p32
      %p150 = pneg %p56
      %p151 = pneg %p53
      %p152 = pneg %p77
      %p153 = pneg %p74
      %p154 = pneg %p103
      %p155 = pneg %p100
      %p156 = scmp.lt.s32.totalorder %s14, 1
      %s157 = scalar_select %p156, %s14, 1
      %s158 = smul.addr %s157, 3
      %s159 = smul.addr %s158, 8
      %s160 = scalar_lea.vmem %s3, %s159
      %p161 = scmp.lt.s32.totalorder %s14, 1
      %s162 = scalar_select %p161, %s14, 1
      %s163 = smul.addr %s162, 3
      %s164 = smul.addr %s163, 8
      %s165 = scalar_lea.vmem %s0, %s164
      %p166 = scmp.lt.s32.totalorder %s14, 1
      %s167 = scalar_select %p166, %s14, 1
      %s168 = smul.addr %s167, 3
      %s169 = smul.addr %s168, 8
      %s170 = scalar_lea.vmem %s3, %s169
      %171 = vst [vmem:[#allocation2] sm:$0xff] 0.0
      %172 = vst [vmem:[#allocation2 + $0x8] sm:$0xff] 0.0
      %173 = vst [vmem:[#allocation2 + $0x10] sm:$0xff] 0.0
      %174 = vst [vmem:[#allocation2 + $0x18] sm:$0xff] 0.0
      %175 = vst [vmem:[#allocation2 + $0x20] sm:$0xff] 0.0
      %v176 = vld [vmem:[%s165] sm:$0xff]
      %v177 = vld [vmem:[%s165 + $0x8] sm:$0xff]
      %v178 = vld [vmem:[%s165 + $0x10] sm:$0xff]
      %179 = vst [vmem:[#allocation2 + $0x8] sm:$0xff] %v176
      %180 = vst [vmem:[#allocation2 + $0x10] sm:$0xff] %v177
      %181 = vst [vmem:[#allocation2 + $0x18] sm:$0xff] %v178
      %v182 = vlaneseq
      %v183 = vshrl.u32 %v182, 7
      %vm184 = vcmp.eq.s32.totalorder %v183, 0
      %v185 = vsel %vm184, 1, 0
      %v186 = vcvt.s32.f32 %v185
      %187 = vst [vmem:[#allocation3 + $0xd8] sm:$0xff] %v186
      %188 = vst [vmem:[#allocation3 + $0xe0] sm:$0xff] %v186
      %189 = vst [vmem:[#allocation3 + $0xe8] sm:$0xff] %v186
      %v190 = vld [vmem:[%s2] sm:$0x7]
      %v191 = vld [vmem:[#allocation2] sm:$0xff]
      %v192 = vld [vmem:[#allocation2 + $0x8] sm:$0xff]
      %v193 = vld [vmem:[#allocation2 + $0x10] sm:$0xff]
      %v194 = vld [vmem:[#allocation2 + $0x18] sm:$0xff]
      %199 = vrot.lane.b32.xlu0 %v191, 19
      %v200 = vpop.permute.xlu0 %199
      %201 = vrot.lane.b32.xlu0 %v192, 19
      %v202 = vpop.permute.xlu0 %201
      %203 = vrot.lane.b32.xlu0 %v193, 19
      %v204 = vpop.permute.xlu0 %203
      %205 = vrot.lane.b32.xlu0 %v194, 19
      %v206 = vpop.permute.xlu0 %205
      %vm207 = vcmask 154624
      %v208 = vsel %vm207, %v200, %v202
      %v209 = vsel %vm207, %v202, %v204
      %v210 = vsel %vm207, %v204, %v206
      %214 = vst [vmem:[#allocation3] sm:$0xff] %v208
      %215 = vst [vmem:[#allocation3 + $0x8] sm:$0xff] %v209
      %216 = vst [vmem:[#allocation3 + $0x10] sm:$0xff] %v210
      %v217 = vld [vmem:[#allocation2] sm:$0xff]
      %v218 = vld [vmem:[#allocation2 + $0x8] sm:$0xff]
      %v219 = vld [vmem:[#allocation2 + $0x10] sm:$0xff]
      %v220 = vld [vmem:[#allocation2 + $0x18] sm:$0xff]
      %225 = vrot.lane.b32.xlu0 %v217, 18
      %v226 = vpop.permute.xlu0 %225
      %227 = vrot.lane.b32.xlu0 %v218, 18
      %v228 = vpop.permute.xlu0 %227
      %229 = vrot.lane.b32.xlu0 %v219, 18
      %v230 = vpop.permute.xlu0 %229
      %231 = vrot.lane.b32.xlu0 %v220, 18
      %v232 = vpop.permute.xlu0 %231
      %vm233 = vcmask 146432
      %v234 = vsel %vm233, %v226, %v228
      %v235 = vsel %vm233, %v228, %v230
      %v236 = vsel %vm233, %v230, %v232
      %240 = vst [vmem:[#allocation3 + $0x18] sm:$0xff] %v234
      %241 = vst [vmem:[#allocation3 + $0x20] sm:$0xff] %v235
      %242 = vst [vmem:[#allocation3 + $0x28] sm:$0xff] %v236
      %v243 = vld [vmem:[#allocation2] sm:$0xff]
      %v244 = vld [vmem:[#allocation2 + $0x8] sm:$0xff]
      %v245 = vld [vmem:[#allocation2 + $0x10] sm:$0xff]
      %v246 = vld [vmem:[#allocation2 + $0x18] sm:$0xff]
      %251 = vrot.lane.b32.xlu0 %v243, 17
      %v252 = vpop.permute.xlu0 %251
      %253 = vrot.lane.b32.xlu0 %v244, 17
      %v254 = vpop.permute.xlu0 %253
      %255 = vrot.lane.b32.xlu0 %v245, 17
      %v256 = vpop.permute.xlu0 %255
      %257 = vrot.lane.b32.xlu0 %v246, 17
      %v258 = vpop.permute.xlu0 %257
      %vm259 = vcmask 138240
      %v260 = vsel %vm259, %v252, %v254
      %v261 = vsel %vm259, %v254, %v256
      %v262 = vsel %vm259, %v256, %v258
      %266 = vst [vmem:[#allocation3 + $0x30] sm:$0xff] %v260
      %267 = vst [vmem:[#allocation3 + $0x38] sm:$0xff] %v261
      %268 = vst [vmem:[#allocation3 + $0x40] sm:$0xff] %v262
      %v269 = vld [vmem:[#allocation2] sm:$0xff]
      %v270 = vld [vmem:[#allocation2 + $0x8] sm:$0xff]
      %v271 = vld [vmem:[#allocation2 + $0x10] sm:$0xff]
      %v272 = vld [vmem:[#allocation2 + $0x18] sm:$0xff]
      %277 = vrot.lane.b32.xlu0 %v269, 1
      %v278 = vpop.permute.xlu0 %277
      %279 = vrot.lane.b32.xlu0 %v270, 1
      %v280 = vpop.permute.xlu0 %279
      %281 = vrot.lane.b32.xlu0 %v271, 1
      %v282 = vpop.permute.xlu0 %281
      %283 = vrot.lane.b32.xlu0 %v272, 1
      %v284 = vpop.permute.xlu0 %283
      %vm285 = vcmask 7168
      %v286 = vsel %vm285, %v278, %v280
      %v287 = vsel %vm285, %v280, %v282
      %v288 = vsel %vm285, %v282, %v284
      %292 = vst [vmem:[#allocation3 + $0x48] sm:$0xff] %v286
      %293 = vst [vmem:[#allocation3 + $0x50] sm:$0xff] %v287
      %294 = vst [vmem:[#allocation3 + $0x58] sm:$0xff] %v288
      %v295 = vld [vmem:[#allocation2 + $0x8] sm:$0xff]
      %v296 = vld [vmem:[#allocation2 + $0x10] sm:$0xff]
      %v297 = vld [vmem:[#allocation2 + $0x18] sm:$0xff]
      %298 = vst [vmem:[#allocation3 + $0x60] sm:$0xff] %v295
      %299 = vst [vmem:[#allocation3 + $0x68] sm:$0xff] %v296
      %300 = vst [vmem:[#allocation3 + $0x70] sm:$0xff] %v297
      %v301 = vld [vmem:[#allocation2 + $0x8] sm:$0xff]
      %v302 = vld [vmem:[#allocation2 + $0x10] sm:$0xff]
      %v303 = vld [vmem:[#allocation2 + $0x18] sm:$0xff]
      %v304 = vld [vmem:[#allocation2 + $0x20] sm:$0xff]
      %309 = vrot.lane.b32.xlu0 %v301, 127
      %v310 = vpop.permute.xlu0 %309
      %311 = vrot.lane.b32.xlu0 %v302, 127
      %v312 = vpop.permute.xlu0 %311
      %313 = vrot.lane.b32.xlu0 %v303, 127
      %v314 = vpop.permute.xlu0 %313
      %315 = vrot.lane.b32.xlu0 %v304, 127
      %v316 = vpop.permute.xlu0 %315
      %vm317 = vcmask 1039360
      %v318 = vsel %vm317, %v310, %v312
      %v319 = vsel %vm317, %v312, %v314
      %v320 = vsel %vm317, %v314, %v316
      %324 = vst [vmem:[#allocation3 + $0x78] sm:$0xff] %v318
      %325 = vst [vmem:[#allocation3 + $0x80] sm:$0xff] %v319
      %326 = vst [vmem:[#allocation3 + $0x88] sm:$0xff] %v320
      %v327 = vld [vmem:[#allocation2 + $0x8] sm:$0xff]
      %v328 = vld [vmem:[#allocation2 + $0x10] sm:$0xff]
      %v329 = vld [vmem:[#allocation2 + $0x18] sm:$0xff]
      %v330 = vld [vmem:[#allocation2 + $0x20] sm:$0xff]
      %335 = vrot.lane.b32.xlu0 %v327, 111
      %v336 = vpop.permute.xlu0 %335
      %337 = vrot.lane.b32.xlu0 %v328, 111
      %v338 = vpop.permute.xlu0 %337
      %339 = vrot.lane.b32.xlu0 %v329, 111
      %v340 = vpop.permute.xlu0 %339
      %341 = vrot.lane.b32.xlu0 %v330, 111
      %v342 = vpop.permute.xlu0 %341
      %vm343 = vcmask 908288
      %v344 = vsel %vm343, %v336, %v338
      %v345 = vsel %vm343, %v338, %v340
      %v346 = vsel %vm343, %v340, %v342
      %350 = vst [vmem:[#allocation3 + $0x90] sm:$0xff] %v344
      %351 = vst [vmem:[#allocation3 + $0x98] sm:$0xff] %v345
      %352 = vst [vmem:[#allocation3 + $0xa0] sm:$0xff] %v346
      %v353 = vld [vmem:[#allocation2 + $0x8] sm:$0xff]
      %v354 = vld [vmem:[#allocation2 + $0x10] sm:$0xff]
      %v355 = vld [vmem:[#allocation2 + $0x18] sm:$0xff]
      %v356 = vld [vmem:[#allocation2 + $0x20] sm:$0xff]
      %361 = vrot.lane.b32.xlu0 %v353, 110
      %v362 = vpop.permute.xlu0 %361
      %363 = vrot.lane.b32.xlu0 %v354, 110
      %v364 = vpop.permute.xlu0 %363
      %365 = vrot.lane.b32.xlu0 %v355, 110
      %v366 = vpop.permute.xlu0 %365
      %367 = vrot.lane.b32.xlu0 %v356, 110
      %v368 = vpop.permute.xlu0 %367
      %vm369 = vcmask 900096
      %v370 = vsel %vm369, %v362, %v364
      %v371 = vsel %vm369, %v364, %v366
      %v372 = vsel %vm369, %v366, %v368
      %376 = vst [vmem:[#allocation3 + $0xa8] sm:$0xff] %v370
      %377 = vst [vmem:[#allocation3 + $0xb0] sm:$0xff] %v371
      %378 = vst [vmem:[#allocation3 + $0xb8] sm:$0xff] %v372
      %v379 = vld [vmem:[#allocation2 + $0x8] sm:$0xff]
      %v380 = vld [vmem:[#allocation2 + $0x10] sm:$0xff]
      %v381 = vld [vmem:[#allocation2 + $0x18] sm:$0xff]
      %v382 = vld [vmem:[#allocation2 + $0x20] sm:$0xff]
      %387 = vrot.lane.b32.xlu0 %v379, 109
      %v388 = vpop.permute.xlu0 %387
      %389 = vrot.lane.b32.xlu0 %v380, 109
      %v390 = vpop.permute.xlu0 %389
      %391 = vrot.lane.b32.xlu0 %v381, 109
      %v392 = vpop.permute.xlu0 %391
      %393 = vrot.lane.b32.xlu0 %v382, 109
      %v394 = vpop.permute.xlu0 %393
      %vm395 = vcmask 891904
      %v396 = vsel %vm395, %v388, %v390
      %v397 = vsel %vm395, %v390, %v392
      %v398 = vsel %vm395, %v392, %v394
      %402 = vst [vmem:[#allocation3 + $0xc0] sm:$0xff] %v396
      %403 = vst [vmem:[#allocation3 + $0xc8] sm:$0xff] %v397
      %404 = vst [vmem:[#allocation3 + $0xd0] sm:$0xff] %v398
      %v405 = vld [vmem:[%s1] sm:$0xff]
      %v406 = vld [vmem:[#allocation3] sm:$0xff]
      %v407 = vld [vmem:[#allocation3 + $0x8] sm:$0xff]
      %v408 = vld [vmem:[#allocation3 + $0x10] sm:$0xff]
      %v409 = vld [vmem:[#allocation3 + $0x18] sm:$0xff]
      %v410 = vld [vmem:[#allocation3 + $0x20] sm:$0xff]
      %v411 = vld [vmem:[#allocation3 + $0x28] sm:$0xff]
      %v412 = vld [vmem:[#allocation3 + $0x30] sm:$0xff]
      %v413 = vld [vmem:[#allocation3 + $0x38] sm:$0xff]
      %v414 = vld [vmem:[#allocation3 + $0x40] sm:$0xff]
      %v415 = vld [vmem:[#allocation3 + $0x48] sm:$0xff]
      %v416 = vld [vmem:[#allocation3 + $0x50] sm:$0xff]
      %v417 = vld [vmem:[#allocation3 + $0x58] sm:$0xff]
      %v418 = vld [vmem:[#allocation3 + $0x60] sm:$0xff]
      %v419 = vld [vmem:[#allocation3 + $0x68] sm:$0xff]
      %v420 = vld [vmem:[#allocation3 + $0x70] sm:$0xff]
      %v421 = vld [vmem:[#allocation3 + $0x78] sm:$0xff]
      %v422 = vld [vmem:[#allocation3 + $0x80] sm:$0xff]
      %v423 = vld [vmem:[#allocation3 + $0x88] sm:$0xff]
      %v424 = vld [vmem:[#allocation3 + $0x90] sm:$0xff]
      %v425 = vld [vmem:[#allocation3 + $0x98] sm:$0xff]
      %v426 = vld [vmem:[#allocation3 + $0xa0] sm:$0xff]
      %v427 = vld [vmem:[#allocation3 + $0xa8] sm:$0xff]
      %v428 = vld [vmem:[#allocation3 + $0xb0] sm:$0xff]
      %v429 = vld [vmem:[#allocation3 + $0xb8] sm:$0xff]
      %v430 = vld [vmem:[#allocation3 + $0xc0] sm:$0xff]
      %v431 = vld [vmem:[#allocation3 + $0xc8] sm:$0xff]
      %v432 = vld [vmem:[#allocation3 + $0xd0] sm:$0xff]
      %v433 = vld [vmem:[#allocation3 + $0xd8] sm:$0xff]
      %v434 = vld [vmem:[#allocation3 + $0xe0] sm:$0xff]
      %v435 = vld [vmem:[#allocation3 + $0xe8] sm:$0xff]
      %vm436 = vcmask 654336
      %v438 = vsel %vm436, %v405, 0
      %440 = vmatprep.subr.mxu0 0.0
      %441 = vmatpush1.msra.mxu0 0.0
      %442 = vmatprep.subr.mxu0 0.0
      %443 = vmatpush1.msra.mxu0 0.0
      %444 = vmatprep.subr.mxu0 0.0
      %445 = vmatpush1.msra.mxu0 0.0
      %446 = vmatprep.subr.mxu0 0.0
      %447 = vmatpush1.msra.mxu0 0.0
      %448 = vmatprep.subr.mxu0 0.0
      %449 = vmatpush1.msra.mxu0 0.0
      %450 = vmatprep.subr.mxu0 0.0
      %451 = vmatpush1.msra.mxu0 0.0
      %452 = vmatprep.subr.mxu0 %v434
      %453 = vmatpush1.msra.mxu0 %v433
      %454 = vmatprep.subr.mxu0 %v431
      %455 = vmatpush1.msra.mxu0 %v430
      %456 = vmatprep.subr.mxu0 %v428
      %457 = vmatpush1.msra.mxu0 %v427
      %458 = vmatprep.subr.mxu0 %v425
      %459 = vmatpush1.msra.mxu0 %v424
      %460 = vmatprep.subr.mxu0 %v422
      %461 = vmatpush1.msra.mxu0 %v421
      %462 = vmatprep.subr.mxu0 %v419
      %463 = vmatpush1.msra.mxu0 %v418
      %464 = vmatprep.subr.mxu0 %v416
      %465 = vmatpush1.msra.mxu0 %v415
      %466 = vmatprep.subr.mxu0 %v413
      %467 = vmatpush1.msra.mxu0 %v412
      %468 = vmatprep.subr.mxu0 %v410
      %469 = vmatpush1.msra.mxu0 %v409
      %470 = vmatprep.subr.mxu0 %v407
      %471 = vmatpush1.msra.mxu0 %v406
      %472 = vmatprep.subr.mxu0 0.0
      %473 = vmatpush2.msra.mxu0 0.0
      %474 = vmatprep.subr.mxu0 0.0
      %475 = vmatpush2.msra.mxu0 0.0
      %476 = vmatprep.subr.mxu0 0.0
      %477 = vmatpush2.msra.mxu0 0.0
      %478 = vmatprep.subr.mxu0 0.0
      %479 = vmatpush2.msra.mxu0 0.0
      %480 = vmatprep.subr.mxu0 0.0
      %481 = vmatpush2.msra.mxu0 0.0
      %482 = vmatprep.subr.mxu0 0.0
      %483 = vmatpush2.msra.mxu0 0.0
      %484 = vmatprep.subr.mxu0 0.0
      %485 = vmatpush2.msra.mxu0 0.0
      %486 = vmatprep.subr.mxu0 0.0
      %487 = vmatpush2.msra.mxu0 0.0
      %488 = vmatprep.subr.mxu0 0.0
      %489 = vmatpush2.msra.mxu0 0.0
      %490 = vmatprep.subr.mxu0 0.0
      %491 = vmatpush2.msra.mxu0 0.0
      %492 = vmatprep.subr.mxu0 0.0
      %493 = vmatpush2.msra.mxu0 0.0
      %494 = vmatprep.subr.mxu0 0.0
      %495 = vmatpush2.msra.mxu0 0.0
      %496 = vmatprep.subr.mxu0 0.0
      %497 = vmatpush2.msra.mxu0 0.0
      %498 = vmatprep.subr.mxu0 0.0
      %499 = vmatpush2.msra.mxu0 0.0
      %500 = vmatprep.subr.mxu0 0.0
      %501 = vmatpush2.msra.mxu0 0.0
      %502 = vmatprep.subr.mxu0 0.0
      %503 = vmatpush2.msra.mxu0 0.0
      %504 = vmatprep.mubr.f32.mxu0 0.0
      %505 = vmatmul.mubr.f32.gmra.mxu0 %v438
      %v506 = vpop.f32.mrf.mxu0
      %v507 = vadd.f32 0.0, %v506
      %v508 = vpop.f32.mrf.mxu0
      %v509 = vadd.f32 0.0, %v508
      %510 = vdwg.mxu0
      %511 = vmatprep.subr.mxu0 0.0
      %512 = vmatpush1.msra.mxu0 0.0
      %513 = vmatprep.subr.mxu0 0.0
      %514 = vmatpush1.msra.mxu0 0.0
      %515 = vmatprep.subr.mxu0 0.0
      %516 = vmatpush1.msra.mxu0 0.0
      %517 = vmatprep.subr.mxu0 0.0
      %518 = vmatpush1.msra.mxu0 0.0
      %519 = vmatprep.subr.mxu0 0.0
      %520 = vmatpush1.msra.mxu0 0.0
      %521 = vmatprep.subr.mxu0 0.0
      %522 = vmatpush1.msra.mxu0 0.0
      %523 = vmatprep.subr.mxu0 0.0
      %524 = vmatpush1.msra.mxu0 %v435
      %525 = vmatprep.subr.mxu0 0.0
      %526 = vmatpush1.msra.mxu0 %v432
      %527 = vmatprep.subr.mxu0 0.0
      %528 = vmatpush1.msra.mxu0 %v429
      %529 = vmatprep.subr.mxu0 0.0
      %530 = vmatpush1.msra.mxu0 %v426
      %531 = vmatprep.subr.mxu0 0.0
      %532 = vmatpush1.msra.mxu0 %v423
      %533 = vmatprep.subr.mxu0 0.0
      %534 = vmatpush1.msra.mxu0 %v420
      %535 = vmatprep.subr.mxu0 0.0
      %536 = vmatpush1.msra.mxu0 %v417
      %537 = vmatprep.subr.mxu0 0.0
      %538 = vmatpush1.msra.mxu0 %v414
      %539 = vmatprep.subr.mxu0 0.0
      %540 = vmatpush1.msra.mxu0 %v411
      %541 = vmatprep.subr.mxu0 0.0
      %542 = vmatpush1.msra.mxu0 %v408
      %543 = vmatprep.subr.mxu0 0.0
      %544 = vmatpush2.msra.mxu0 0.0
      %545 = vmatprep.subr.mxu0 0.0
      %546 = vmatpush2.msra.mxu0 0.0
      %547 = vmatprep.subr.mxu0 0.0
      %548 = vmatpush2.msra.mxu0 0.0
      %549 = vmatprep.subr.mxu0 0.0
      %550 = vmatpush2.msra.mxu0 0.0
      %551 = vmatprep.subr.mxu0 0.0
      %552 = vmatpush2.msra.mxu0 0.0
      %553 = vmatprep.subr.mxu0 0.0
      %554 = vmatpush2.msra.mxu0 0.0
      %555 = vmatprep.subr.mxu0 0.0
      %556 = vmatpush2.msra.mxu0 0.0
      %557 = vmatprep.subr.mxu0 0.0
      %558 = vmatpush2.msra.mxu0 0.0
      %559 = vmatprep.subr.mxu0 0.0
      %560 = vmatpush2.msra.mxu0 0.0
      %561 = vmatprep.subr.mxu0 0.0
      %562 = vmatpush2.msra.mxu0 0.0
      %563 = vmatprep.subr.mxu0 0.0
      %564 = vmatpush2.msra.mxu0 0.0
      %565 = vmatprep.subr.mxu0 0.0
      %566 = vmatpush2.msra.mxu0 0.0
      %567 = vmatprep.subr.mxu0 0.0
      %568 = vmatpush2.msra.mxu0 0.0
      %569 = vmatprep.subr.mxu0 0.0
      %570 = vmatpush2.msra.mxu0 0.0
      %571 = vmatprep.subr.mxu0 0.0
      %572 = vmatpush2.msra.mxu0 0.0
      %573 = vmatprep.subr.mxu0 0.0
      %574 = vmatpush2.msra.mxu0 0.0
      %575 = vmatprep.mubr.f32.mxu0 0.0
      %576 = vmatmul.mubr.f32.gmra.mxu0 %v438
      %v577 = vpop.f32.mrf.mxu0
      %v578 = vadd.f32 0.0, %v577
      %v579 = vpop.f32.mrf.mxu0
      %580 = vdwg.mxu0
      %v582 = vlaneseq
      %v583 = vshrl.u32 %v582, 7
      %v584 = vsub.s32 0, %v583
      %v585 = vrot.slane %v190, %v584
      %v586 = vlaneseq
      %v587 = vshrl.u32 %v586, 7
      %v588 = vsub.s32 1, %v587
      %v589 = vrot.slane %v190, %v588
      %v590 = vlaneseq
      %v591 = vshrl.u32 %v590, 7
      %v592 = vsub.s32 2, %v591
      %v593 = vrot.slane %v190, %v592
      %v597 = vmul.f32 %v507, %v585
      %v598 = vmul.f32 %v509, %v589
      %v599 = vmul.f32 %v578, %v593
      %600 = vst [vmem:[#allocation2 + $0x8] sm:$0xff] %v597
      %601 = vst [vmem:[#allocation2 + $0x10] sm:$0xff] %v598
      %602 = vst [vmem:[#allocation2 + $0x18] sm:$0xff] %v599
      %v603 = vld [vmem:[#allocation2] sm:$0xff]
      %v604 = vld [vmem:[#allocation2 + $0x8] sm:$0xff]
      %v605 = vld [vmem:[#allocation2 + $0x10] sm:$0xff]
      %v606 = vld [vmem:[#allocation2 + $0x18] sm:$0xff]
      %611 = vrot.lane.b32.xlu0 %v603, 19
      %v612 = vpop.permute.xlu0 %611
      %613 = vrot.lane.b32.xlu0 %v604, 19
      %v614 = vpop.permute.xlu0 %613
      %615 = vrot.lane.b32.xlu0 %v605, 19
      %v616 = vpop.permute.xlu0 %615
      %617 = vrot.lane.b32.xlu0 %v606, 19
      %v618 = vpop.permute.xlu0 %617
      %v619 = vsel %vm207, %v612, %v614
      %v620 = vsel %vm207, %v614, %v616
      %v621 = vsel %vm207, %v616, %v618
      %625 = vst [vmem:[#allocation3] sm:$0xff] %v619
      %626 = vst [vmem:[#allocation3 + $0x8] sm:$0xff] %v620
      %627 = vst [vmem:[#allocation3 + $0x10] sm:$0xff] %v621
      %v628 = vld [vmem:[#allocation2] sm:$0xff]
      %v629 = vld [vmem:[#allocation2 + $0x8] sm:$0xff]
      %v630 = vld [vmem:[#allocation2 + $0x10] sm:$0xff]
      %v631 = vld [vmem:[#allocation2 + $0x18] sm:$0xff]
      %636 = vrot.lane.b32.xlu0 %v628, 18
      %v637 = vpop.permute.xlu0 %636
      %638 = vrot.lane.b32.xlu0 %v629, 18
      %v639 = vpop.permute.xlu0 %638
      %640 = vrot.lane.b32.xlu0 %v630, 18
      %v641 = vpop.permute.xlu0 %640
      %642 = vrot.lane.b32.xlu0 %v631, 18
      %v643 = vpop.permute.xlu0 %642
      %v644 = vsel %vm233, %v637, %v639
      %v645 = vsel %vm233, %v639, %v641
      %v646 = vsel %vm233, %v641, %v643
      %650 = vst [vmem:[#allocation3 + $0x18] sm:$0xff] %v644
      %651 = vst [vmem:[#allocation3 + $0x20] sm:$0xff] %v645
      %652 = vst [vmem:[#allocation3 + $0x28] sm:$0xff] %v646
      %v653 = vld [vmem:[#allocation2] sm:$0xff]
      %v654 = vld [vmem:[#allocation2 + $0x8] sm:$0xff]
      %v655 = vld [vmem:[#allocation2 + $0x10] sm:$0xff]
      %v656 = vld [vmem:[#allocation2 + $0x18] sm:$0xff]
      %661 = vrot.lane.b32.xlu0 %v653, 17
      %v662 = vpop.permute.xlu0 %661
      %663 = vrot.lane.b32.xlu0 %v654, 17
      %v664 = vpop.permute.xlu0 %663
      %665 = vrot.lane.b32.xlu0 %v655, 17
      %v666 = vpop.permute.xlu0 %665
      %667 = vrot.lane.b32.xlu0 %v656, 17
      %v668 = vpop.permute.xlu0 %667
      %v669 = vsel %vm259, %v662, %v664
      %v670 = vsel %vm259, %v664, %v666
      %v671 = vsel %vm259, %v666, %v668
      %675 = vst [vmem:[#allocation3 + $0x30] sm:$0xff] %v669
      %676 = vst [vmem:[#allocation3 + $0x38] sm:$0xff] %v670
      %677 = vst [vmem:[#allocation3 + $0x40] sm:$0xff] %v671
      %v678 = vld [vmem:[#allocation2] sm:$0xff]
      %v679 = vld [vmem:[#allocation2 + $0x8] sm:$0xff]
      %v680 = vld [vmem:[#allocation2 + $0x10] sm:$0xff]
      %v681 = vld [vmem:[#allocation2 + $0x18] sm:$0xff]
      %686 = vrot.lane.b32.xlu0 %v678, 1
      %v687 = vpop.permute.xlu0 %686
      %688 = vrot.lane.b32.xlu0 %v679, 1
      %v689 = vpop.permute.xlu0 %688
      %690 = vrot.lane.b32.xlu0 %v680, 1
      %v691 = vpop.permute.xlu0 %690
      %692 = vrot.lane.b32.xlu0 %v681, 1
      %v693 = vpop.permute.xlu0 %692
      %v694 = vsel %vm285, %v687, %v689
      %v695 = vsel %vm285, %v689, %v691
      %v696 = vsel %vm285, %v691, %v693
      %700 = vst [vmem:[#allocation3 + $0x48] sm:$0xff] %v694
      %701 = vst [vmem:[#allocation3 + $0x50] sm:$0xff] %v695
      %702 = vst [vmem:[#allocation3 + $0x58] sm:$0xff] %v696
      %v703 = vld [vmem:[#allocation2 + $0x8] sm:$0xff]
      %v704 = vld [vmem:[#allocation2 + $0x10] sm:$0xff]
      %v705 = vld [vmem:[#allocation2 + $0x18] sm:$0xff]
      %706 = vst [vmem:[#allocation3 + $0x60] sm:$0xff] %v703
      %707 = vst [vmem:[#allocation3 + $0x68] sm:$0xff] %v704
      %708 = vst [vmem:[#allocation3 + $0x70] sm:$0xff] %v705
      %v709 = vld [vmem:[#allocation2 + $0x8] sm:$0xff]
      %v710 = vld [vmem:[#allocation2 + $0x10] sm:$0xff]
      %v711 = vld [vmem:[#allocation2 + $0x18] sm:$0xff]
      %v712 = vld [vmem:[#allocation2 + $0x20] sm:$0xff]
      %717 = vrot.lane.b32.xlu0 %v709, 127
      %v718 = vpop.permute.xlu0 %717
      %719 = vrot.lane.b32.xlu0 %v710, 127
      %v720 = vpop.permute.xlu0 %719
      %721 = vrot.lane.b32.xlu0 %v711, 127
      %v722 = vpop.permute.xlu0 %721
      %723 = vrot.lane.b32.xlu0 %v712, 127
      %v724 = vpop.permute.xlu0 %723
      %v725 = vsel %vm317, %v718, %v720
      %v726 = vsel %vm317, %v720, %v722
      %v727 = vsel %vm317, %v722, %v724
      %731 = vst [vmem:[#allocation3 + $0x78] sm:$0xff] %v725
      %732 = vst [vmem:[#allocation3 + $0x80] sm:$0xff] %v726
      %733 = vst [vmem:[#allocation3 + $0x88] sm:$0xff] %v727
      %v734 = vld [vmem:[#allocation2 + $0x8] sm:$0xff]
      %v735 = vld [vmem:[#allocation2 + $0x10] sm:$0xff]
      %v736 = vld [vmem:[#allocation2 + $0x18] sm:$0xff]
      %v737 = vld [vmem:[#allocation2 + $0x20] sm:$0xff]
      %742 = vrot.lane.b32.xlu0 %v734, 111
      %v743 = vpop.permute.xlu0 %742
      %744 = vrot.lane.b32.xlu0 %v735, 111
      %v745 = vpop.permute.xlu0 %744
      %746 = vrot.lane.b32.xlu0 %v736, 111
      %v747 = vpop.permute.xlu0 %746
      %748 = vrot.lane.b32.xlu0 %v737, 111
      %v749 = vpop.permute.xlu0 %748
      %v750 = vsel %vm343, %v743, %v745
      %v751 = vsel %vm343, %v745, %v747
      %v752 = vsel %vm343, %v747, %v749
      %756 = vst [vmem:[#allocation3 + $0x90] sm:$0xff] %v750
      %757 = vst [vmem:[#allocation3 + $0x98] sm:$0xff] %v751
      %758 = vst [vmem:[#allocation3 + $0xa0] sm:$0xff] %v752
      %v759 = vld [vmem:[#allocation2 + $0x8] sm:$0xff]
      %v760 = vld [vmem:[#allocation2 + $0x10] sm:$0xff]
      %v761 = vld [vmem:[#allocation2 + $0x18] sm:$0xff]
      %v762 = vld [vmem:[#allocation2 + $0x20] sm:$0xff]
      %767 = vrot.lane.b32.xlu0 %v759, 110
      %v768 = vpop.permute.xlu0 %767
      %769 = vrot.lane.b32.xlu0 %v760, 110
      %v770 = vpop.permute.xlu0 %769
      %771 = vrot.lane.b32.xlu0 %v761, 110
      %v772 = vpop.permute.xlu0 %771
      %773 = vrot.lane.b32.xlu0 %v762, 110
      %v774 = vpop.permute.xlu0 %773
      %v775 = vsel %vm369, %v768, %v770
      %v776 = vsel %vm369, %v770, %v772
      %v777 = vsel %vm369, %v772, %v774
      %781 = vst [vmem:[#allocation3 + $0xa8] sm:$0xff] %v775
      %782 = vst [vmem:[#allocation3 + $0xb0] sm:$0xff] %v776
      %783 = vst [vmem:[#allocation3 + $0xb8] sm:$0xff] %v777
      %v784 = vld [vmem:[#allocation2 + $0x8] sm:$0xff]
      %v785 = vld [vmem:[#allocation2 + $0x10] sm:$0xff]
      %v786 = vld [vmem:[#allocation2 + $0x18] sm:$0xff]
      %v787 = vld [vmem:[#allocation2 + $0x20] sm:$0xff]
      %792 = vrot.lane.b32.xlu0 %v784, 109
      %v793 = vpop.permute.xlu0 %792
      %794 = vrot.lane.b32.xlu0 %v785, 109
      %v795 = vpop.permute.xlu0 %794
      %796 = vrot.lane.b32.xlu0 %v786, 109
      %v797 = vpop.permute.xlu0 %796
      %798 = vrot.lane.b32.xlu0 %v787, 109
      %v799 = vpop.permute.xlu0 %798
      %v800 = vsel %vm395, %v793, %v795
      %v801 = vsel %vm395, %v795, %v797
      %v802 = vsel %vm395, %v797, %v799
      %806 = vst [vmem:[#allocation3 + $0xc0] sm:$0xff] %v800
      %807 = vst [vmem:[#allocation3 + $0xc8] sm:$0xff] %v801
      %808 = vst [vmem:[#allocation3 + $0xd0] sm:$0xff] %v802
      %s809 = scalar_lea.vmem %s1, 8
      %v810 = vld [vmem:[%s809] sm:$0xff]
      %v811 = vld [vmem:[#allocation3] sm:$0xff]
      %v812 = vld [vmem:[#allocation3 + $0x8] sm:$0xff]
      %v813 = vld [vmem:[#allocation3 + $0x10] sm:$0xff]
      %v814 = vld [vmem:[#allocation3 + $0x18] sm:$0xff]
      %v815 = vld [vmem:[#allocation3 + $0x20] sm:$0xff]
      %v816 = vld [vmem:[#allocation3 + $0x28] sm:$0xff]
      %v817 = vld [vmem:[#allocation3 + $0x30] sm:$0xff]
      %v818 = vld [vmem:[#allocation3 + $0x38] sm:$0xff]
      %v819 = vld [vmem:[#allocation3 + $0x40] sm:$0xff]
      %v820 = vld [vmem:[#allocation3 + $0x48] sm:$0xff]
      %v821 = vld [vmem:[#allocation3 + $0x50] sm:$0xff]
      %v822 = vld [vmem:[#allocation3 + $0x58] sm:$0xff]
      %v823 = vld [vmem:[#allocation3 + $0x60] sm:$0xff]
      %v824 = vld [vmem:[#allocation3 + $0x68] sm:$0xff]
      %v825 = vld [vmem:[#allocation3 + $0x70] sm:$0xff]
      %v826 = vld [vmem:[#allocation3 + $0x78] sm:$0xff]
      %v827 = vld [vmem:[#allocation3 + $0x80] sm:$0xff]
      %v828 = vld [vmem:[#allocation3 + $0x88] sm:$0xff]
      %v829 = vld [vmem:[#allocation3 + $0x90] sm:$0xff]
      %v830 = vld [vmem:[#allocation3 + $0x98] sm:$0xff]
      %v831 = vld [vmem:[#allocation3 + $0xa0] sm:$0xff]
      %v832 = vld [vmem:[#allocation3 + $0xa8] sm:$0xff]
      %v833 = vld [vmem:[#allocation3 + $0xb0] sm:$0xff]
      %v834 = vld [vmem:[#allocation3 + $0xb8] sm:$0xff]
      %v835 = vld [vmem:[#allocation3 + $0xc0] sm:$0xff]
      %v836 = vld [vmem:[#allocation3 + $0xc8] sm:$0xff]
      %v837 = vld [vmem:[#allocation3 + $0xd0] sm:$0xff]
      %v838 = vld [vmem:[#allocation3 + $0xd8] sm:$0xff]
      %v839 = vld [vmem:[#allocation3 + $0xe0] sm:$0xff]
      %v840 = vld [vmem:[#allocation3 + $0xe8] sm:$0xff]
      %v842 = vsel %vm436, %v810, 0
      %844 = vmatprep.subr.mxu0 0.0
      %845 = vmatpush1.msra.mxu0 0.0
      %846 = vmatprep.subr.mxu0 0.0
      %847 = vmatpush1.msra.mxu0 0.0
      %848 = vmatprep.subr.mxu0 0.0
      %849 = vmatpush1.msra.mxu0 0.0
      %850 = vmatprep.subr.mxu0 0.0
      %851 = vmatpush1.msra.mxu0 0.0
      %852 = vmatprep.subr.mxu0 0.0
      %853 = vmatpush1.msra.mxu0 0.0
      %854 = vmatprep.subr.mxu0 0.0
      %855 = vmatpush1.msra.mxu0 0.0
      %856 = vmatprep.subr.mxu0 %v839
      %857 = vmatpush1.msra.mxu0 %v838
      %858 = vmatprep.subr.mxu0 %v836
      %859 = vmatpush1.msra.mxu0 %v835
      %860 = vmatprep.subr.mxu0 %v833
      %861 = vmatpush1.msra.mxu0 %v832
      %862 = vmatprep.subr.mxu0 %v830
      %863 = vmatpush1.msra.mxu0 %v829
      %864 = vmatprep.subr.mxu0 %v827
      %865 = vmatpush1.msra.mxu0 %v826
      %866 = vmatprep.subr.mxu0 %v824
      %867 = vmatpush1.msra.mxu0 %v823
      %868 = vmatprep.subr.mxu0 %v821
      %869 = vmatpush1.msra.mxu0 %v820
      %870 = vmatprep.subr.mxu0 %v818
      %871 = vmatpush1.msra.mxu0 %v817
      %872 = vmatprep.subr.mxu0 %v815
      %873 = vmatpush1.msra.mxu0 %v814
      %874 = vmatprep.subr.mxu0 %v812
      %875 = vmatpush1.msra.mxu0 %v811
      %876 = vmatprep.subr.mxu0 0.0
      %877 = vmatpush2.msra.mxu0 0.0
      %878 = vmatprep.subr.mxu0 0.0
      %879 = vmatpush2.msra.mxu0 0.0
      %880 = vmatprep.subr.mxu0 0.0
      %881 = vmatpush2.msra.mxu0 0.0
      %882 = vmatprep.subr.mxu0 0.0
      %883 = vmatpush2.msra.mxu0 0.0
      %884 = vmatprep.subr.mxu0 0.0
      %885 = vmatpush2.msra.mxu0 0.0
      %886 = vmatprep.subr.mxu0 0.0
      %887 = vmatpush2.msra.mxu0 0.0
      %888 = vmatprep.subr.mxu0 0.0
      %889 = vmatpush2.msra.mxu0 0.0
      %890 = vmatprep.subr.mxu0 0.0
      %891 = vmatpush2.msra.mxu0 0.0
      %892 = vmatprep.subr.mxu0 0.0
      %893 = vmatpush2.msra.mxu0 0.0
      %894 = vmatprep.subr.mxu0 0.0
      %895 = vmatpush2.msra.mxu0 0.0
      %896 = vmatprep.subr.mxu0 0.0
      %897 = vmatpush2.msra.mxu0 0.0
      %898 = vmatprep.subr.mxu0 0.0
      %899 = vmatpush2.msra.mxu0 0.0
      %900 = vmatprep.subr.mxu0 0.0
      %901 = vmatpush2.msra.mxu0 0.0
      %902 = vmatprep.subr.mxu0 0.0
      %903 = vmatpush2.msra.mxu0 0.0
      %904 = vmatprep.subr.mxu0 0.0
      %905 = vmatpush2.msra.mxu0 0.0
      %906 = vmatprep.subr.mxu0 0.0
      %907 = vmatpush2.msra.mxu0 0.0
      %908 = vmatprep.mubr.f32.mxu0 0.0
      %909 = vmatmul.mubr.f32.gmra.mxu0 %v842
      %v910 = vpop.f32.mrf.mxu0
      %v911 = vadd.f32 0.0, %v910
      %v912 = vpop.f32.mrf.mxu0
      %v913 = vadd.f32 0.0, %v912
      %914 = vdwg.mxu0
      %915 = vmatprep.subr.mxu0 0.0
      %916 = vmatpush1.msra.mxu0 0.0
      %917 = vmatprep.subr.mxu0 0.0
      %918 = vmatpush1.msra.mxu0 0.0
      %919 = vmatprep.subr.mxu0 0.0
      %920 = vmatpush1.msra.mxu0 0.0
      %921 = vmatprep.subr.mxu0 0.0
      %922 = vmatpush1.msra.mxu0 0.0
      %923 = vmatprep.subr.mxu0 0.0
      %924 = vmatpush1.msra.mxu0 0.0
      %925 = vmatprep.subr.mxu0 0.0
      %926 = vmatpush1.msra.mxu0 0.0
      %927 = vmatprep.subr.mxu0 0.0
      %928 = vmatpush1.msra.mxu0 %v840
      %929 = vmatprep.subr.mxu0 0.0
      %930 = vmatpush1.msra.mxu0 %v837
      %931 = vmatprep.subr.mxu0 0.0
      %932 = vmatpush1.msra.mxu0 %v834
      %933 = vmatprep.subr.mxu0 0.0
      %934 = vmatpush1.msra.mxu0 %v831
      %935 = vmatprep.subr.mxu0 0.0
      %936 = vmatpush1.msra.mxu0 %v828
      %937 = vmatprep.subr.mxu0 0.0
      %938 = vmatpush1.msra.mxu0 %v825
      %939 = vmatprep.subr.mxu0 0.0
      %940 = vmatpush1.msra.mxu0 %v822
      %941 = vmatprep.subr.mxu0 0.0
      %942 = vmatpush1.msra.mxu0 %v819
      %943 = vmatprep.subr.mxu0 0.0
      %944 = vmatpush1.msra.mxu0 %v816
      %945 = vmatprep.subr.mxu0 0.0
      %946 = vmatpush1.msra.mxu0 %v813
      %947 = vmatprep.subr.mxu0 0.0
      %948 = vmatpush2.msra.mxu0 0.0
      %949 = vmatprep.subr.mxu0 0.0
      %950 = vmatpush2.msra.mxu0 0.0
      %951 = vmatprep.subr.mxu0 0.0
      %952 = vmatpush2.msra.mxu0 0.0
      %953 = vmatprep.subr.mxu0 0.0
      %954 = vmatpush2.msra.mxu0 0.0
      %955 = vmatprep.subr.mxu0 0.0
      %956 = vmatpush2.msra.mxu0 0.0
      %957 = vmatprep.subr.mxu0 0.0
      %958 = vmatpush2.msra.mxu0 0.0
      %959 = vmatprep.subr.mxu0 0.0
      %960 = vmatpush2.msra.mxu0 0.0
      %961 = vmatprep.subr.mxu0 0.0
      %962 = vmatpush2.msra.mxu0 0.0
      %963 = vmatprep.subr.mxu0 0.0
      %964 = vmatpush2.msra.mxu0 0.0
      %965 = vmatprep.subr.mxu0 0.0
      %966 = vmatpush2.msra.mxu0 0.0
      %967 = vmatprep.subr.mxu0 0.0
      %968 = vmatpush2.msra.mxu0 0.0
      %969 = vmatprep.subr.mxu0 0.0
      %970 = vmatpush2.msra.mxu0 0.0
      %971 = vmatprep.subr.mxu0 0.0
      %972 = vmatpush2.msra.mxu0 0.0
      %973 = vmatprep.subr.mxu0 0.0
      %974 = vmatpush2.msra.mxu0 0.0
      %975 = vmatprep.subr.mxu0 0.0
      %976 = vmatpush2.msra.mxu0 0.0
      %977 = vmatprep.subr.mxu0 0.0
      %978 = vmatpush2.msra.mxu0 0.0
      %979 = vmatprep.mubr.f32.mxu0 0.0
      %980 = vmatmul.mubr.f32.gmra.mxu0 %v842
      %v981 = vpop.f32.mrf.mxu0
      %v982 = vadd.f32 0.0, %v981
      %v983 = vpop.f32.mrf.mxu0
      %984 = vdwg.mxu0
      %v985 = vmul.f32 %v911, %v585
      %v986 = vmul.f32 %v913, %v589
      %v987 = vmul.f32 %v982, %v593
      %988 = vst [vmem:[#allocation2 + $0x8] sm:$0xff] %v985
      %989 = vst [vmem:[#allocation2 + $0x10] sm:$0xff] %v986
      %990 = vst [vmem:[#allocation2 + $0x18] sm:$0xff] %v987
      %v991 = vld [vmem:[#allocation2] sm:$0xff]
      %v992 = vld [vmem:[#allocation2 + $0x8] sm:$0xff]
      %v993 = vld [vmem:[#allocation2 + $0x10] sm:$0xff]
      %v994 = vld [vmem:[#allocation2 + $0x18] sm:$0xff]
      %999 = vrot.lane.b32.xlu0 %v991, 19
      %v1000 = vpop.permute.xlu0 %999
      %1001 = vrot.lane.b32.xlu0 %v992, 19
      %v1002 = vpop.permute.xlu0 %1001
      %1003 = vrot.lane.b32.xlu0 %v993, 19
      %v1004 = vpop.permute.xlu0 %1003
      %1005 = vrot.lane.b32.xlu0 %v994, 19
      %v1006 = vpop.permute.xlu0 %1005
      %v1007 = vsel %vm207, %v1000, %v1002
      %v1008 = vsel %vm207, %v1002, %v1004
      %v1009 = vsel %vm207, %v1004, %v1006
      %1013 = vst [vmem:[#allocation3] sm:$0xff] %v1007
      %1014 = vst [vmem:[#allocation3 + $0x8] sm:$0xff] %v1008
      %1015 = vst [vmem:[#allocation3 + $0x10] sm:$0xff] %v1009
      %v1016 = vld [vmem:[#allocation2] sm:$0xff]
      %v1017 = vld [vmem:[#allocation2 + $0x8] sm:$0xff]
      %v1018 = vld [vmem:[#allocation2 + $0x10] sm:$0xff]
      %v1019 = vld [vmem:[#allocation2 + $0x18] sm:$0xff]
      %1024 = vrot.lane.b32.xlu0 %v1016, 18
      %v1025 = vpop.permute.xlu0 %1024
      %1026 = vrot.lane.b32.xlu0 %v1017, 18
      %v1027 = vpop.permute.xlu0 %1026
      %1028 = vrot.lane.b32.xlu0 %v1018, 18
      %v1029 = vpop.permute.xlu0 %1028
      %1030 = vrot.lane.b32.xlu0 %v1019, 18
      %v1031 = vpop.permute.xlu0 %1030
      %v1032 = vsel %vm233, %v1025, %v1027
      %v1033 = vsel %vm233, %v1027, %v1029
      %v1034 = vsel %vm233, %v1029, %v1031
      %1038 = vst [vmem:[#allocation3 + $0x18] sm:$0xff] %v1032
      %1039 = vst [vmem:[#allocation3 + $0x20] sm:$0xff] %v1033
      %1040 = vst [vmem:[#allocation3 + $0x28] sm:$0xff] %v1034
      %v1041 = vld [vmem:[#allocation2] sm:$0xff]
      %v1042 = vld [vmem:[#allocation2 + $0x8] sm:$0xff]
      %v1043 = vld [vmem:[#allocation2 + $0x10] sm:$0xff]
      %v1044 = vld [vmem:[#allocation2 + $0x18] sm:$0xff]
      %1049 = vrot.lane.b32.xlu0 %v1041, 17
      %v1050 = vpop.permute.xlu0 %1049
      %1051 = vrot.lane.b32.xlu0 %v1042, 17
      %v1052 = vpop.permute.xlu0 %1051
      %1053 = vrot.lane.b32.xlu0 %v1043, 17
      %v1054 = vpop.permute.xlu0 %1053
      %1055 = vrot.lane.b32.xlu0 %v1044, 17
      %v1056 = vpop.permute.xlu0 %1055
      %v1057 = vsel %vm259, %v1050, %v1052
      %v1058 = vsel %vm259, %v1052, %v1054
      %v1059 = vsel %vm259, %v1054, %v1056
      %1063 = vst [vmem:[#allocation3 + $0x30] sm:$0xff] %v1057
      %1064 = vst [vmem:[#allocation3 + $0x38] sm:$0xff] %v1058
      %1065 = vst [vmem:[#allocation3 + $0x40] sm:$0xff] %v1059
      %v1066 = vld [vmem:[#allocation2] sm:$0xff]
      %v1067 = vld [vmem:[#allocation2 + $0x8] sm:$0xff]
      %v1068 = vld [vmem:[#allocation2 + $0x10] sm:$0xff]
      %v1069 = vld [vmem:[#allocation2 + $0x18] sm:$0xff]
      %1074 = vrot.lane.b32.xlu0 %v1066, 1
      %v1075 = vpop.permute.xlu0 %1074
      %1076 = vrot.lane.b32.xlu0 %v1067, 1
      %v1077 = vpop.permute.xlu0 %1076
      %1078 = vrot.lane.b32.xlu0 %v1068, 1
      %v1079 = vpop.permute.xlu0 %1078
      %1080 = vrot.lane.b32.xlu0 %v1069, 1
      %v1081 = vpop.permute.xlu0 %1080
      %v1082 = vsel %vm285, %v1075, %v1077
      %v1083 = vsel %vm285, %v1077, %v1079
      %v1084 = vsel %vm285, %v1079, %v1081
      %1088 = vst [vmem:[#allocation3 + $0x48] sm:$0xff] %v1082
      %1089 = vst [vmem:[#allocation3 + $0x50] sm:$0xff] %v1083
      %1090 = vst [vmem:[#allocation3 + $0x58] sm:$0xff] %v1084
      %v1091 = vld [vmem:[#allocation2 + $0x8] sm:$0xff]
      %v1092 = vld [vmem:[#allocation2 + $0x10] sm:$0xff]
      %v1093 = vld [vmem:[#allocation2 + $0x18] sm:$0xff]
      %1094 = vst [vmem:[#allocation3 + $0x60] sm:$0xff] %v1091
      %1095 = vst [vmem:[#allocation3 + $0x68] sm:$0xff] %v1092
      %1096 = vst [vmem:[#allocation3 + $0x70] sm:$0xff] %v1093
      %v1097 = vld [vmem:[#allocation2 + $0x8] sm:$0xff]
      %v1098 = vld [vmem:[#allocation2 + $0x10] sm:$0xff]
      %v1099 = vld [vmem:[#allocation2 + $0x18] sm:$0xff]
      %v1100 = vld [vmem:[#allocation2 + $0x20] sm:$0xff]
      %1105 = vrot.lane.b32.xlu0 %v1097, 127
      %v1106 = vpop.permute.xlu0 %1105
      %1107 = vrot.lane.b32.xlu0 %v1098, 127
      %v1108 = vpop.permute.xlu0 %1107
      %1109 = vrot.lane.b32.xlu0 %v1099, 127
      %v1110 = vpop.permute.xlu0 %1109
      %1111 = vrot.lane.b32.xlu0 %v1100, 127
      %v1112 = vpop.permute.xlu0 %1111
      %v1113 = vsel %vm317, %v1106, %v1108
      %v1114 = vsel %vm317, %v1108, %v1110
      %v1115 = vsel %vm317, %v1110, %v1112
      %1119 = vst [vmem:[#allocation3 + $0x78] sm:$0xff] %v1113
      %1120 = vst [vmem:[#allocation3 + $0x80] sm:$0xff] %v1114
      %1121 = vst [vmem:[#allocation3 + $0x88] sm:$0xff] %v1115
      %v1122 = vld [vmem:[#allocation2 + $0x8] sm:$0xff]
      %v1123 = vld [vmem:[#allocation2 + $0x10] sm:$0xff]
      %v1124 = vld [vmem:[#allocation2 + $0x18] sm:$0xff]
      %v1125 = vld [vmem:[#allocation2 + $0x20] sm:$0xff]
      %1130 = vrot.lane.b32.xlu0 %v1122, 111
      %v1131 = vpop.permute.xlu0 %1130
      %1132 = vrot.lane.b32.xlu0 %v1123, 111
      %v1133 = vpop.permute.xlu0 %1132
      %1134 = vrot.lane.b32.xlu0 %v1124, 111
      %v1135 = vpop.permute.xlu0 %1134
      %1136 = vrot.lane.b32.xlu0 %v1125, 111
      %v1137 = vpop.permute.xlu0 %1136
      %v1138 = vsel %vm343, %v1131, %v1133
      %v1139 = vsel %vm343, %v1133, %v1135
      %v1140 = vsel %vm343, %v1135, %v1137
      %1144 = vst [vmem:[#allocation3 + $0x90] sm:$0xff] %v1138
      %1145 = vst [vmem:[#allocation3 + $0x98] sm:$0xff] %v1139
      %1146 = vst [vmem:[#allocation3 + $0xa0] sm:$0xff] %v1140
      %v1147 = vld [vmem:[#allocation2 + $0x8] sm:$0xff]
      %v1148 = vld [vmem:[#allocation2 + $0x10] sm:$0xff]
      %v1149 = vld [vmem:[#allocation2 + $0x18] sm:$0xff]
      %v1150 = vld [vmem:[#allocation2 + $0x20] sm:$0xff]
      %1155 = vrot.lane.b32.xlu0 %v1147, 110
      %v1156 = vpop.permute.xlu0 %1155
      %1157 = vrot.lane.b32.xlu0 %v1148, 110
      %v1158 = vpop.permute.xlu0 %1157
      %1159 = vrot.lane.b32.xlu0 %v1149, 110
      %v1160 = vpop.permute.xlu0 %1159
      %1161 = vrot.lane.b32.xlu0 %v1150, 110
      %v1162 = vpop.permute.xlu0 %1161
      %v1163 = vsel %vm369, %v1156, %v1158
      %v1164 = vsel %vm369, %v1158, %v1160
      %v1165 = vsel %vm369, %v1160, %v1162
      %1169 = vst [vmem:[#allocation3 + $0xa8] sm:$0xff] %v1163
      %1170 = vst [vmem:[#allocation3 + $0xb0] sm:$0xff] %v1164
      %1171 = vst [vmem:[#allocation3 + $0xb8] sm:$0xff] %v1165
      %v1172 = vld [vmem:[#allocation2 + $0x8] sm:$0xff]
      %v1173 = vld [vmem:[#allocation2 + $0x10] sm:$0xff]
      %v1174 = vld [vmem:[#allocation2 + $0x18] sm:$0xff]
      %v1175 = vld [vmem:[#allocation2 + $0x20] sm:$0xff]
      %1180 = vrot.lane.b32.xlu0 %v1172, 109
      %v1181 = vpop.permute.xlu0 %1180
      %1182 = vrot.lane.b32.xlu0 %v1173, 109
      %v1183 = vpop.permute.xlu0 %1182
      %1184 = vrot.lane.b32.xlu0 %v1174, 109
      %v1185 = vpop.permute.xlu0 %1184
      %1186 = vrot.lane.b32.xlu0 %v1175, 109
      %v1187 = vpop.permute.xlu0 %1186
      %v1188 = vsel %vm395, %v1181, %v1183
      %v1189 = vsel %vm395, %v1183, %v1185
      %v1190 = vsel %vm395, %v1185, %v1187
      %1194 = vst [vmem:[#allocation3 + $0xc0] sm:$0xff] %v1188
      %1195 = vst [vmem:[#allocation3 + $0xc8] sm:$0xff] %v1189
      %1196 = vst [vmem:[#allocation3 + $0xd0] sm:$0xff] %v1190
      %s1197 = scalar_lea.vmem %s1, 16
      %v1198 = vld [vmem:[%s1197] sm:$0xff]
      %v1199 = vld [vmem:[#allocation3] sm:$0xff]
      %v1200 = vld [vmem:[#allocation3 + $0x8] sm:$0xff]
      %v1201 = vld [vmem:[#allocation3 + $0x10] sm:$0xff]
      %v1202 = vld [vmem:[#allocation3 + $0x18] sm:$0xff]
      %v1203 = vld [vmem:[#allocation3 + $0x20] sm:$0xff]
      %v1204 = vld [vmem:[#allocation3 + $0x28] sm:$0xff]
      %v1205 = vld [vmem:[#allocation3 + $0x30] sm:$0xff]
      %v1206 = vld [vmem:[#allocation3 + $0x38] sm:$0xff]
      %v1207 = vld [vmem:[#allocation3 + $0x40] sm:$0xff]
      %v1208 = vld [vmem:[#allocation3 + $0x48] sm:$0xff]
      %v1209 = vld [vmem:[#allocation3 + $0x50] sm:$0xff]
      %v1210 = vld [vmem:[#allocation3 + $0x58] sm:$0xff]
      %v1211 = vld [vmem:[#allocation3 + $0x60] sm:$0xff]
      %v1212 = vld [vmem:[#allocation3 + $0x68] sm:$0xff]
      %v1213 = vld [vmem:[#allocation3 + $0x70] sm:$0xff]
      %v1214 = vld [vmem:[#allocation3 + $0x78] sm:$0xff]
      %v1215 = vld [vmem:[#allocation3 + $0x80] sm:$0xff]
      %v1216 = vld [vmem:[#allocation3 + $0x88] sm:$0xff]
      %v1217 = vld [vmem:[#allocation3 + $0x90] sm:$0xff]
      %v1218 = vld [vmem:[#allocation3 + $0x98] sm:$0xff]
      %v1219 = vld [vmem:[#allocation3 + $0xa0] sm:$0xff]
      %v1220 = vld [vmem:[#allocation3 + $0xa8] sm:$0xff]
      %v1221 = vld [vmem:[#allocation3 + $0xb0] sm:$0xff]
      %v1222 = vld [vmem:[#allocation3 + $0xb8] sm:$0xff]
      %v1223 = vld [vmem:[#allocation3 + $0xc0] sm:$0xff]
      %v1224 = vld [vmem:[#allocation3 + $0xc8] sm:$0xff]
      %v1225 = vld [vmem:[#allocation3 + $0xd0] sm:$0xff]
      %v1226 = vld [vmem:[#allocation3 + $0xd8] sm:$0xff]
      %v1227 = vld [vmem:[#allocation3 + $0xe0] sm:$0xff]
      %v1228 = vld [vmem:[#allocation3 + $0xe8] sm:$0xff]
      %v1230 = vsel %vm436, %v1198, 0
      %1232 = vmatprep.subr.mxu0 0.0
      %1233 = vmatpush1.msra.mxu0 0.0
      %1234 = vmatprep.subr.mxu0 0.0
      %1235 = vmatpush1.msra.mxu0 0.0
      %1236 = vmatprep.subr.mxu0 0.0
      %1237 = vmatpush1.msra.mxu0 0.0
      %1238 = vmatprep.subr.mxu0 0.0
      %1239 = vmatpush1.msra.mxu0 0.0
      %1240 = vmatprep.subr.mxu0 0.0
      %1241 = vmatpush1.msra.mxu0 0.0
      %1242 = vmatprep.subr.mxu0 0.0
      %1243 = vmatpush1.msra.mxu0 0.0
      %1244 = vmatprep.subr.mxu0 %v1227
      %1245 = vmatpush1.msra.mxu0 %v1226
      %1246 = vmatprep.subr.mxu0 %v1224
      %1247 = vmatpush1.msra.mxu0 %v1223
      %1248 = vmatprep.subr.mxu0 %v1221
      %1249 = vmatpush1.msra.mxu0 %v1220
      %1250 = vmatprep.subr.mxu0 %v1218
      %1251 = vmatpush1.msra.mxu0 %v1217
      %1252 = vmatprep.subr.mxu0 %v1215
      %1253 = vmatpush1.msra.mxu0 %v1214
      %1254 = vmatprep.subr.mxu0 %v1212
      %1255 = vmatpush1.msra.mxu0 %v1211
      %1256 = vmatprep.subr.mxu0 %v1209
      %1257 = vmatpush1.msra.mxu0 %v1208
      %1258 = vmatprep.subr.mxu0 %v1206
      %1259 = vmatpush1.msra.mxu0 %v1205
      %1260 = vmatprep.subr.mxu0 %v1203
      %1261 = vmatpush1.msra.mxu0 %v1202
      %1262 = vmatprep.subr.mxu0 %v1200
      %1263 = vmatpush1.msra.mxu0 %v1199
      %1264 = vmatprep.subr.mxu0 0.0
      %1265 = vmatpush2.msra.mxu0 0.0
      %1266 = vmatprep.subr.mxu0 0.0
      %1267 = vmatpush2.msra.mxu0 0.0
      %1268 = vmatprep.subr.mxu0 0.0
      %1269 = vmatpush2.msra.mxu0 0.0
      %1270 = vmatprep.subr.mxu0 0.0
      %1271 = vmatpush2.msra.mxu0 0.0
      %1272 = vmatprep.subr.mxu0 0.0
      %1273 = vmatpush2.msra.mxu0 0.0
      %1274 = vmatprep.subr.mxu0 0.0
      %1275 = vmatpush2.msra.mxu0 0.0
      %1276 = vmatprep.subr.mxu0 0.0
      %1277 = vmatpush2.msra.mxu0 0.0
      %1278 = vmatprep.subr.mxu0 0.0
      %1279 = vmatpush2.msra.mxu0 0.0
      %1280 = vmatprep.subr.mxu0 0.0
      %1281 = vmatpush2.msra.mxu0 0.0
      %1282 = vmatprep.subr.mxu0 0.0
      %1283 = vmatpush2.msra.mxu0 0.0
      %1284 = vmatprep.subr.mxu0 0.0
      %1285 = vmatpush2.msra.mxu0 0.0
      %1286 = vmatprep.subr.mxu0 0.0
      %1287 = vmatpush2.msra.mxu0 0.0
      %1288 = vmatprep.subr.mxu0 0.0
      %1289 = vmatpush2.msra.mxu0 0.0
      %1290 = vmatprep.subr.mxu0 0.0
      %1291 = vmatpush2.msra.mxu0 0.0
      %1292 = vmatprep.subr.mxu0 0.0
      %1293 = vmatpush2.msra.mxu0 0.0
      %1294 = vmatprep.subr.mxu0 0.0
      %1295 = vmatpush2.msra.mxu0 0.0
      %1296 = vmatprep.mubr.f32.mxu0 0.0
      %1297 = vmatmul.mubr.f32.gmra.mxu0 %v1230
      %v1298 = vpop.f32.mrf.mxu0
      %v1299 = vadd.f32 0.0, %v1298
      %v1300 = vpop.f32.mrf.mxu0
      %v1301 = vadd.f32 0.0, %v1300
      %1302 = vdwg.mxu0
      %1303 = vmatprep.subr.mxu0 0.0
      %1304 = vmatpush1.msra.mxu0 0.0
      %1305 = vmatprep.subr.mxu0 0.0
      %1306 = vmatpush1.msra.mxu0 0.0
      %1307 = vmatprep.subr.mxu0 0.0
      %1308 = vmatpush1.msra.mxu0 0.0
      %1309 = vmatprep.subr.mxu0 0.0
      %1310 = vmatpush1.msra.mxu0 0.0
      %1311 = vmatprep.subr.mxu0 0.0
      %1312 = vmatpush1.msra.mxu0 0.0
      %1313 = vmatprep.subr.mxu0 0.0
      %1314 = vmatpush1.msra.mxu0 0.0
      %1315 = vmatprep.subr.mxu0 0.0
      %1316 = vmatpush1.msra.mxu0 %v1228
      %1317 = vmatprep.subr.mxu0 0.0
      %1318 = vmatpush1.msra.mxu0 %v1225
      %1319 = vmatprep.subr.mxu0 0.0
      %1320 = vmatpush1.msra.mxu0 %v1222
      %1321 = vmatprep.subr.mxu0 0.0
      %1322 = vmatpush1.msra.mxu0 %v1219
      %1323 = vmatprep.subr.mxu0 0.0
      %1324 = vmatpush1.msra.mxu0 %v1216
      %1325 = vmatprep.subr.mxu0 0.0
      %1326 = vmatpush1.msra.mxu0 %v1213
      %1327 = vmatprep.subr.mxu0 0.0
      %1328 = vmatpush1.msra.mxu0 %v1210
      %1329 = vmatprep.subr.mxu0 0.0
      %1330 = vmatpush1.msra.mxu0 %v1207
      %1331 = vmatprep.subr.mxu0 0.0
      %1332 = vmatpush1.msra.mxu0 %v1204
      %1333 = vmatprep.subr.mxu0 0.0
      %1334 = vmatpush1.msra.mxu0 %v1201
      %1335 = vmatprep.subr.mxu0 0.0
      %1336 = vmatpush2.msra.mxu0 0.0
      %1337 = vmatprep.subr.mxu0 0.0
      %1338 = vmatpush2.msra.mxu0 0.0
      %1339 = vmatprep.subr.mxu0 0.0
      %1340 = vmatpush2.msra.mxu0 0.0
      %1341 = vmatprep.subr.mxu0 0.0
      %1342 = vmatpush2.msra.mxu0 0.0
      %1343 = vmatprep.subr.mxu0 0.0
      %1344 = vmatpush2.msra.mxu0 0.0
      %1345 = vmatprep.subr.mxu0 0.0
      %1346 = vmatpush2.msra.mxu0 0.0
      %1347 = vmatprep.subr.mxu0 0.0
      %1348 = vmatpush2.msra.mxu0 0.0
      %1349 = vmatprep.subr.mxu0 0.0
      %1350 = vmatpush2.msra.mxu0 0.0
      %1351 = vmatprep.subr.mxu0 0.0
      %1352 = vmatpush2.msra.mxu0 0.0
      %1353 = vmatprep.subr.mxu0 0.0
      %1354 = vmatpush2.msra.mxu0 0.0
      %1355 = vmatprep.subr.mxu0 0.0
      %1356 = vmatpush2.msra.mxu0 0.0
      %1357 = vmatprep.subr.mxu0 0.0
      %1358 = vmatpush2.msra.mxu0 0.0
      %1359 = vmatprep.subr.mxu0 0.0
      %1360 = vmatpush2.msra.mxu0 0.0
      %1361 = vmatprep.subr.mxu0 0.0
      %1362 = vmatpush2.msra.mxu0 0.0
      %1363 = vmatprep.subr.mxu0 0.0
      %1364 = vmatpush2.msra.mxu0 0.0
      %1365 = vmatprep.subr.mxu0 0.0
      %1366 = vmatpush2.msra.mxu0 0.0
      %1367 = vmatprep.mubr.f32.mxu0 0.0
      %1368 = vmatmul.mubr.f32.gmra.mxu0 %v1230
      %v1369 = vpop.f32.mrf.mxu0
      %v1370 = vadd.f32 0.0, %v1369
      %v1371 = vpop.f32.mrf.mxu0
      %1372 = vdwg.mxu0
      %v1373 = vmul.f32 %v1299, %v585
      %v1374 = vmul.f32 %v1301, %v589
      %v1375 = vmul.f32 %v1370, %v593
      %1376 = vst [vmem:[#allocation2 + $0x8] sm:$0xff] %v1373
      %1377 = vst [vmem:[#allocation2 + $0x10] sm:$0xff] %v1374
      %1378 = vst [vmem:[#allocation2 + $0x18] sm:$0xff] %v1375
      %v1379 = vld [vmem:[#allocation2] sm:$0xff]
      %v1380 = vld [vmem:[#allocation2 + $0x8] sm:$0xff]
      %v1381 = vld [vmem:[#allocation2 + $0x10] sm:$0xff]
      %v1382 = vld [vmem:[#allocation2 + $0x18] sm:$0xff]
      %1387 = vrot.lane.b32.xlu0 %v1379, 19
      %v1388 = vpop.permute.xlu0 %1387
      %1389 = vrot.lane.b32.xlu0 %v1380, 19
      %v1390 = vpop.permute.xlu0 %1389
      %1391 = vrot.lane.b32.xlu0 %v1381, 19
      %v1392 = vpop.permute.xlu0 %1391
      %1393 = vrot.lane.b32.xlu0 %v1382, 19
      %v1394 = vpop.permute.xlu0 %1393
      %v1395 = vsel %vm207, %v1388, %v1390
      %v1396 = vsel %vm207, %v1390, %v1392
      %v1397 = vsel %vm207, %v1392, %v1394
      %1401 = vst [vmem:[#allocation3] sm:$0xff] %v1395
      %1402 = vst [vmem:[#allocation3 + $0x8] sm:$0xff] %v1396
      %1403 = vst [vmem:[#allocation3 + $0x10] sm:$0xff] %v1397
      %v1404 = vld [vmem:[#allocation2] sm:$0xff]
      %v1405 = vld [vmem:[#allocation2 + $0x8] sm:$0xff]
      %v1406 = vld [vmem:[#allocation2 + $0x10] sm:$0xff]
      %v1407 = vld [vmem:[#allocation2 + $0x18] sm:$0xff]
      %1412 = vrot.lane.b32.xlu0 %v1404, 18
      %v1413 = vpop.permute.xlu0 %1412
      %1414 = vrot.lane.b32.xlu0 %v1405, 18
      %v1415 = vpop.permute.xlu0 %1414
      %1416 = vrot.lane.b32.xlu0 %v1406, 18
      %v1417 = vpop.permute.xlu0 %1416
      %1418 = vrot.lane.b32.xlu0 %v1407, 18
      %v1419 = vpop.permute.xlu0 %1418
      %v1420 = vsel %vm233, %v1413, %v1415
      %v1421 = vsel %vm233, %v1415, %v1417
      %v1422 = vsel %vm233, %v1417, %v1419
      %1426 = vst [vmem:[#allocation3 + $0x18] sm:$0xff] %v1420
      %1427 = vst [vmem:[#allocation3 + $0x20] sm:$0xff] %v1421
      %1428 = vst [vmem:[#allocation3 + $0x28] sm:$0xff] %v1422
      %v1429 = vld [vmem:[#allocation2] sm:$0xff]
      %v1430 = vld [vmem:[#allocation2 + $0x8] sm:$0xff]
      %v1431 = vld [vmem:[#allocation2 + $0x10] sm:$0xff]
      %v1432 = vld [vmem:[#allocation2 + $0x18] sm:$0xff]
      %1437 = vrot.lane.b32.xlu0 %v1429, 17
      %v1438 = vpop.permute.xlu0 %1437
      %1439 = vrot.lane.b32.xlu0 %v1430, 17
      %v1440 = vpop.permute.xlu0 %1439
      %1441 = vrot.lane.b32.xlu0 %v1431, 17
      %v1442 = vpop.permute.xlu0 %1441
      %1443 = vrot.lane.b32.xlu0 %v1432, 17
      %v1444 = vpop.permute.xlu0 %1443
      %v1445 = vsel %vm259, %v1438, %v1440
      %v1446 = vsel %vm259, %v1440, %v1442
      %v1447 = vsel %vm259, %v1442, %v1444
      %1451 = vst [vmem:[#allocation3 + $0x30] sm:$0xff] %v1445
      %1452 = vst [vmem:[#allocation3 + $0x38] sm:$0xff] %v1446
      %1453 = vst [vmem:[#allocation3 + $0x40] sm:$0xff] %v1447
      %v1454 = vld [vmem:[#allocation2] sm:$0xff]
      %v1455 = vld [vmem:[#allocation2 + $0x8] sm:$0xff]
      %v1456 = vld [vmem:[#allocation2 + $0x10] sm:$0xff]
      %v1457 = vld [vmem:[#allocation2 + $0x18] sm:$0xff]
      %1462 = vrot.lane.b32.xlu0 %v1454, 1
      %v1463 = vpop.permute.xlu0 %1462
      %1464 = vrot.lane.b32.xlu0 %v1455, 1
      %v1465 = vpop.permute.xlu0 %1464
      %1466 = vrot.lane.b32.xlu0 %v1456, 1
      %v1467 = vpop.permute.xlu0 %1466
      %1468 = vrot.lane.b32.xlu0 %v1457, 1
      %v1469 = vpop.permute.xlu0 %1468
      %v1470 = vsel %vm285, %v1463, %v1465
      %v1471 = vsel %vm285, %v1465, %v1467
      %v1472 = vsel %vm285, %v1467, %v1469
      %1476 = vst [vmem:[#allocation3 + $0x48] sm:$0xff] %v1470
      %1477 = vst [vmem:[#allocation3 + $0x50] sm:$0xff] %v1471
      %1478 = vst [vmem:[#allocation3 + $0x58] sm:$0xff] %v1472
      %v1479 = vld [vmem:[#allocation2 + $0x8] sm:$0xff]
      %v1480 = vld [vmem:[#allocation2 + $0x10] sm:$0xff]
      %v1481 = vld [vmem:[#allocation2 + $0x18] sm:$0xff]
      %1482 = vst [vmem:[#allocation3 + $0x60] sm:$0xff] %v1479
      %1483 = vst [vmem:[#allocation3 + $0x68] sm:$0xff] %v1480
      %1484 = vst [vmem:[#allocation3 + $0x70] sm:$0xff] %v1481
      %v1485 = vld [vmem:[#allocation2 + $0x8] sm:$0xff]
      %v1486 = vld [vmem:[#allocation2 + $0x10] sm:$0xff]
      %v1487 = vld [vmem:[#allocation2 + $0x18] sm:$0xff]
      %v1488 = vld [vmem:[#allocation2 + $0x20] sm:$0xff]
      %1493 = vrot.lane.b32.xlu0 %v1485, 127
      %v1494 = vpop.permute.xlu0 %1493
      %1495 = vrot.lane.b32.xlu0 %v1486, 127
      %v1496 = vpop.permute.xlu0 %1495
      %1497 = vrot.lane.b32.xlu0 %v1487, 127
      %v1498 = vpop.permute.xlu0 %1497
      %1499 = vrot.lane.b32.xlu0 %v1488, 127
      %v1500 = vpop.permute.xlu0 %1499
      %v1501 = vsel %vm317, %v1494, %v1496
      %v1502 = vsel %vm317, %v1496, %v1498
      %v1503 = vsel %vm317, %v1498, %v1500
      %1507 = vst [vmem:[#allocation3 + $0x78] sm:$0xff] %v1501
      %1508 = vst [vmem:[#allocation3 + $0x80] sm:$0xff] %v1502
      %1509 = vst [vmem:[#allocation3 + $0x88] sm:$0xff] %v1503
      %v1510 = vld [vmem:[#allocation2 + $0x8] sm:$0xff]
      %v1511 = vld [vmem:[#allocation2 + $0x10] sm:$0xff]
      %v1512 = vld [vmem:[#allocation2 + $0x18] sm:$0xff]
      %v1513 = vld [vmem:[#allocation2 + $0x20] sm:$0xff]
      %1518 = vrot.lane.b32.xlu0 %v1510, 111
      %v1519 = vpop.permute.xlu0 %1518
      %1520 = vrot.lane.b32.xlu0 %v1511, 111
      %v1521 = vpop.permute.xlu0 %1520
      %1522 = vrot.lane.b32.xlu0 %v1512, 111
      %v1523 = vpop.permute.xlu0 %1522
      %1524 = vrot.lane.b32.xlu0 %v1513, 111
      %v1525 = vpop.permute.xlu0 %1524
      %v1526 = vsel %vm343, %v1519, %v1521
      %v1527 = vsel %vm343, %v1521, %v1523
      %v1528 = vsel %vm343, %v1523, %v1525
      %1532 = vst [vmem:[#allocation3 + $0x90] sm:$0xff] %v1526
      %1533 = vst [vmem:[#allocation3 + $0x98] sm:$0xff] %v1527
      %1534 = vst [vmem:[#allocation3 + $0xa0] sm:$0xff] %v1528
      %v1535 = vld [vmem:[#allocation2 + $0x8] sm:$0xff]
      %v1536 = vld [vmem:[#allocation2 + $0x10] sm:$0xff]
      %v1537 = vld [vmem:[#allocation2 + $0x18] sm:$0xff]
      %v1538 = vld [vmem:[#allocation2 + $0x20] sm:$0xff]
      %1543 = vrot.lane.b32.xlu0 %v1535, 110
      %v1544 = vpop.permute.xlu0 %1543
      %1545 = vrot.lane.b32.xlu0 %v1536, 110
      %v1546 = vpop.permute.xlu0 %1545
      %1547 = vrot.lane.b32.xlu0 %v1537, 110
      %v1548 = vpop.permute.xlu0 %1547
      %1549 = vrot.lane.b32.xlu0 %v1538, 110
      %v1550 = vpop.permute.xlu0 %1549
      %v1551 = vsel %vm369, %v1544, %v1546
      %v1552 = vsel %vm369, %v1546, %v1548
      %v1553 = vsel %vm369, %v1548, %v1550
      %1557 = vst [vmem:[#allocation3 + $0xa8] sm:$0xff] %v1551
      %1558 = vst [vmem:[#allocation3 + $0xb0] sm:$0xff] %v1552
      %1559 = vst [vmem:[#allocation3 + $0xb8] sm:$0xff] %v1553
      %v1560 = vld [vmem:[#allocation2 + $0x8] sm:$0xff]
      %v1561 = vld [vmem:[#allocation2 + $0x10] sm:$0xff]
      %v1562 = vld [vmem:[#allocation2 + $0x18] sm:$0xff]
      %v1563 = vld [vmem:[#allocation2 + $0x20] sm:$0xff]
      %1568 = vrot.lane.b32.xlu0 %v1560, 109
      %v1569 = vpop.permute.xlu0 %1568
      %1570 = vrot.lane.b32.xlu0 %v1561, 109
      %v1571 = vpop.permute.xlu0 %1570
      %1572 = vrot.lane.b32.xlu0 %v1562, 109
      %v1573 = vpop.permute.xlu0 %1572
      %1574 = vrot.lane.b32.xlu0 %v1563, 109
      %v1575 = vpop.permute.xlu0 %1574
      %v1576 = vsel %vm395, %v1569, %v1571
      %v1577 = vsel %vm395, %v1571, %v1573
      %v1578 = vsel %vm395, %v1573, %v1575
      %1582 = vst [vmem:[#allocation3 + $0xc0] sm:$0xff] %v1576
      %1583 = vst [vmem:[#allocation3 + $0xc8] sm:$0xff] %v1577
      %1584 = vst [vmem:[#allocation3 + $0xd0] sm:$0xff] %v1578
      %s1585 = scalar_lea.vmem %s1, 24
      %v1586 = vld [vmem:[%s1585] sm:$0xff]
      %v1587 = vld [vmem:[#allocation3] sm:$0xff]
      %v1588 = vld [vmem:[#allocation3 + $0x8] sm:$0xff]
      %v1589 = vld [vmem:[#allocation3 + $0x10] sm:$0xff]
      %v1590 = vld [vmem:[#allocation3 + $0x18] sm:$0xff]
      %v1591 = vld [vmem:[#allocation3 + $0x20] sm:$0xff]
      %v1592 = vld [vmem:[#allocation3 + $0x28] sm:$0xff]
      %v1593 = vld [vmem:[#allocation3 + $0x30] sm:$0xff]
      %v1594 = vld [vmem:[#allocation3 + $0x38] sm:$0xff]
      %v1595 = vld [vmem:[#allocation3 + $0x40] sm:$0xff]
      %v1596 = vld [vmem:[#allocation3 + $0x48] sm:$0xff]
      %v1597 = vld [vmem:[#allocation3 + $0x50] sm:$0xff]
      %v1598 = vld [vmem:[#allocation3 + $0x58] sm:$0xff]
      %v1599 = vld [vmem:[#allocation3 + $0x60] sm:$0xff]
      %v1600 = vld [vmem:[#allocation3 + $0x68] sm:$0xff]
      %v1601 = vld [vmem:[#allocation3 + $0x70] sm:$0xff]
      %v1602 = vld [vmem:[#allocation3 + $0x78] sm:$0xff]
      %v1603 = vld [vmem:[#allocation3 + $0x80] sm:$0xff]
      %v1604 = vld [vmem:[#allocation3 + $0x88] sm:$0xff]
      %v1605 = vld [vmem:[#allocation3 + $0x90] sm:$0xff]
      %v1606 = vld [vmem:[#allocation3 + $0x98] sm:$0xff]
      %v1607 = vld [vmem:[#allocation3 + $0xa0] sm:$0xff]
      %v1608 = vld [vmem:[#allocation3 + $0xa8] sm:$0xff]
      %v1609 = vld [vmem:[#allocation3 + $0xb0] sm:$0xff]
      %v1610 = vld [vmem:[#allocation3 + $0xb8] sm:$0xff]
      %v1611 = vld [vmem:[#allocation3 + $0xc0] sm:$0xff]
      %v1612 = vld [vmem:[#allocation3 + $0xc8] sm:$0xff]
      %v1613 = vld [vmem:[#allocation3 + $0xd0] sm:$0xff]
      %v1614 = vld [vmem:[#allocation3 + $0xd8] sm:$0xff]
      %v1615 = vld [vmem:[#allocation3 + $0xe0] sm:$0xff]
      %v1616 = vld [vmem:[#allocation3 + $0xe8] sm:$0xff]
      %v1618 = vsel %vm436, %v1586, 0
      %1620 = vmatprep.subr.mxu0 0.0
      %1621 = vmatpush1.msra.mxu0 0.0
      %1622 = vmatprep.subr.mxu0 0.0
      %1623 = vmatpush1.msra.mxu0 0.0
      %1624 = vmatprep.subr.mxu0 0.0
      %1625 = vmatpush1.msra.mxu0 0.0
      %1626 = vmatprep.subr.mxu0 0.0
      %1627 = vmatpush1.msra.mxu0 0.0
      %1628 = vmatprep.subr.mxu0 0.0
      %1629 = vmatpush1.msra.mxu0 0.0
      %1630 = vmatprep.subr.mxu0 0.0
      %1631 = vmatpush1.msra.mxu0 0.0
      %1632 = vmatprep.subr.mxu0 %v1615
      %1633 = vmatpush1.msra.mxu0 %v1614
      %1634 = vmatprep.subr.mxu0 %v1612
      %1635 = vmatpush1.msra.mxu0 %v1611
      %1636 = vmatprep.subr.mxu0 %v1609
      %1637 = vmatpush1.msra.mxu0 %v1608
      %1638 = vmatprep.subr.mxu0 %v1606
      %1639 = vmatpush1.msra.mxu0 %v1605
      %1640 = vmatprep.subr.mxu0 %v1603
      %1641 = vmatpush1.msra.mxu0 %v1602
      %1642 = vmatprep.subr.mxu0 %v1600
      %1643 = vmatpush1.msra.mxu0 %v1599
      %1644 = vmatprep.subr.mxu0 %v1597
      %1645 = vmatpush1.msra.mxu0 %v1596
      %1646 = vmatprep.subr.mxu0 %v1594
      %1647 = vmatpush1.msra.mxu0 %v1593
      %1648 = vmatprep.subr.mxu0 %v1591
      %1649 = vmatpush1.msra.mxu0 %v1590
      %1650 = vmatprep.subr.mxu0 %v1588
      %1651 = vmatpush1.msra.mxu0 %v1587
      %1652 = vmatprep.subr.mxu0 0.0
      %1653 = vmatpush2.msra.mxu0 0.0
      %1654 = vmatprep.subr.mxu0 0.0
      %1655 = vmatpush2.msra.mxu0 0.0
      %1656 = vmatprep.subr.mxu0 0.0
      %1657 = vmatpush2.msra.mxu0 0.0
      %1658 = vmatprep.subr.mxu0 0.0
      %1659 = vmatpush2.msra.mxu0 0.0
      %1660 = vmatprep.subr.mxu0 0.0
      %1661 = vmatpush2.msra.mxu0 0.0
      %1662 = vmatprep.subr.mxu0 0.0
      %1663 = vmatpush2.msra.mxu0 0.0
      %1664 = vmatprep.subr.mxu0 0.0
      %1665 = vmatpush2.msra.mxu0 0.0
      %1666 = vmatprep.subr.mxu0 0.0
      %1667 = vmatpush2.msra.mxu0 0.0
      %1668 = vmatprep.subr.mxu0 0.0
      %1669 = vmatpush2.msra.mxu0 0.0
      %1670 = vmatprep.subr.mxu0 0.0
      %1671 = vmatpush2.msra.mxu0 0.0
      %1672 = vmatprep.subr.mxu0 0.0
      %1673 = vmatpush2.msra.mxu0 0.0
      %1674 = vmatprep.subr.mxu0 0.0
      %1675 = vmatpush2.msra.mxu0 0.0
      %1676 = vmatprep.subr.mxu0 0.0
      %1677 = vmatpush2.msra.mxu0 0.0
      %1678 = vmatprep.subr.mxu0 0.0
      %1679 = vmatpush2.msra.mxu0 0.0
      %1680 = vmatprep.subr.mxu0 0.0
      %1681 = vmatpush2.msra.mxu0 0.0
      %1682 = vmatprep.subr.mxu0 0.0
      %1683 = vmatpush2.msra.mxu0 0.0
      %1684 = vmatprep.mubr.f32.mxu0 0.0
      %1685 = vmatmul.mubr.f32.gmra.mxu0 %v1618
      %v1686 = vpop.f32.mrf.mxu0
      %v1687 = vadd.f32 0.0, %v1686
      %v1688 = vpop.f32.mrf.mxu0
      %v1689 = vadd.f32 0.0, %v1688
      %1690 = vdwg.mxu0
      %1691 = vmatprep.subr.mxu0 0.0
      %1692 = vmatpush1.msra.mxu0 0.0
      %1693 = vmatprep.subr.mxu0 0.0
      %1694 = vmatpush1.msra.mxu0 0.0
      %1695 = vmatprep.subr.mxu0 0.0
      %1696 = vmatpush1.msra.mxu0 0.0
      %1697 = vmatprep.subr.mxu0 0.0
      %1698 = vmatpush1.msra.mxu0 0.0
      %1699 = vmatprep.subr.mxu0 0.0
      %1700 = vmatpush1.msra.mxu0 0.0
      %1701 = vmatprep.subr.mxu0 0.0
      %1702 = vmatpush1.msra.mxu0 0.0
      %1703 = vmatprep.subr.mxu0 0.0
      %1704 = vmatpush1.msra.mxu0 %v1616
      %1705 = vmatprep.subr.mxu0 0.0
      %1706 = vmatpush1.msra.mxu0 %v1613
      %1707 = vmatprep.subr.mxu0 0.0
      %1708 = vmatpush1.msra.mxu0 %v1610
      %1709 = vmatprep.subr.mxu0 0.0
      %1710 = vmatpush1.msra.mxu0 %v1607
      %1711 = vmatprep.subr.mxu0 0.0
      %1712 = vmatpush1.msra.mxu0 %v1604
      %1713 = vmatprep.subr.mxu0 0.0
      %1714 = vmatpush1.msra.mxu0 %v1601
      %1715 = vmatprep.subr.mxu0 0.0
      %1716 = vmatpush1.msra.mxu0 %v1598
      %1717 = vmatprep.subr.mxu0 0.0
      %1718 = vmatpush1.msra.mxu0 %v1595
      %1719 = vmatprep.subr.mxu0 0.0
      %1720 = vmatpush1.msra.mxu0 %v1592
      %1721 = vmatprep.subr.mxu0 0.0
      %1722 = vmatpush1.msra.mxu0 %v1589
      %1723 = vmatprep.subr.mxu0 0.0
      %1724 = vmatpush2.msra.mxu0 0.0
      %1725 = vmatprep.subr.mxu0 0.0
      %1726 = vmatpush2.msra.mxu0 0.0
      %1727 = vmatprep.subr.mxu0 0.0
      %1728 = vmatpush2.msra.mxu0 0.0
      %1729 = vmatprep.subr.mxu0 0.0
      %1730 = vmatpush2.msra.mxu0 0.0
      %1731 = vmatprep.subr.mxu0 0.0
      %1732 = vmatpush2.msra.mxu0 0.0
      %1733 = vmatprep.subr.mxu0 0.0
      %1734 = vmatpush2.msra.mxu0 0.0
      %1735 = vmatprep.subr.mxu0 0.0
      %1736 = vmatpush2.msra.mxu0 0.0
      %1737 = vmatprep.subr.mxu0 0.0
      %1738 = vmatpush2.msra.mxu0 0.0
      %1739 = vmatprep.subr.mxu0 0.0
      %1740 = vmatpush2.msra.mxu0 0.0
      %1741 = vmatprep.subr.mxu0 0.0
      %1742 = vmatpush2.msra.mxu0 0.0
      %1743 = vmatprep.subr.mxu0 0.0
      %1744 = vmatpush2.msra.mxu0 0.0
      %1745 = vmatprep.subr.mxu0 0.0
      %1746 = vmatpush2.msra.mxu0 0.0
      %1747 = vmatprep.subr.mxu0 0.0
      %1748 = vmatpush2.msra.mxu0 0.0
      %1749 = vmatprep.subr.mxu0 0.0
      %1750 = vmatpush2.msra.mxu0 0.0
      %1751 = vmatprep.subr.mxu0 0.0
      %1752 = vmatpush2.msra.mxu0 0.0
      %1753 = vmatprep.subr.mxu0 0.0
      %1754 = vmatpush2.msra.mxu0 0.0
      %1755 = vmatprep.mubr.f32.mxu0 0.0
      %1756 = vmatmul.mubr.f32.gmra.mxu0 %v1618
      %v1757 = vpop.f32.mrf.mxu0
      %v1758 = vadd.f32 0.0, %v1757
      %v1759 = vpop.f32.mrf.mxu0
      %1760 = vdwg.mxu0
      %v1761 = vmul.f32 %v1687, %v585
      %v1762 = vmul.f32 %v1689, %v589
      %v1763 = vmul.f32 %v1758, %v593
      %1764 = vst [vmem:[#allocation2 + $0x8] sm:$0xff] %v1761
      %1765 = vst [vmem:[#allocation2 + $0x10] sm:$0xff] %v1762
      %1766 = vst [vmem:[#allocation2 + $0x18] sm:$0xff] %v1763
      %v1767 = vld [vmem:[#allocation2] sm:$0xff]
      %v1768 = vld [vmem:[#allocation2 + $0x8] sm:$0xff]
      %v1769 = vld [vmem:[#allocation2 + $0x10] sm:$0xff]
      %v1770 = vld [vmem:[#allocation2 + $0x18] sm:$0xff]
      %1775 = vrot.lane.b32.xlu0 %v1767, 19
      %v1776 = vpop.permute.xlu0 %1775
      %1777 = vrot.lane.b32.xlu0 %v1768, 19
      %v1778 = vpop.permute.xlu0 %1777
      %1779 = vrot.lane.b32.xlu0 %v1769, 19
      %v1780 = vpop.permute.xlu0 %1779
      %1781 = vrot.lane.b32.xlu0 %v1770, 19
      %v1782 = vpop.permute.xlu0 %1781
      %v1783 = vsel %vm207, %v1776, %v1778
      %v1784 = vsel %vm207, %v1778, %v1780
      %v1785 = vsel %vm207, %v1780, %v1782
      %1789 = vst [vmem:[#allocation3] sm:$0xff] %v1783
      %1790 = vst [vmem:[#allocation3 + $0x8] sm:$0xff] %v1784
      %1791 = vst [vmem:[#allocation3 + $0x10] sm:$0xff] %v1785
      %v1792 = vld [vmem:[#allocation2] sm:$0xff]
      %v1793 = vld [vmem:[#allocation2 + $0x8] sm:$0xff]
      %v1794 = vld [vmem:[#allocation2 + $0x10] sm:$0xff]
      %v1795 = vld [vmem:[#allocation2 + $0x18] sm:$0xff]
      %1800 = vrot.lane.b32.xlu0 %v1792, 18
      %v1801 = vpop.permute.xlu0 %1800
      %1802 = vrot.lane.b32.xlu0 %v1793, 18
      %v1803 = vpop.permute.xlu0 %1802
      %1804 = vrot.lane.b32.xlu0 %v1794, 18
      %v1805 = vpop.permute.xlu0 %1804
      %1806 = vrot.lane.b32.xlu0 %v1795, 18
      %v1807 = vpop.permute.xlu0 %1806
      %v1808 = vsel %vm233, %v1801, %v1803
      %v1809 = vsel %vm233, %v1803, %v1805
      %v1810 = vsel %vm233, %v1805, %v1807
      %1814 = vst [vmem:[#allocation3 + $0x18] sm:$0xff] %v1808
      %1815 = vst [vmem:[#allocation3 + $0x20] sm:$0xff] %v1809
      %1816 = vst [vmem:[#allocation3 + $0x28] sm:$0xff] %v1810
      %v1817 = vld [vmem:[#allocation2] sm:$0xff]
      %v1818 = vld [vmem:[#allocation2 + $0x8] sm:$0xff]
      %v1819 = vld [vmem:[#allocation2 + $0x10] sm:$0xff]
      %v1820 = vld [vmem:[#allocation2 + $0x18] sm:$0xff]
      %1825 = vrot.lane.b32.xlu0 %v1817, 17
      %v1826 = vpop.permute.xlu0 %1825
      %1827 = vrot.lane.b32.xlu0 %v1818, 17
      %v1828 = vpop.permute.xlu0 %1827
      %1829 = vrot.lane.b32.xlu0 %v1819, 17
      %v1830 = vpop.permute.xlu0 %1829
      %1831 = vrot.lane.b32.xlu0 %v1820, 17
      %v1832 = vpop.permute.xlu0 %1831
      %v1833 = vsel %vm259, %v1826, %v1828
      %v1834 = vsel %vm259, %v1828, %v1830
      %v1835 = vsel %vm259, %v1830, %v1832
      %1839 = vst [vmem:[#allocation3 + $0x30] sm:$0xff] %v1833
      %1840 = vst [vmem:[#allocation3 + $0x38] sm:$0xff] %v1834
      %1841 = vst [vmem:[#allocation3 + $0x40] sm:$0xff] %v1835
      %v1842 = vld [vmem:[#allocation2] sm:$0xff]
      %v1843 = vld [vmem:[#allocation2 + $0x8] sm:$0xff]
      %v1844 = vld [vmem:[#allocation2 + $0x10] sm:$0xff]
      %v1845 = vld [vmem:[#allocation2 + $0x18] sm:$0xff]
      %1850 = vrot.lane.b32.xlu0 %v1842, 1
      %v1851 = vpop.permute.xlu0 %1850
      %1852 = vrot.lane.b32.xlu0 %v1843, 1
      %v1853 = vpop.permute.xlu0 %1852
      %1854 = vrot.lane.b32.xlu0 %v1844, 1
      %v1855 = vpop.permute.xlu0 %1854
      %1856 = vrot.lane.b32.xlu0 %v1845, 1
      %v1857 = vpop.permute.xlu0 %1856
      %v1858 = vsel %vm285, %v1851, %v1853
      %v1859 = vsel %vm285, %v1853, %v1855
      %v1860 = vsel %vm285, %v1855, %v1857
      %1864 = vst [vmem:[#allocation3 + $0x48] sm:$0xff] %v1858
      %1865 = vst [vmem:[#allocation3 + $0x50] sm:$0xff] %v1859
      %1866 = vst [vmem:[#allocation3 + $0x58] sm:$0xff] %v1860
      %v1867 = vld [vmem:[#allocation2 + $0x8] sm:$0xff]
      %v1868 = vld [vmem:[#allocation2 + $0x10] sm:$0xff]
      %v1869 = vld [vmem:[#allocation2 + $0x18] sm:$0xff]
      %1870 = vst [vmem:[#allocation3 + $0x60] sm:$0xff] %v1867
      %1871 = vst [vmem:[#allocation3 + $0x68] sm:$0xff] %v1868
      %1872 = vst [vmem:[#allocation3 + $0x70] sm:$0xff] %v1869
      %v1873 = vld [vmem:[#allocation2 + $0x8] sm:$0xff]
      %v1874 = vld [vmem:[#allocation2 + $0x10] sm:$0xff]
      %v1875 = vld [vmem:[#allocation2 + $0x18] sm:$0xff]
      %v1876 = vld [vmem:[#allocation2 + $0x20] sm:$0xff]
      %1881 = vrot.lane.b32.xlu0 %v1873, 127
      %v1882 = vpop.permute.xlu0 %1881
      %1883 = vrot.lane.b32.xlu0 %v1874, 127
      %v1884 = vpop.permute.xlu0 %1883
      %1885 = vrot.lane.b32.xlu0 %v1875, 127
      %v1886 = vpop.permute.xlu0 %1885
      %1887 = vrot.lane.b32.xlu0 %v1876, 127
      %v1888 = vpop.permute.xlu0 %1887
      %v1889 = vsel %vm317, %v1882, %v1884
      %v1890 = vsel %vm317, %v1884, %v1886
      %v1891 = vsel %vm317, %v1886, %v1888
      %1895 = vst [vmem:[#allocation3 + $0x78] sm:$0xff] %v1889
      %1896 = vst [vmem:[#allocation3 + $0x80] sm:$0xff] %v1890
      %1897 = vst [vmem:[#allocation3 + $0x88] sm:$0xff] %v1891
      %v1898 = vld [vmem:[#allocation2 + $0x8] sm:$0xff]
      %v1899 = vld [vmem:[#allocation2 + $0x10] sm:$0xff]
      %v1900 = vld [vmem:[#allocation2 + $0x18] sm:$0xff]
      %v1901 = vld [vmem:[#allocation2 + $0x20] sm:$0xff]
      %1906 = vrot.lane.b32.xlu0 %v1898, 111
      %v1907 = vpop.permute.xlu0 %1906
      %1908 = vrot.lane.b32.xlu0 %v1899, 111
      %v1909 = vpop.permute.xlu0 %1908
      %1910 = vrot.lane.b32.xlu0 %v1900, 111
      %v1911 = vpop.permute.xlu0 %1910
      %1912 = vrot.lane.b32.xlu0 %v1901, 111
      %v1913 = vpop.permute.xlu0 %1912
      %v1914 = vsel %vm343, %v1907, %v1909
      %v1915 = vsel %vm343, %v1909, %v1911
      %v1916 = vsel %vm343, %v1911, %v1913
      %1920 = vst [vmem:[#allocation3 + $0x90] sm:$0xff] %v1914
      %1921 = vst [vmem:[#allocation3 + $0x98] sm:$0xff] %v1915
      %1922 = vst [vmem:[#allocation3 + $0xa0] sm:$0xff] %v1916
      %v1923 = vld [vmem:[#allocation2 + $0x8] sm:$0xff]
      %v1924 = vld [vmem:[#allocation2 + $0x10] sm:$0xff]
      %v1925 = vld [vmem:[#allocation2 + $0x18] sm:$0xff]
      %v1926 = vld [vmem:[#allocation2 + $0x20] sm:$0xff]
      %1931 = vrot.lane.b32.xlu0 %v1923, 110
      %v1932 = vpop.permute.xlu0 %1931
      %1933 = vrot.lane.b32.xlu0 %v1924, 110
      %v1934 = vpop.permute.xlu0 %1933
      %1935 = vrot.lane.b32.xlu0 %v1925, 110
      %v1936 = vpop.permute.xlu0 %1935
      %1937 = vrot.lane.b32.xlu0 %v1926, 110
      %v1938 = vpop.permute.xlu0 %1937
      %v1939 = vsel %vm369, %v1932, %v1934
      %v1940 = vsel %vm369, %v1934, %v1936
      %v1941 = vsel %vm369, %v1936, %v1938
      %1945 = vst [vmem:[#allocation3 + $0xa8] sm:$0xff] %v1939
      %1946 = vst [vmem:[#allocation3 + $0xb0] sm:$0xff] %v1940
      %1947 = vst [vmem:[#allocation3 + $0xb8] sm:$0xff] %v1941
      %v1948 = vld [vmem:[#allocation2 + $0x8] sm:$0xff]
      %v1949 = vld [vmem:[#allocation2 + $0x10] sm:$0xff]
      %v1950 = vld [vmem:[#allocation2 + $0x18] sm:$0xff]
      %v1951 = vld [vmem:[#allocation2 + $0x20] sm:$0xff]
      %1956 = vrot.lane.b32.xlu0 %v1948, 109
      %v1957 = vpop.permute.xlu0 %1956
      %1958 = vrot.lane.b32.xlu0 %v1949, 109
      %v1959 = vpop.permute.xlu0 %1958
      %1960 = vrot.lane.b32.xlu0 %v1950, 109
      %v1961 = vpop.permute.xlu0 %1960
      %1962 = vrot.lane.b32.xlu0 %v1951, 109
      %v1963 = vpop.permute.xlu0 %1962
      %v1964 = vsel %vm395, %v1957, %v1959
      %v1965 = vsel %vm395, %v1959, %v1961
      %v1966 = vsel %vm395, %v1961, %v1963
      %1970 = vst [vmem:[#allocation3 + $0xc0] sm:$0xff] %v1964
      %1971 = vst [vmem:[#allocation3 + $0xc8] sm:$0xff] %v1965
      %1972 = vst [vmem:[#allocation3 + $0xd0] sm:$0xff] %v1966
      %s1973 = scalar_lea.vmem %s1, 32
      %v1974 = vld [vmem:[%s1973] sm:$0xff]
      %v1975 = vld [vmem:[#allocation3] sm:$0xff]
      %v1976 = vld [vmem:[#allocation3 + $0x8] sm:$0xff]
      %v1977 = vld [vmem:[#allocation3 + $0x10] sm:$0xff]
      %v1978 = vld [vmem:[#allocation3 + $0x18] sm:$0xff]
      %v1979 = vld [vmem:[#allocation3 + $0x20] sm:$0xff]
      %v1980 = vld [vmem:[#allocation3 + $0x28] sm:$0xff]
      %v1981 = vld [vmem:[#allocation3 + $0x30] sm:$0xff]
      %v1982 = vld [vmem:[#allocation3 + $0x38] sm:$0xff]
      %v1983 = vld [vmem:[#allocation3 + $0x40] sm:$0xff]
      %v1984 = vld [vmem:[#allocation3 + $0x48] sm:$0xff]
      %v1985 = vld [vmem:[#allocation3 + $0x50] sm:$0xff]
      %v1986 = vld [vmem:[#allocation3 + $0x58] sm:$0xff]
      %v1987 = vld [vmem:[#allocation3 + $0x60] sm:$0xff]
      %v1988 = vld [vmem:[#allocation3 + $0x68] sm:$0xff]
      %v1989 = vld [vmem:[#allocation3 + $0x70] sm:$0xff]
      %v1990 = vld [vmem:[#allocation3 + $0x78] sm:$0xff]
      %v1991 = vld [vmem:[#allocation3 + $0x80] sm:$0xff]
      %v1992 = vld [vmem:[#allocation3 + $0x88] sm:$0xff]
      %v1993 = vld [vmem:[#allocation3 + $0x90] sm:$0xff]
      %v1994 = vld [vmem:[#allocation3 + $0x98] sm:$0xff]
      %v1995 = vld [vmem:[#allocation3 + $0xa0] sm:$0xff]
      %v1996 = vld [vmem:[#allocation3 + $0xa8] sm:$0xff]
      %v1997 = vld [vmem:[#allocation3 + $0xb0] sm:$0xff]
      %v1998 = vld [vmem:[#allocation3 + $0xb8] sm:$0xff]
      %v1999 = vld [vmem:[#allocation3 + $0xc0] sm:$0xff]
      %v2000 = vld [vmem:[#allocation3 + $0xc8] sm:$0xff]
      %v2001 = vld [vmem:[#allocation3 + $0xd0] sm:$0xff]
      %v2002 = vld [vmem:[#allocation3 + $0xd8] sm:$0xff]
      %v2003 = vld [vmem:[#allocation3 + $0xe0] sm:$0xff]
      %v2004 = vld [vmem:[#allocation3 + $0xe8] sm:$0xff]
      %v2006 = vsel %vm436, %v1974, 0
      %2008 = vmatprep.subr.mxu0 0.0
      %2009 = vmatpush1.msra.mxu0 0.0
      %2010 = vmatprep.subr.mxu0 0.0
      %2011 = vmatpush1.msra.mxu0 0.0
      %2012 = vmatprep.subr.mxu0 0.0
      %2013 = vmatpush1.msra.mxu0 0.0
      %2014 = vmatprep.subr.mxu0 0.0
      %2015 = vmatpush1.msra.mxu0 0.0
      %2016 = vmatprep.subr.mxu0 0.0
      %2017 = vmatpush1.msra.mxu0 0.0
      %2018 = vmatprep.subr.mxu0 0.0
      %2019 = vmatpush1.msra.mxu0 0.0
      %2020 = vmatprep.subr.mxu0 %v2003
      %2021 = vmatpush1.msra.mxu0 %v2002
      %2022 = vmatprep.subr.mxu0 %v2000
      %2023 = vmatpush1.msra.mxu0 %v1999
      %2024 = vmatprep.subr.mxu0 %v1997
      %2025 = vmatpush1.msra.mxu0 %v1996
      %2026 = vmatprep.subr.mxu0 %v1994
      %2027 = vmatpush1.msra.mxu0 %v1993
      %2028 = vmatprep.subr.mxu0 %v1991
      %2029 = vmatpush1.msra.mxu0 %v1990
      %2030 = vmatprep.subr.mxu0 %v1988
      %2031 = vmatpush1.msra.mxu0 %v1987
      %2032 = vmatprep.subr.mxu0 %v1985
      %2033 = vmatpush1.msra.mxu0 %v1984
      %2034 = vmatprep.subr.mxu0 %v1982
      %2035 = vmatpush1.msra.mxu0 %v1981
      %2036 = vmatprep.subr.mxu0 %v1979
      %2037 = vmatpush1.msra.mxu0 %v1978
      %2038 = vmatprep.subr.mxu0 %v1976
      %2039 = vmatpush1.msra.mxu0 %v1975
      %2040 = vmatprep.subr.mxu0 0.0
      %2041 = vmatpush2.msra.mxu0 0.0
      %2042 = vmatprep.subr.mxu0 0.0
      %2043 = vmatpush2.msra.mxu0 0.0
      %2044 = vmatprep.subr.mxu0 0.0
      %2045 = vmatpush2.msra.mxu0 0.0
      %2046 = vmatprep.subr.mxu0 0.0
      %2047 = vmatpush2.msra.mxu0 0.0
      %2048 = vmatprep.subr.mxu0 0.0
      %2049 = vmatpush2.msra.mxu0 0.0
      %2050 = vmatprep.subr.mxu0 0.0
      %2051 = vmatpush2.msra.mxu0 0.0
      %2052 = vmatprep.subr.mxu0 0.0
      %2053 = vmatpush2.msra.mxu0 0.0
      %2054 = vmatprep.subr.mxu0 0.0
      %2055 = vmatpush2.msra.mxu0 0.0
      %2056 = vmatprep.subr.mxu0 0.0
      %2057 = vmatpush2.msra.mxu0 0.0
      %2058 = vmatprep.subr.mxu0 0.0
      %2059 = vmatpush2.msra.mxu0 0.0
      %2060 = vmatprep.subr.mxu0 0.0
      %2061 = vmatpush2.msra.mxu0 0.0
      %2062 = vmatprep.subr.mxu0 0.0
      %2063 = vmatpush2.msra.mxu0 0.0
      %2064 = vmatprep.subr.mxu0 0.0
      %2065 = vmatpush2.msra.mxu0 0.0
      %2066 = vmatprep.subr.mxu0 0.0
      %2067 = vmatpush2.msra.mxu0 0.0
      %2068 = vmatprep.subr.mxu0 0.0
      %2069 = vmatpush2.msra.mxu0 0.0
      %2070 = vmatprep.subr.mxu0 0.0
      %2071 = vmatpush2.msra.mxu0 0.0
      %2072 = vmatprep.mubr.f32.mxu0 0.0
      %2073 = vmatmul.mubr.f32.gmra.mxu0 %v2006
      %v2074 = vpop.f32.mrf.mxu0
      %v2075 = vadd.f32 0.0, %v2074
      %v2076 = vpop.f32.mrf.mxu0
      %v2077 = vadd.f32 0.0, %v2076
      %2078 = vdwg.mxu0
      %2079 = vmatprep.subr.mxu0 0.0
      %2080 = vmatpush1.msra.mxu0 0.0
      %2081 = vmatprep.subr.mxu0 0.0
      %2082 = vmatpush1.msra.mxu0 0.0
      %2083 = vmatprep.subr.mxu0 0.0
      %2084 = vmatpush1.msra.mxu0 0.0
      %2085 = vmatprep.subr.mxu0 0.0
      %2086 = vmatpush1.msra.mxu0 0.0
      %2087 = vmatprep.subr.mxu0 0.0
      %2088 = vmatpush1.msra.mxu0 0.0
      %2089 = vmatprep.subr.mxu0 0.0
      %2090 = vmatpush1.msra.mxu0 0.0
      %2091 = vmatprep.subr.mxu0 0.0
      %2092 = vmatpush1.msra.mxu0 %v2004
      %2093 = vmatprep.subr.mxu0 0.0
      %2094 = vmatpush1.msra.mxu0 %v2001
      %2095 = vmatprep.subr.mxu0 0.0
      %2096 = vmatpush1.msra.mxu0 %v1998
      %2097 = vmatprep.subr.mxu0 0.0
      %2098 = vmatpush1.msra.mxu0 %v1995
      %2099 = vmatprep.subr.mxu0 0.0
      %2100 = vmatpush1.msra.mxu0 %v1992
      %2101 = vmatprep.subr.mxu0 0.0
      %2102 = vmatpush1.msra.mxu0 %v1989
      %2103 = vmatprep.subr.mxu0 0.0
      %2104 = vmatpush1.msra.mxu0 %v1986
      %2105 = vmatprep.subr.mxu0 0.0
      %2106 = vmatpush1.msra.mxu0 %v1983
      %2107 = vmatprep.subr.mxu0 0.0
      %2108 = vmatpush1.msra.mxu0 %v1980
      %2109 = vmatprep.subr.mxu0 0.0
      %2110 = vmatpush1.msra.mxu0 %v1977
      %2111 = vmatprep.subr.mxu0 0.0
      %2112 = vmatpush2.msra.mxu0 0.0
      %2113 = vmatprep.subr.mxu0 0.0
      %2114 = vmatpush2.msra.mxu0 0.0
      %2115 = vmatprep.subr.mxu0 0.0
      %2116 = vmatpush2.msra.mxu0 0.0
      %2117 = vmatprep.subr.mxu0 0.0
      %2118 = vmatpush2.msra.mxu0 0.0
      %2119 = vmatprep.subr.mxu0 0.0
      %2120 = vmatpush2.msra.mxu0 0.0
      %2121 = vmatprep.subr.mxu0 0.0
      %2122 = vmatpush2.msra.mxu0 0.0
      %2123 = vmatprep.subr.mxu0 0.0
      %2124 = vmatpush2.msra.mxu0 0.0
      %2125 = vmatprep.subr.mxu0 0.0
      %2126 = vmatpush2.msra.mxu0 0.0
      %2127 = vmatprep.subr.mxu0 0.0
      %2128 = vmatpush2.msra.mxu0 0.0
      %2129 = vmatprep.subr.mxu0 0.0
      %2130 = vmatpush2.msra.mxu0 0.0
      %2131 = vmatprep.subr.mxu0 0.0
      %2132 = vmatpush2.msra.mxu0 0.0
      %2133 = vmatprep.subr.mxu0 0.0
      %2134 = vmatpush2.msra.mxu0 0.0
      %2135 = vmatprep.subr.mxu0 0.0
      %2136 = vmatpush2.msra.mxu0 0.0
      %2137 = vmatprep.subr.mxu0 0.0
      %2138 = vmatpush2.msra.mxu0 0.0
      %2139 = vmatprep.subr.mxu0 0.0
      %2140 = vmatpush2.msra.mxu0 0.0
      %2141 = vmatprep.subr.mxu0 0.0
      %2142 = vmatpush2.msra.mxu0 0.0
      %2143 = vmatprep.mubr.f32.mxu0 0.0
      %2144 = vmatmul.mubr.f32.gmra.mxu0 %v2006
      %v2145 = vpop.f32.mrf.mxu0
      %v2146 = vadd.f32 0.0, %v2145
      %v2147 = vpop.f32.mrf.mxu0
      %2148 = vdwg.mxu0
      %v2149 = vmul.f32 %v2075, %v585
      %v2150 = vmul.f32 %v2077, %v589
      %v2151 = vmul.f32 %v2146, %v593
      %2152 = vst [vmem:[#allocation2 + $0x8] sm:$0xff] %v2149
      %2153 = vst [vmem:[#allocation2 + $0x10] sm:$0xff] %v2150
      %2154 = vst [vmem:[#allocation2 + $0x18] sm:$0xff] %v2151
      %v2155 = vld [vmem:[#allocation2] sm:$0xff]
      %v2156 = vld [vmem:[#allocation2 + $0x8] sm:$0xff]
      %v2157 = vld [vmem:[#allocation2 + $0x10] sm:$0xff]
      %v2158 = vld [vmem:[#allocation2 + $0x18] sm:$0xff]
      %2163 = vrot.lane.b32.xlu0 %v2155, 19
      %v2164 = vpop.permute.xlu0 %2163
      %2165 = vrot.lane.b32.xlu0 %v2156, 19
      %v2166 = vpop.permute.xlu0 %2165
      %2167 = vrot.lane.b32.xlu0 %v2157, 19
      %v2168 = vpop.permute.xlu0 %2167
      %2169 = vrot.lane.b32.xlu0 %v2158, 19
      %v2170 = vpop.permute.xlu0 %2169
      %v2171 = vsel %vm207, %v2164, %v2166
      %v2172 = vsel %vm207, %v2166, %v2168
      %v2173 = vsel %vm207, %v2168, %v2170
      %2177 = vst [vmem:[#allocation3] sm:$0xff] %v2171
      %2178 = vst [vmem:[#allocation3 + $0x8] sm:$0xff] %v2172
      %2179 = vst [vmem:[#allocation3 + $0x10] sm:$0xff] %v2173
      %v2180 = vld [vmem:[#allocation2] sm:$0xff]
      %v2181 = vld [vmem:[#allocation2 + $0x8] sm:$0xff]
      %v2182 = vld [vmem:[#allocation2 + $0x10] sm:$0xff]
      %v2183 = vld [vmem:[#allocation2 + $0x18] sm:$0xff]
      %2188 = vrot.lane.b32.xlu0 %v2180, 18
      %v2189 = vpop.permute.xlu0 %2188
      %2190 = vrot.lane.b32.xlu0 %v2181, 18
      %v2191 = vpop.permute.xlu0 %2190
      %2192 = vrot.lane.b32.xlu0 %v2182, 18
      %v2193 = vpop.permute.xlu0 %2192
      %2194 = vrot.lane.b32.xlu0 %v2183, 18
      %v2195 = vpop.permute.xlu0 %2194
      %v2196 = vsel %vm233, %v2189, %v2191
      %v2197 = vsel %vm233, %v2191, %v2193
      %v2198 = vsel %vm233, %v2193, %v2195
      %2202 = vst [vmem:[#allocation3 + $0x18] sm:$0xff] %v2196
      %2203 = vst [vmem:[#allocation3 + $0x20] sm:$0xff] %v2197
      %2204 = vst [vmem:[#allocation3 + $0x28] sm:$0xff] %v2198
      %v2205 = vld [vmem:[#allocation2] sm:$0xff]
      %v2206 = vld [vmem:[#allocation2 + $0x8] sm:$0xff]
      %v2207 = vld [vmem:[#allocation2 + $0x10] sm:$0xff]
      %v2208 = vld [vmem:[#allocation2 + $0x18] sm:$0xff]
      %2213 = vrot.lane.b32.xlu0 %v2205, 17
      %v2214 = vpop.permute.xlu0 %2213
      %2215 = vrot.lane.b32.xlu0 %v2206, 17
      %v2216 = vpop.permute.xlu0 %2215
      %2217 = vrot.lane.b32.xlu0 %v2207, 17
      %v2218 = vpop.permute.xlu0 %2217
      %2219 = vrot.lane.b32.xlu0 %v2208, 17
      %v2220 = vpop.permute.xlu0 %2219
      %v2221 = vsel %vm259, %v2214, %v2216
      %v2222 = vsel %vm259, %v2216, %v2218
      %v2223 = vsel %vm259, %v2218, %v2220
      %2227 = vst [vmem:[#allocation3 + $0x30] sm:$0xff] %v2221
      %2228 = vst [vmem:[#allocation3 + $0x38] sm:$0xff] %v2222
      %2229 = vst [vmem:[#allocation3 + $0x40] sm:$0xff] %v2223
      %v2230 = vld [vmem:[#allocation2] sm:$0xff]
      %v2231 = vld [vmem:[#allocation2 + $0x8] sm:$0xff]
      %v2232 = vld [vmem:[#allocation2 + $0x10] sm:$0xff]
      %v2233 = vld [vmem:[#allocation2 + $0x18] sm:$0xff]
      %2238 = vrot.lane.b32.xlu0 %v2230, 1
      %v2239 = vpop.permute.xlu0 %2238
      %2240 = vrot.lane.b32.xlu0 %v2231, 1
      %v2241 = vpop.permute.xlu0 %2240
      %2242 = vrot.lane.b32.xlu0 %v2232, 1
      %v2243 = vpop.permute.xlu0 %2242
      %2244 = vrot.lane.b32.xlu0 %v2233, 1
      %v2245 = vpop.permute.xlu0 %2244
      %v2246 = vsel %vm285, %v2239, %v2241
      %v2247 = vsel %vm285, %v2241, %v2243
      %v2248 = vsel %vm285, %v2243, %v2245
      %2252 = vst [vmem:[#allocation3 + $0x48] sm:$0xff] %v2246
      %2253 = vst [vmem:[#allocation3 + $0x50] sm:$0xff] %v2247
      %2254 = vst [vmem:[#allocation3 + $0x58] sm:$0xff] %v2248
      %v2255 = vld [vmem:[#allocation2 + $0x8] sm:$0xff]
      %v2256 = vld [vmem:[#allocation2 + $0x10] sm:$0xff]
      %v2257 = vld [vmem:[#allocation2 + $0x18] sm:$0xff]
      %2258 = vst [vmem:[#allocation3 + $0x60] sm:$0xff] %v2255
      %2259 = vst [vmem:[#allocation3 + $0x68] sm:$0xff] %v2256
      %2260 = vst [vmem:[#allocation3 + $0x70] sm:$0xff] %v2257
      %v2261 = vld [vmem:[#allocation2 + $0x8] sm:$0xff]
      %v2262 = vld [vmem:[#allocation2 + $0x10] sm:$0xff]
      %v2263 = vld [vmem:[#allocation2 + $0x18] sm:$0xff]
      %v2264 = vld [vmem:[#allocation2 + $0x20] sm:$0xff]
      %2269 = vrot.lane.b32.xlu0 %v2261, 127
      %v2270 = vpop.permute.xlu0 %2269
      %2271 = vrot.lane.b32.xlu0 %v2262, 127
      %v2272 = vpop.permute.xlu0 %2271
      %2273 = vrot.lane.b32.xlu0 %v2263, 127
      %v2274 = vpop.permute.xlu0 %2273
      %2275 = vrot.lane.b32.xlu0 %v2264, 127
      %v2276 = vpop.permute.xlu0 %2275
      %v2277 = vsel %vm317, %v2270, %v2272
      %v2278 = vsel %vm317, %v2272, %v2274
      %v2279 = vsel %vm317, %v2274, %v2276
      %2283 = vst [vmem:[#allocation3 + $0x78] sm:$0xff] %v2277
      %2284 = vst [vmem:[#allocation3 + $0x80] sm:$0xff] %v2278
      %2285 = vst [vmem:[#allocation3 + $0x88] sm:$0xff] %v2279
      %v2286 = vld [vmem:[#allocation2 + $0x8] sm:$0xff]
      %v2287 = vld [vmem:[#allocation2 + $0x10] sm:$0xff]
      %v2288 = vld [vmem:[#allocation2 + $0x18] sm:$0xff]
      %v2289 = vld [vmem:[#allocation2 + $0x20] sm:$0xff]
      %2294 = vrot.lane.b32.xlu0 %v2286, 111
      %v2295 = vpop.permute.xlu0 %2294
      %2296 = vrot.lane.b32.xlu0 %v2287, 111
      %v2297 = vpop.permute.xlu0 %2296
      %2298 = vrot.lane.b32.xlu0 %v2288, 111
      %v2299 = vpop.permute.xlu0 %2298
      %2300 = vrot.lane.b32.xlu0 %v2289, 111
      %v2301 = vpop.permute.xlu0 %2300
      %v2302 = vsel %vm343, %v2295, %v2297
      %v2303 = vsel %vm343, %v2297, %v2299
      %v2304 = vsel %vm343, %v2299, %v2301
      %2308 = vst [vmem:[#allocation3 + $0x90] sm:$0xff] %v2302
      %2309 = vst [vmem:[#allocation3 + $0x98] sm:$0xff] %v2303
      %2310 = vst [vmem:[#allocation3 + $0xa0] sm:$0xff] %v2304
      %v2311 = vld [vmem:[#allocation2 + $0x8] sm:$0xff]
      %v2312 = vld [vmem:[#allocation2 + $0x10] sm:$0xff]
      %v2313 = vld [vmem:[#allocation2 + $0x18] sm:$0xff]
      %v2314 = vld [vmem:[#allocation2 + $0x20] sm:$0xff]
      %2319 = vrot.lane.b32.xlu0 %v2311, 110
      %v2320 = vpop.permute.xlu0 %2319
      %2321 = vrot.lane.b32.xlu0 %v2312, 110
      %v2322 = vpop.permute.xlu0 %2321
      %2323 = vrot.lane.b32.xlu0 %v2313, 110
      %v2324 = vpop.permute.xlu0 %2323
      %2325 = vrot.lane.b32.xlu0 %v2314, 110
      %v2326 = vpop.permute.xlu0 %2325
      %v2327 = vsel %vm369, %v2320, %v2322
      %v2328 = vsel %vm369, %v2322, %v2324
      %v2329 = vsel %vm369, %v2324, %v2326
      %2333 = vst [vmem:[#allocation3 + $0xa8] sm:$0xff] %v2327
      %2334 = vst [vmem:[#allocation3 + $0xb0] sm:$0xff] %v2328
      %2335 = vst [vmem:[#allocation3 + $0xb8] sm:$0xff] %v2329
      %v2336 = vld [vmem:[#allocation2 + $0x8] sm:$0xff]
      %v2337 = vld [vmem:[#allocation2 + $0x10] sm:$0xff]
      %v2338 = vld [vmem:[#allocation2 + $0x18] sm:$0xff]
      %v2339 = vld [vmem:[#allocation2 + $0x20] sm:$0xff]
      %2344 = vrot.lane.b32.xlu0 %v2336, 109
      %v2345 = vpop.permute.xlu0 %2344
      %2346 = vrot.lane.b32.xlu0 %v2337, 109
      %v2347 = vpop.permute.xlu0 %2346
      %2348 = vrot.lane.b32.xlu0 %v2338, 109
      %v2349 = vpop.permute.xlu0 %2348
      %2350 = vrot.lane.b32.xlu0 %v2339, 109
      %v2351 = vpop.permute.xlu0 %2350
      %v2352 = vsel %vm395, %v2345, %v2347
      %v2353 = vsel %vm395, %v2347, %v2349
      %v2354 = vsel %vm395, %v2349, %v2351
      %2358 = vst [vmem:[#allocation3 + $0xc0] sm:$0xff] %v2352
      %2359 = vst [vmem:[#allocation3 + $0xc8] sm:$0xff] %v2353
      %2360 = vst [vmem:[#allocation3 + $0xd0] sm:$0xff] %v2354
      %s2361 = scalar_lea.vmem %s1, 40
      %v2362 = vld [vmem:[%s2361] sm:$0xff]
      %v2363 = vld [vmem:[#allocation3] sm:$0xff]
      %v2364 = vld [vmem:[#allocation3 + $0x8] sm:$0xff]
      %v2365 = vld [vmem:[#allocation3 + $0x10] sm:$0xff]
      %v2366 = vld [vmem:[#allocation3 + $0x18] sm:$0xff]
      %v2367 = vld [vmem:[#allocation3 + $0x20] sm:$0xff]
      %v2368 = vld [vmem:[#allocation3 + $0x28] sm:$0xff]
      %v2369 = vld [vmem:[#allocation3 + $0x30] sm:$0xff]
      %v2370 = vld [vmem:[#allocation3 + $0x38] sm:$0xff]
      %v2371 = vld [vmem:[#allocation3 + $0x40] sm:$0xff]
      %v2372 = vld [vmem:[#allocation3 + $0x48] sm:$0xff]
      %v2373 = vld [vmem:[#allocation3 + $0x50] sm:$0xff]
      %v2374 = vld [vmem:[#allocation3 + $0x58] sm:$0xff]
      %v2375 = vld [vmem:[#allocation3 + $0x60] sm:$0xff]
      %v2376 = vld [vmem:[#allocation3 + $0x68] sm:$0xff]
      %v2377 = vld [vmem:[#allocation3 + $0x70] sm:$0xff]
      %v2378 = vld [vmem:[#allocation3 + $0x78] sm:$0xff]
      %v2379 = vld [vmem:[#allocation3 + $0x80] sm:$0xff]
      %v2380 = vld [vmem:[#allocation3 + $0x88] sm:$0xff]
      %v2381 = vld [vmem:[#allocation3 + $0x90] sm:$0xff]
      %v2382 = vld [vmem:[#allocation3 + $0x98] sm:$0xff]
      %v2383 = vld [vmem:[#allocation3 + $0xa0] sm:$0xff]
      %v2384 = vld [vmem:[#allocation3 + $0xa8] sm:$0xff]
      %v2385 = vld [vmem:[#allocation3 + $0xb0] sm:$0xff]
      %v2386 = vld [vmem:[#allocation3 + $0xb8] sm:$0xff]
      %v2387 = vld [vmem:[#allocation3 + $0xc0] sm:$0xff]
      %v2388 = vld [vmem:[#allocation3 + $0xc8] sm:$0xff]
      %v2389 = vld [vmem:[#allocation3 + $0xd0] sm:$0xff]
      %v2390 = vld [vmem:[#allocation3 + $0xd8] sm:$0xff]
      %v2391 = vld [vmem:[#allocation3 + $0xe0] sm:$0xff]
      %v2392 = vld [vmem:[#allocation3 + $0xe8] sm:$0xff]
      %v2394 = vsel %vm436, %v2362, 0
      %2396 = vmatprep.subr.mxu0 0.0
      %2397 = vmatpush1.msra.mxu0 0.0
      %2398 = vmatprep.subr.mxu0 0.0
      %2399 = vmatpush1.msra.mxu0 0.0
      %2400 = vmatprep.subr.mxu0 0.0
      %2401 = vmatpush1.msra.mxu0 0.0
      %2402 = vmatprep.subr.mxu0 0.0
      %2403 = vmatpush1.msra.mxu0 0.0
      %2404 = vmatprep.subr.mxu0 0.0
      %2405 = vmatpush1.msra.mxu0 0.0
      %2406 = vmatprep.subr.mxu0 0.0
      %2407 = vmatpush1.msra.mxu0 0.0
      %2408 = vmatprep.subr.mxu0 %v2391
      %2409 = vmatpush1.msra.mxu0 %v2390
      %2410 = vmatprep.subr.mxu0 %v2388
      %2411 = vmatpush1.msra.mxu0 %v2387
      %2412 = vmatprep.subr.mxu0 %v2385
      %2413 = vmatpush1.msra.mxu0 %v2384
      %2414 = vmatprep.subr.mxu0 %v2382
      %2415 = vmatpush1.msra.mxu0 %v2381
      %2416 = vmatprep.subr.mxu0 %v2379
      %2417 = vmatpush1.msra.mxu0 %v2378
      %2418 = vmatprep.subr.mxu0 %v2376
      %2419 = vmatpush1.msra.mxu0 %v2375
      %2420 = vmatprep.subr.mxu0 %v2373
      %2421 = vmatpush1.msra.mxu0 %v2372
      %2422 = vmatprep.subr.mxu0 %v2370
      %2423 = vmatpush1.msra.mxu0 %v2369
      %2424 = vmatprep.subr.mxu0 %v2367
      %2425 = vmatpush1.msra.mxu0 %v2366
      %2426 = vmatprep.subr.mxu0 %v2364
      %2427 = vmatpush1.msra.mxu0 %v2363
      %2428 = vmatprep.subr.mxu0 0.0
      %2429 = vmatpush2.msra.mxu0 0.0
      %2430 = vmatprep.subr.mxu0 0.0
      %2431 = vmatpush2.msra.mxu0 0.0
      %2432 = vmatprep.subr.mxu0 0.0
      %2433 = vmatpush2.msra.mxu0 0.0
      %2434 = vmatprep.subr.mxu0 0.0
      %2435 = vmatpush2.msra.mxu0 0.0
      %2436 = vmatprep.subr.mxu0 0.0
      %2437 = vmatpush2.msra.mxu0 0.0
      %2438 = vmatprep.subr.mxu0 0.0
      %2439 = vmatpush2.msra.mxu0 0.0
      %2440 = vmatprep.subr.mxu0 0.0
      %2441 = vmatpush2.msra.mxu0 0.0
      %2442 = vmatprep.subr.mxu0 0.0
      %2443 = vmatpush2.msra.mxu0 0.0
      %2444 = vmatprep.subr.mxu0 0.0
      %2445 = vmatpush2.msra.mxu0 0.0
      %2446 = vmatprep.subr.mxu0 0.0
      %2447 = vmatpush2.msra.mxu0 0.0
      %2448 = vmatprep.subr.mxu0 0.0
      %2449 = vmatpush2.msra.mxu0 0.0
      %2450 = vmatprep.subr.mxu0 0.0
      %2451 = vmatpush2.msra.mxu0 0.0
      %2452 = vmatprep.subr.mxu0 0.0
      %2453 = vmatpush2.msra.mxu0 0.0
      %2454 = vmatprep.subr.mxu0 0.0
      %2455 = vmatpush2.msra.mxu0 0.0
      %2456 = vmatprep.subr.mxu0 0.0
      %2457 = vmatpush2.msra.mxu0 0.0
      %2458 = vmatprep.subr.mxu0 0.0
      %2459 = vmatpush2.msra.mxu0 0.0
      %2460 = vmatprep.mubr.f32.mxu0 0.0
      %2461 = vmatmul.mubr.f32.gmra.mxu0 %v2394
      %v2462 = vpop.f32.mrf.mxu0
      %v2463 = vadd.f32 0.0, %v2462
      %v2464 = vpop.f32.mrf.mxu0
      %v2465 = vadd.f32 0.0, %v2464
      %2466 = vdwg.mxu0
      %2467 = vmatprep.subr.mxu0 0.0
      %2468 = vmatpush1.msra.mxu0 0.0
      %2469 = vmatprep.subr.mxu0 0.0
      %2470 = vmatpush1.msra.mxu0 0.0
      %2471 = vmatprep.subr.mxu0 0.0
      %2472 = vmatpush1.msra.mxu0 0.0
      %2473 = vmatprep.subr.mxu0 0.0
      %2474 = vmatpush1.msra.mxu0 0.0
      %2475 = vmatprep.subr.mxu0 0.0
      %2476 = vmatpush1.msra.mxu0 0.0
      %2477 = vmatprep.subr.mxu0 0.0
      %2478 = vmatpush1.msra.mxu0 0.0
      %2479 = vmatprep.subr.mxu0 0.0
      %2480 = vmatpush1.msra.mxu0 %v2392
      %2481 = vmatprep.subr.mxu0 0.0
      %2482 = vmatpush1.msra.mxu0 %v2389
      %2483 = vmatprep.subr.mxu0 0.0
      %2484 = vmatpush1.msra.mxu0 %v2386
      %2485 = vmatprep.subr.mxu0 0.0
      %2486 = vmatpush1.msra.mxu0 %v2383
      %2487 = vmatprep.subr.mxu0 0.0
      %2488 = vmatpush1.msra.mxu0 %v2380
      %2489 = vmatprep.subr.mxu0 0.0
      %2490 = vmatpush1.msra.mxu0 %v2377
      %2491 = vmatprep.subr.mxu0 0.0
      %2492 = vmatpush1.msra.mxu0 %v2374
      %2493 = vmatprep.subr.mxu0 0.0
      %2494 = vmatpush1.msra.mxu0 %v2371
      %2495 = vmatprep.subr.mxu0 0.0
      %2496 = vmatpush1.msra.mxu0 %v2368
      %2497 = vmatprep.subr.mxu0 0.0
      %2498 = vmatpush1.msra.mxu0 %v2365
      %2499 = vmatprep.subr.mxu0 0.0
      %2500 = vmatpush2.msra.mxu0 0.0
      %2501 = vmatprep.subr.mxu0 0.0
      %2502 = vmatpush2.msra.mxu0 0.0
      %2503 = vmatprep.subr.mxu0 0.0
      %2504 = vmatpush2.msra.mxu0 0.0
      %2505 = vmatprep.subr.mxu0 0.0
      %2506 = vmatpush2.msra.mxu0 0.0
      %2507 = vmatprep.subr.mxu0 0.0
      %2508 = vmatpush2.msra.mxu0 0.0
      %2509 = vmatprep.subr.mxu0 0.0
      %2510 = vmatpush2.msra.mxu0 0.0
      %2511 = vmatprep.subr.mxu0 0.0
      %2512 = vmatpush2.msra.mxu0 0.0
      %2513 = vmatprep.subr.mxu0 0.0
      %2514 = vmatpush2.msra.mxu0 0.0
      %2515 = vmatprep.subr.mxu0 0.0
      %2516 = vmatpush2.msra.mxu0 0.0
      %2517 = vmatprep.subr.mxu0 0.0
      %2518 = vmatpush2.msra.mxu0 0.0
      %2519 = vmatprep.subr.mxu0 0.0
      %2520 = vmatpush2.msra.mxu0 0.0
      %2521 = vmatprep.subr.mxu0 0.0
      %2522 = vmatpush2.msra.mxu0 0.0
      %2523 = vmatprep.subr.mxu0 0.0
      %2524 = vmatpush2.msra.mxu0 0.0
      %2525 = vmatprep.subr.mxu0 0.0
      %2526 = vmatpush2.msra.mxu0 0.0
      %2527 = vmatprep.subr.mxu0 0.0
      %2528 = vmatpush2.msra.mxu0 0.0
      %2529 = vmatprep.subr.mxu0 0.0
      %2530 = vmatpush2.msra.mxu0 0.0
      %2531 = vmatprep.mubr.f32.mxu0 0.0
      %2532 = vmatmul.mubr.f32.gmra.mxu0 %v2394
      %v2533 = vpop.f32.mrf.mxu0
      %v2534 = vadd.f32 0.0, %v2533
      %v2535 = vpop.f32.mrf.mxu0
      %2536 = vdwg.mxu0
      %v2537 = vmul.f32 %v2463, %v585
      %v2538 = vmul.f32 %v2465, %v589
      %v2539 = vmul.f32 %v2534, %v593
      %2540 = vst [vmem:[#allocation2 + $0x8] sm:$0xff] %v2537
      %2541 = vst [vmem:[#allocation2 + $0x10] sm:$0xff] %v2538
      %2542 = vst [vmem:[#allocation2 + $0x18] sm:$0xff] %v2539
      %v2543 = vld [vmem:[#allocation2] sm:$0xff]
      %v2544 = vld [vmem:[#allocation2 + $0x8] sm:$0xff]
      %v2545 = vld [vmem:[#allocation2 + $0x10] sm:$0xff]
      %v2546 = vld [vmem:[#allocation2 + $0x18] sm:$0xff]
      %2551 = vrot.lane.b32.xlu0 %v2543, 19
      %v2552 = vpop.permute.xlu0 %2551
      %2553 = vrot.lane.b32.xlu0 %v2544, 19
      %v2554 = vpop.permute.xlu0 %2553
      %2555 = vrot.lane.b32.xlu0 %v2545, 19
      %v2556 = vpop.permute.xlu0 %2555
      %2557 = vrot.lane.b32.xlu0 %v2546, 19
      %v2558 = vpop.permute.xlu0 %2557
      %v2559 = vsel %vm207, %v2552, %v2554
      %v2560 = vsel %vm207, %v2554, %v2556
      %v2561 = vsel %vm207, %v2556, %v2558
      %2565 = vst [vmem:[#allocation3] sm:$0xff] %v2559
      %2566 = vst [vmem:[#allocation3 + $0x8] sm:$0xff] %v2560
      %2567 = vst [vmem:[#allocation3 + $0x10] sm:$0xff] %v2561
      %v2568 = vld [vmem:[#allocation2] sm:$0xff]
      %v2569 = vld [vmem:[#allocation2 + $0x8] sm:$0xff]
      %v2570 = vld [vmem:[#allocation2 + $0x10] sm:$0xff]
      %v2571 = vld [vmem:[#allocation2 + $0x18] sm:$0xff]
      %2576 = vrot.lane.b32.xlu0 %v2568, 18
      %v2577 = vpop.permute.xlu0 %2576
      %2578 = vrot.lane.b32.xlu0 %v2569, 18
      %v2579 = vpop.permute.xlu0 %2578
      %2580 = vrot.lane.b32.xlu0 %v2570, 18
      %v2581 = vpop.permute.xlu0 %2580
      %2582 = vrot.lane.b32.xlu0 %v2571, 18
      %v2583 = vpop.permute.xlu0 %2582
      %v2584 = vsel %vm233, %v2577, %v2579
      %v2585 = vsel %vm233, %v2579, %v2581
      %v2586 = vsel %vm233, %v2581, %v2583
      %2590 = vst [vmem:[#allocation3 + $0x18] sm:$0xff] %v2584
      %2591 = vst [vmem:[#allocation3 + $0x20] sm:$0xff] %v2585
      %2592 = vst [vmem:[#allocation3 + $0x28] sm:$0xff] %v2586
      %v2593 = vld [vmem:[#allocation2] sm:$0xff]
      %v2594 = vld [vmem:[#allocation2 + $0x8] sm:$0xff]
      %v2595 = vld [vmem:[#allocation2 + $0x10] sm:$0xff]
      %v2596 = vld [vmem:[#allocation2 + $0x18] sm:$0xff]
      %2601 = vrot.lane.b32.xlu0 %v2593, 17
      %v2602 = vpop.permute.xlu0 %2601
      %2603 = vrot.lane.b32.xlu0 %v2594, 17
      %v2604 = vpop.permute.xlu0 %2603
      %2605 = vrot.lane.b32.xlu0 %v2595, 17
      %v2606 = vpop.permute.xlu0 %2605
      %2607 = vrot.lane.b32.xlu0 %v2596, 17
      %v2608 = vpop.permute.xlu0 %2607
      %v2609 = vsel %vm259, %v2602, %v2604
      %v2610 = vsel %vm259, %v2604, %v2606
      %v2611 = vsel %vm259, %v2606, %v2608
      %2615 = vst [vmem:[#allocation3 + $0x30] sm:$0xff] %v2609
      %2616 = vst [vmem:[#allocation3 + $0x38] sm:$0xff] %v2610
      %2617 = vst [vmem:[#allocation3 + $0x40] sm:$0xff] %v2611
      %v2618 = vld [vmem:[#allocation2] sm:$0xff]
      %v2619 = vld [vmem:[#allocation2 + $0x8] sm:$0xff]
      %v2620 = vld [vmem:[#allocation2 + $0x10] sm:$0xff]
      %v2621 = vld [vmem:[#allocation2 + $0x18] sm:$0xff]
      %2626 = vrot.lane.b32.xlu0 %v2618, 1
      %v2627 = vpop.permute.xlu0 %2626
      %2628 = vrot.lane.b32.xlu0 %v2619, 1
      %v2629 = vpop.permute.xlu0 %2628
      %2630 = vrot.lane.b32.xlu0 %v2620, 1
      %v2631 = vpop.permute.xlu0 %2630
      %2632 = vrot.lane.b32.xlu0 %v2621, 1
      %v2633 = vpop.permute.xlu0 %2632
      %v2634 = vsel %vm285, %v2627, %v2629
      %v2635 = vsel %vm285, %v2629, %v2631
      %v2636 = vsel %vm285, %v2631, %v2633
      %2640 = vst [vmem:[#allocation3 + $0x48] sm:$0xff] %v2634
      %2641 = vst [vmem:[#allocation3 + $0x50] sm:$0xff] %v2635
      %2642 = vst [vmem:[#allocation3 + $0x58] sm:$0xff] %v2636
      %v2643 = vld [vmem:[#allocation2 + $0x8] sm:$0xff]
      %v2644 = vld [vmem:[#allocation2 + $0x10] sm:$0xff]
      %v2645 = vld [vmem:[#allocation2 + $0x18] sm:$0xff]
      %2646 = vst [vmem:[#allocation3 + $0x60] sm:$0xff] %v2643
      %2647 = vst [vmem:[#allocation3 + $0x68] sm:$0xff] %v2644
      %2648 = vst [vmem:[#allocation3 + $0x70] sm:$0xff] %v2645
      %v2649 = vld [vmem:[#allocation2 + $0x8] sm:$0xff]
      %v2650 = vld [vmem:[#allocation2 + $0x10] sm:$0xff]
      %v2651 = vld [vmem:[#allocation2 + $0x18] sm:$0xff]
      %v2652 = vld [vmem:[#allocation2 + $0x20] sm:$0xff]
      %2657 = vrot.lane.b32.xlu0 %v2649, 127
      %v2658 = vpop.permute.xlu0 %2657
      %2659 = vrot.lane.b32.xlu0 %v2650, 127
      %v2660 = vpop.permute.xlu0 %2659
      %2661 = vrot.lane.b32.xlu0 %v2651, 127
      %v2662 = vpop.permute.xlu0 %2661
      %2663 = vrot.lane.b32.xlu0 %v2652, 127
      %v2664 = vpop.permute.xlu0 %2663
      %v2665 = vsel %vm317, %v2658, %v2660
      %v2666 = vsel %vm317, %v2660, %v2662
      %v2667 = vsel %vm317, %v2662, %v2664
      %2671 = vst [vmem:[#allocation3 + $0x78] sm:$0xff] %v2665
      %2672 = vst [vmem:[#allocation3 + $0x80] sm:$0xff] %v2666
      %2673 = vst [vmem:[#allocation3 + $0x88] sm:$0xff] %v2667
      %v2674 = vld [vmem:[#allocation2 + $0x8] sm:$0xff]
      %v2675 = vld [vmem:[#allocation2 + $0x10] sm:$0xff]
      %v2676 = vld [vmem:[#allocation2 + $0x18] sm:$0xff]
      %v2677 = vld [vmem:[#allocation2 + $0x20] sm:$0xff]
      %2682 = vrot.lane.b32.xlu0 %v2674, 111
      %v2683 = vpop.permute.xlu0 %2682
      %2684 = vrot.lane.b32.xlu0 %v2675, 111
      %v2685 = vpop.permute.xlu0 %2684
      %2686 = vrot.lane.b32.xlu0 %v2676, 111
      %v2687 = vpop.permute.xlu0 %2686
      %2688 = vrot.lane.b32.xlu0 %v2677, 111
      %v2689 = vpop.permute.xlu0 %2688
      %v2690 = vsel %vm343, %v2683, %v2685
      %v2691 = vsel %vm343, %v2685, %v2687
      %v2692 = vsel %vm343, %v2687, %v2689
      %2696 = vst [vmem:[#allocation3 + $0x90] sm:$0xff] %v2690
      %2697 = vst [vmem:[#allocation3 + $0x98] sm:$0xff] %v2691
      %2698 = vst [vmem:[#allocation3 + $0xa0] sm:$0xff] %v2692
      %v2699 = vld [vmem:[#allocation2 + $0x8] sm:$0xff]
      %v2700 = vld [vmem:[#allocation2 + $0x10] sm:$0xff]
      %v2701 = vld [vmem:[#allocation2 + $0x18] sm:$0xff]
      %v2702 = vld [vmem:[#allocation2 + $0x20] sm:$0xff]
      %2707 = vrot.lane.b32.xlu0 %v2699, 110
      %v2708 = vpop.permute.xlu0 %2707
      %2709 = vrot.lane.b32.xlu0 %v2700, 110
      %v2710 = vpop.permute.xlu0 %2709
      %2711 = vrot.lane.b32.xlu0 %v2701, 110
      %v2712 = vpop.permute.xlu0 %2711
      %2713 = vrot.lane.b32.xlu0 %v2702, 110
      %v2714 = vpop.permute.xlu0 %2713
      %v2715 = vsel %vm369, %v2708, %v2710
      %v2716 = vsel %vm369, %v2710, %v2712
      %v2717 = vsel %vm369, %v2712, %v2714
      %2721 = vst [vmem:[#allocation3 + $0xa8] sm:$0xff] %v2715
      %2722 = vst [vmem:[#allocation3 + $0xb0] sm:$0xff] %v2716
      %2723 = vst [vmem:[#allocation3 + $0xb8] sm:$0xff] %v2717
      %v2724 = vld [vmem:[#allocation2 + $0x8] sm:$0xff]
      %v2725 = vld [vmem:[#allocation2 + $0x10] sm:$0xff]
      %v2726 = vld [vmem:[#allocation2 + $0x18] sm:$0xff]
      %v2727 = vld [vmem:[#allocation2 + $0x20] sm:$0xff]
      %2732 = vrot.lane.b32.xlu0 %v2724, 109
      %v2733 = vpop.permute.xlu0 %2732
      %2734 = vrot.lane.b32.xlu0 %v2725, 109
      %v2735 = vpop.permute.xlu0 %2734
      %2736 = vrot.lane.b32.xlu0 %v2726, 109
      %v2737 = vpop.permute.xlu0 %2736
      %2738 = vrot.lane.b32.xlu0 %v2727, 109
      %v2739 = vpop.permute.xlu0 %2738
      %v2740 = vsel %vm395, %v2733, %v2735
      %v2741 = vsel %vm395, %v2735, %v2737
      %v2742 = vsel %vm395, %v2737, %v2739
      %2746 = vst [vmem:[#allocation3 + $0xc0] sm:$0xff] %v2740
      %2747 = vst [vmem:[#allocation3 + $0xc8] sm:$0xff] %v2741
      %2748 = vst [vmem:[#allocation3 + $0xd0] sm:$0xff] %v2742
      %s2749 = scalar_lea.vmem %s1, 48
      %v2750 = vld [vmem:[%s2749] sm:$0xff]
      %v2751 = vld [vmem:[#allocation3] sm:$0xff]
      %v2752 = vld [vmem:[#allocation3 + $0x8] sm:$0xff]
      %v2753 = vld [vmem:[#allocation3 + $0x10] sm:$0xff]
      %v2754 = vld [vmem:[#allocation3 + $0x18] sm:$0xff]
      %v2755 = vld [vmem:[#allocation3 + $0x20] sm:$0xff]
      %v2756 = vld [vmem:[#allocation3 + $0x28] sm:$0xff]
      %v2757 = vld [vmem:[#allocation3 + $0x30] sm:$0xff]
      %v2758 = vld [vmem:[#allocation3 + $0x38] sm:$0xff]
      %v2759 = vld [vmem:[#allocation3 + $0x40] sm:$0xff]
      %v2760 = vld [vmem:[#allocation3 + $0x48] sm:$0xff]
      %v2761 = vld [vmem:[#allocation3 + $0x50] sm:$0xff]
      %v2762 = vld [vmem:[#allocation3 + $0x58] sm:$0xff]
      %v2763 = vld [vmem:[#allocation3 + $0x60] sm:$0xff]
      %v2764 = vld [vmem:[#allocation3 + $0x68] sm:$0xff]
      %v2765 = vld [vmem:[#allocation3 + $0x70] sm:$0xff]
      %v2766 = vld [vmem:[#allocation3 + $0x78] sm:$0xff]
      %v2767 = vld [vmem:[#allocation3 + $0x80] sm:$0xff]
      %v2768 = vld [vmem:[#allocation3 + $0x88] sm:$0xff]
      %v2769 = vld [vmem:[#allocation3 + $0x90] sm:$0xff]
      %v2770 = vld [vmem:[#allocation3 + $0x98] sm:$0xff]
      %v2771 = vld [vmem:[#allocation3 + $0xa0] sm:$0xff]
      %v2772 = vld [vmem:[#allocation3 + $0xa8] sm:$0xff]
      %v2773 = vld [vmem:[#allocation3 + $0xb0] sm:$0xff]
      %v2774 = vld [vmem:[#allocation3 + $0xb8] sm:$0xff]
      %v2775 = vld [vmem:[#allocation3 + $0xc0] sm:$0xff]
      %v2776 = vld [vmem:[#allocation3 + $0xc8] sm:$0xff]
      %v2777 = vld [vmem:[#allocation3 + $0xd0] sm:$0xff]
      %v2778 = vld [vmem:[#allocation3 + $0xd8] sm:$0xff]
      %v2779 = vld [vmem:[#allocation3 + $0xe0] sm:$0xff]
      %v2780 = vld [vmem:[#allocation3 + $0xe8] sm:$0xff]
      %v2782 = vsel %vm436, %v2750, 0
      %2784 = vmatprep.subr.mxu0 0.0
      %2785 = vmatpush1.msra.mxu0 0.0
      %2786 = vmatprep.subr.mxu0 0.0
      %2787 = vmatpush1.msra.mxu0 0.0
      %2788 = vmatprep.subr.mxu0 0.0
      %2789 = vmatpush1.msra.mxu0 0.0
      %2790 = vmatprep.subr.mxu0 0.0
      %2791 = vmatpush1.msra.mxu0 0.0
      %2792 = vmatprep.subr.mxu0 0.0
      %2793 = vmatpush1.msra.mxu0 0.0
      %2794 = vmatprep.subr.mxu0 0.0
      %2795 = vmatpush1.msra.mxu0 0.0
      %2796 = vmatprep.subr.mxu0 %v2779
      %2797 = vmatpush1.msra.mxu0 %v2778
      %2798 = vmatprep.subr.mxu0 %v2776
      %2799 = vmatpush1.msra.mxu0 %v2775
      %2800 = vmatprep.subr.mxu0 %v2773
      %2801 = vmatpush1.msra.mxu0 %v2772
      %2802 = vmatprep.subr.mxu0 %v2770
      %2803 = vmatpush1.msra.mxu0 %v2769
      %2804 = vmatprep.subr.mxu0 %v2767
      %2805 = vmatpush1.msra.mxu0 %v2766
      %2806 = vmatprep.subr.mxu0 %v2764
      %2807 = vmatpush1.msra.mxu0 %v2763
      %2808 = vmatprep.subr.mxu0 %v2761
      %2809 = vmatpush1.msra.mxu0 %v2760
      %2810 = vmatprep.subr.mxu0 %v2758
      %2811 = vmatpush1.msra.mxu0 %v2757
      %2812 = vmatprep.subr.mxu0 %v2755
      %2813 = vmatpush1.msra.mxu0 %v2754
      %2814 = vmatprep.subr.mxu0 %v2752
      %2815 = vmatpush1.msra.mxu0 %v2751
      %2816 = vmatprep.subr.mxu0 0.0
      %2817 = vmatpush2.msra.mxu0 0.0
      %2818 = vmatprep.subr.mxu0 0.0
      %2819 = vmatpush2.msra.mxu0 0.0
      %2820 = vmatprep.subr.mxu0 0.0
      %2821 = vmatpush2.msra.mxu0 0.0
      %2822 = vmatprep.subr.mxu0 0.0
      %2823 = vmatpush2.msra.mxu0 0.0
      %2824 = vmatprep.subr.mxu0 0.0
      %2825 = vmatpush2.msra.mxu0 0.0
      %2826 = vmatprep.subr.mxu0 0.0
      %2827 = vmatpush2.msra.mxu0 0.0
      %2828 = vmatprep.subr.mxu0 0.0
      %2829 = vmatpush2.msra.mxu0 0.0
      %2830 = vmatprep.subr.mxu0 0.0
      %2831 = vmatpush2.msra.mxu0 0.0
      %2832 = vmatprep.subr.mxu0 0.0
      %2833 = vmatpush2.msra.mxu0 0.0
      %2834 = vmatprep.subr.mxu0 0.0
      %2835 = vmatpush2.msra.mxu0 0.0
      %2836 = vmatprep.subr.mxu0 0.0
      %2837 = vmatpush2.msra.mxu0 0.0
      %2838 = vmatprep.subr.mxu0 0.0
      %2839 = vmatpush2.msra.mxu0 0.0
      %2840 = vmatprep.subr.mxu0 0.0
      %2841 = vmatpush2.msra.mxu0 0.0
      %2842 = vmatprep.subr.mxu0 0.0
      %2843 = vmatpush2.msra.mxu0 0.0
      %2844 = vmatprep.subr.mxu0 0.0
      %2845 = vmatpush2.msra.mxu0 0.0
      %2846 = vmatprep.subr.mxu0 0.0
      %2847 = vmatpush2.msra.mxu0 0.0
      %2848 = vmatprep.mubr.f32.mxu0 0.0
      %2849 = vmatmul.mubr.f32.gmra.mxu0 %v2782
      %v2850 = vpop.f32.mrf.mxu0
      %v2851 = vadd.f32 0.0, %v2850
      %v2852 = vpop.f32.mrf.mxu0
      %v2853 = vadd.f32 0.0, %v2852
      %2854 = vdwg.mxu0
      %2855 = vmatprep.subr.mxu0 0.0
      %2856 = vmatpush1.msra.mxu0 0.0
      %2857 = vmatprep.subr.mxu0 0.0
      %2858 = vmatpush1.msra.mxu0 0.0
      %2859 = vmatprep.subr.mxu0 0.0
      %2860 = vmatpush1.msra.mxu0 0.0
      %2861 = vmatprep.subr.mxu0 0.0
      %2862 = vmatpush1.msra.mxu0 0.0
      %2863 = vmatprep.subr.mxu0 0.0
      %2864 = vmatpush1.msra.mxu0 0.0
      %2865 = vmatprep.subr.mxu0 0.0
      %2866 = vmatpush1.msra.mxu0 0.0
      %2867 = vmatprep.subr.mxu0 0.0
      %2868 = vmatpush1.msra.mxu0 %v2780
      %2869 = vmatprep.subr.mxu0 0.0
      %2870 = vmatpush1.msra.mxu0 %v2777
      %2871 = vmatprep.subr.mxu0 0.0
      %2872 = vmatpush1.msra.mxu0 %v2774
      %2873 = vmatprep.subr.mxu0 0.0
      %2874 = vmatpush1.msra.mxu0 %v2771
      %2875 = vmatprep.subr.mxu0 0.0
      %2876 = vmatpush1.msra.mxu0 %v2768
      %2877 = vmatprep.subr.mxu0 0.0
      %2878 = vmatpush1.msra.mxu0 %v2765
      %2879 = vmatprep.subr.mxu0 0.0
      %2880 = vmatpush1.msra.mxu0 %v2762
      %2881 = vmatprep.subr.mxu0 0.0
      %2882 = vmatpush1.msra.mxu0 %v2759
      %2883 = vmatprep.subr.mxu0 0.0
      %2884 = vmatpush1.msra.mxu0 %v2756
      %2885 = vmatprep.subr.mxu0 0.0
      %2886 = vmatpush1.msra.mxu0 %v2753
      %2887 = vmatprep.subr.mxu0 0.0
      %2888 = vmatpush2.msra.mxu0 0.0
      %2889 = vmatprep.subr.mxu0 0.0
      %2890 = vmatpush2.msra.mxu0 0.0
      %2891 = vmatprep.subr.mxu0 0.0
      %2892 = vmatpush2.msra.mxu0 0.0
      %2893 = vmatprep.subr.mxu0 0.0
      %2894 = vmatpush2.msra.mxu0 0.0
      %2895 = vmatprep.subr.mxu0 0.0
      %2896 = vmatpush2.msra.mxu0 0.0
      %2897 = vmatprep.subr.mxu0 0.0
      %2898 = vmatpush2.msra.mxu0 0.0
      %2899 = vmatprep.subr.mxu0 0.0
      %2900 = vmatpush2.msra.mxu0 0.0
      %2901 = vmatprep.subr.mxu0 0.0
      %2902 = vmatpush2.msra.mxu0 0.0
      %2903 = vmatprep.subr.mxu0 0.0
      %2904 = vmatpush2.msra.mxu0 0.0
      %2905 = vmatprep.subr.mxu0 0.0
      %2906 = vmatpush2.msra.mxu0 0.0
      %2907 = vmatprep.subr.mxu0 0.0
      %2908 = vmatpush2.msra.mxu0 0.0
      %2909 = vmatprep.subr.mxu0 0.0
      %2910 = vmatpush2.msra.mxu0 0.0
      %2911 = vmatprep.subr.mxu0 0.0
      %2912 = vmatpush2.msra.mxu0 0.0
      %2913 = vmatprep.subr.mxu0 0.0
      %2914 = vmatpush2.msra.mxu0 0.0
      %2915 = vmatprep.subr.mxu0 0.0
      %2916 = vmatpush2.msra.mxu0 0.0
      %2917 = vmatprep.subr.mxu0 0.0
      %2918 = vmatpush2.msra.mxu0 0.0
      %2919 = vmatprep.mubr.f32.mxu0 0.0
      %2920 = vmatmul.mubr.f32.gmra.mxu0 %v2782
      %v2921 = vpop.f32.mrf.mxu0
      %v2922 = vadd.f32 0.0, %v2921
      %v2923 = vpop.f32.mrf.mxu0
      %2924 = vdwg.mxu0
      %v2925 = vmul.f32 %v2851, %v585
      %v2926 = vmul.f32 %v2853, %v589
      %v2927 = vmul.f32 %v2922, %v593
      %2928 = vst [vmem:[#allocation2 + $0x8] sm:$0xff] %v2925
      %2929 = vst [vmem:[#allocation2 + $0x10] sm:$0xff] %v2926
      %2930 = vst [vmem:[#allocation2 + $0x18] sm:$0xff] %v2927
      %v2931 = vld [vmem:[#allocation2] sm:$0xff]
      %v2932 = vld [vmem:[#allocation2 + $0x8] sm:$0xff]
      %v2933 = vld [vmem:[#allocation2 + $0x10] sm:$0xff]
      %v2934 = vld [vmem:[#allocation2 + $0x18] sm:$0xff]
      %2939 = vrot.lane.b32.xlu0 %v2931, 19
      %v2940 = vpop.permute.xlu0 %2939
      %2941 = vrot.lane.b32.xlu0 %v2932, 19
      %v2942 = vpop.permute.xlu0 %2941
      %2943 = vrot.lane.b32.xlu0 %v2933, 19
      %v2944 = vpop.permute.xlu0 %2943
      %2945 = vrot.lane.b32.xlu0 %v2934, 19
      %v2946 = vpop.permute.xlu0 %2945
      %v2947 = vsel %vm207, %v2940, %v2942
      %v2948 = vsel %vm207, %v2942, %v2944
      %v2949 = vsel %vm207, %v2944, %v2946
      %2953 = vst [vmem:[#allocation3] sm:$0xff] %v2947
      %2954 = vst [vmem:[#allocation3 + $0x8] sm:$0xff] %v2948
      %2955 = vst [vmem:[#allocation3 + $0x10] sm:$0xff] %v2949
      %v2956 = vld [vmem:[#allocation2] sm:$0xff]
      %v2957 = vld [vmem:[#allocation2 + $0x8] sm:$0xff]
      %v2958 = vld [vmem:[#allocation2 + $0x10] sm:$0xff]
      %v2959 = vld [vmem:[#allocation2 + $0x18] sm:$0xff]
      %2964 = vrot.lane.b32.xlu0 %v2956, 18
      %v2965 = vpop.permute.xlu0 %2964
      %2966 = vrot.lane.b32.xlu0 %v2957, 18
      %v2967 = vpop.permute.xlu0 %2966
      %2968 = vrot.lane.b32.xlu0 %v2958, 18
      %v2969 = vpop.permute.xlu0 %2968
      %2970 = vrot.lane.b32.xlu0 %v2959, 18
      %v2971 = vpop.permute.xlu0 %2970
      %v2972 = vsel %vm233, %v2965, %v2967
      %v2973 = vsel %vm233, %v2967, %v2969
      %v2974 = vsel %vm233, %v2969, %v2971
      %2978 = vst [vmem:[#allocation3 + $0x18] sm:$0xff] %v2972
      %2979 = vst [vmem:[#allocation3 + $0x20] sm:$0xff] %v2973
      %2980 = vst [vmem:[#allocation3 + $0x28] sm:$0xff] %v2974
      %v2981 = vld [vmem:[#allocation2] sm:$0xff]
      %v2982 = vld [vmem:[#allocation2 + $0x8] sm:$0xff]
      %v2983 = vld [vmem:[#allocation2 + $0x10] sm:$0xff]
      %v2984 = vld [vmem:[#allocation2 + $0x18] sm:$0xff]
      %2989 = vrot.lane.b32.xlu0 %v2981, 17
      %v2990 = vpop.permute.xlu0 %2989
      %2991 = vrot.lane.b32.xlu0 %v2982, 17
      %v2992 = vpop.permute.xlu0 %2991
      %2993 = vrot.lane.b32.xlu0 %v2983, 17
      %v2994 = vpop.permute.xlu0 %2993
      %2995 = vrot.lane.b32.xlu0 %v2984, 17
      %v2996 = vpop.permute.xlu0 %2995
      %v2997 = vsel %vm259, %v2990, %v2992
      %v2998 = vsel %vm259, %v2992, %v2994
      %v2999 = vsel %vm259, %v2994, %v2996
      %3003 = vst [vmem:[#allocation3 + $0x30] sm:$0xff] %v2997
      %3004 = vst [vmem:[#allocation3 + $0x38] sm:$0xff] %v2998
      %3005 = vst [vmem:[#allocation3 + $0x40] sm:$0xff] %v2999
      %v3006 = vld [vmem:[#allocation2] sm:$0xff]
      %v3007 = vld [vmem:[#allocation2 + $0x8] sm:$0xff]
      %v3008 = vld [vmem:[#allocation2 + $0x10] sm:$0xff]
      %v3009 = vld [vmem:[#allocation2 + $0x18] sm:$0xff]
      %3014 = vrot.lane.b32.xlu0 %v3006, 1
      %v3015 = vpop.permute.xlu0 %3014
      %3016 = vrot.lane.b32.xlu0 %v3007, 1
      %v3017 = vpop.permute.xlu0 %3016
      %3018 = vrot.lane.b32.xlu0 %v3008, 1
      %v3019 = vpop.permute.xlu0 %3018
      %3020 = vrot.lane.b32.xlu0 %v3009, 1
      %v3021 = vpop.permute.xlu0 %3020
      %v3022 = vsel %vm285, %v3015, %v3017
      %v3023 = vsel %vm285, %v3017, %v3019
      %v3024 = vsel %vm285, %v3019, %v3021
      %3028 = vst [vmem:[#allocation3 + $0x48] sm:$0xff] %v3022
      %3029 = vst [vmem:[#allocation3 + $0x50] sm:$0xff] %v3023
      %3030 = vst [vmem:[#allocation3 + $0x58] sm:$0xff] %v3024
      %v3031 = vld [vmem:[#allocation2 + $0x8] sm:$0xff]
      %v3032 = vld [vmem:[#allocation2 + $0x10] sm:$0xff]
      %v3033 = vld [vmem:[#allocation2 + $0x18] sm:$0xff]
      %3034 = vst [vmem:[#allocation3 + $0x60] sm:$0xff] %v3031
      %3035 = vst [vmem:[#allocation3 + $0x68] sm:$0xff] %v3032
      %3036 = vst [vmem:[#allocation3 + $0x70] sm:$0xff] %v3033
      %v3037 = vld [vmem:[#allocation2 + $0x8] sm:$0xff]
      %v3038 = vld [vmem:[#allocation2 + $0x10] sm:$0xff]
      %v3039 = vld [vmem:[#allocation2 + $0x18] sm:$0xff]
      %v3040 = vld [vmem:[#allocation2 + $0x20] sm:$0xff]
      %3045 = vrot.lane.b32.xlu0 %v3037, 127
      %v3046 = vpop.permute.xlu0 %3045
      %3047 = vrot.lane.b32.xlu0 %v3038, 127
      %v3048 = vpop.permute.xlu0 %3047
      %3049 = vrot.lane.b32.xlu0 %v3039, 127
      %v3050 = vpop.permute.xlu0 %3049
      %3051 = vrot.lane.b32.xlu0 %v3040, 127
      %v3052 = vpop.permute.xlu0 %3051
      %v3053 = vsel %vm317, %v3046, %v3048
      %v3054 = vsel %vm317, %v3048, %v3050
      %v3055 = vsel %vm317, %v3050, %v3052
      %3059 = vst [vmem:[#allocation3 + $0x78] sm:$0xff] %v3053
      %3060 = vst [vmem:[#allocation3 + $0x80] sm:$0xff] %v3054
      %3061 = vst [vmem:[#allocation3 + $0x88] sm:$0xff] %v3055
      %v3062 = vld [vmem:[#allocation2 + $0x8] sm:$0xff]
      %v3063 = vld [vmem:[#allocation2 + $0x10] sm:$0xff]
      %v3064 = vld [vmem:[#allocation2 + $0x18] sm:$0xff]
      %v3065 = vld [vmem:[#allocation2 + $0x20] sm:$0xff]
      %3070 = vrot.lane.b32.xlu0 %v3062, 111
      %v3071 = vpop.permute.xlu0 %3070
      %3072 = vrot.lane.b32.xlu0 %v3063, 111
      %v3073 = vpop.permute.xlu0 %3072
      %3074 = vrot.lane.b32.xlu0 %v3064, 111
      %v3075 = vpop.permute.xlu0 %3074
      %3076 = vrot.lane.b32.xlu0 %v3065, 111
      %v3077 = vpop.permute.xlu0 %3076
      %v3078 = vsel %vm343, %v3071, %v3073
      %v3079 = vsel %vm343, %v3073, %v3075
      %v3080 = vsel %vm343, %v3075, %v3077
      %3084 = vst [vmem:[#allocation3 + $0x90] sm:$0xff] %v3078
      %3085 = vst [vmem:[#allocation3 + $0x98] sm:$0xff] %v3079
      %3086 = vst [vmem:[#allocation3 + $0xa0] sm:$0xff] %v3080
      %v3087 = vld [vmem:[#allocation2 + $0x8] sm:$0xff]
      %v3088 = vld [vmem:[#allocation2 + $0x10] sm:$0xff]
      %v3089 = vld [vmem:[#allocation2 + $0x18] sm:$0xff]
      %v3090 = vld [vmem:[#allocation2 + $0x20] sm:$0xff]
      %3095 = vrot.lane.b32.xlu0 %v3087, 110
      %v3096 = vpop.permute.xlu0 %3095
      %3097 = vrot.lane.b32.xlu0 %v3088, 110
      %v3098 = vpop.permute.xlu0 %3097
      %3099 = vrot.lane.b32.xlu0 %v3089, 110
      %v3100 = vpop.permute.xlu0 %3099
      %3101 = vrot.lane.b32.xlu0 %v3090, 110
      %v3102 = vpop.permute.xlu0 %3101
      %v3103 = vsel %vm369, %v3096, %v3098
      %v3104 = vsel %vm369, %v3098, %v3100
      %v3105 = vsel %vm369, %v3100, %v3102
      %3109 = vst [vmem:[#allocation3 + $0xa8] sm:$0xff] %v3103
      %3110 = vst [vmem:[#allocation3 + $0xb0] sm:$0xff] %v3104
      %3111 = vst [vmem:[#allocation3 + $0xb8] sm:$0xff] %v3105
      %v3112 = vld [vmem:[#allocation2 + $0x8] sm:$0xff]
      %v3113 = vld [vmem:[#allocation2 + $0x10] sm:$0xff]
      %v3114 = vld [vmem:[#allocation2 + $0x18] sm:$0xff]
      %v3115 = vld [vmem:[#allocation2 + $0x20] sm:$0xff]
      %3120 = vrot.lane.b32.xlu0 %v3112, 109
      %v3121 = vpop.permute.xlu0 %3120
      %3122 = vrot.lane.b32.xlu0 %v3113, 109
      %v3123 = vpop.permute.xlu0 %3122
      %3124 = vrot.lane.b32.xlu0 %v3114, 109
      %v3125 = vpop.permute.xlu0 %3124
      %3126 = vrot.lane.b32.xlu0 %v3115, 109
      %v3127 = vpop.permute.xlu0 %3126
      %v3128 = vsel %vm395, %v3121, %v3123
      %v3129 = vsel %vm395, %v3123, %v3125
      %v3130 = vsel %vm395, %v3125, %v3127
      %3134 = vst [vmem:[#allocation3 + $0xc0] sm:$0xff] %v3128
      %3135 = vst [vmem:[#allocation3 + $0xc8] sm:$0xff] %v3129
      %3136 = vst [vmem:[#allocation3 + $0xd0] sm:$0xff] %v3130
      %s3137 = scalar_lea.vmem %s1, 56
      %v3138 = vld [vmem:[%s3137] sm:$0xff]
      %v3139 = vld [vmem:[#allocation3] sm:$0xff]
      %v3140 = vld [vmem:[#allocation3 + $0x8] sm:$0xff]
      %v3141 = vld [vmem:[#allocation3 + $0x10] sm:$0xff]
      %v3142 = vld [vmem:[#allocation3 + $0x18] sm:$0xff]
      %v3143 = vld [vmem:[#allocation3 + $0x20] sm:$0xff]
      %v3144 = vld [vmem:[#allocation3 + $0x28] sm:$0xff]
      %v3145 = vld [vmem:[#allocation3 + $0x30] sm:$0xff]
      %v3146 = vld [vmem:[#allocation3 + $0x38] sm:$0xff]
      %v3147 = vld [vmem:[#allocation3 + $0x40] sm:$0xff]
      %v3148 = vld [vmem:[#allocation3 + $0x48] sm:$0xff]
      %v3149 = vld [vmem:[#allocation3 + $0x50] sm:$0xff]
      %v3150 = vld [vmem:[#allocation3 + $0x58] sm:$0xff]
      %v3151 = vld [vmem:[#allocation3 + $0x60] sm:$0xff]
      %v3152 = vld [vmem:[#allocation3 + $0x68] sm:$0xff]
      %v3153 = vld [vmem:[#allocation3 + $0x70] sm:$0xff]
      %v3154 = vld [vmem:[#allocation3 + $0x78] sm:$0xff]
      %v3155 = vld [vmem:[#allocation3 + $0x80] sm:$0xff]
      %v3156 = vld [vmem:[#allocation3 + $0x88] sm:$0xff]
      %v3157 = vld [vmem:[#allocation3 + $0x90] sm:$0xff]
      %v3158 = vld [vmem:[#allocation3 + $0x98] sm:$0xff]
      %v3159 = vld [vmem:[#allocation3 + $0xa0] sm:$0xff]
      %v3160 = vld [vmem:[#allocation3 + $0xa8] sm:$0xff]
      %v3161 = vld [vmem:[#allocation3 + $0xb0] sm:$0xff]
      %v3162 = vld [vmem:[#allocation3 + $0xb8] sm:$0xff]
      %v3163 = vld [vmem:[#allocation3 + $0xc0] sm:$0xff]
      %v3164 = vld [vmem:[#allocation3 + $0xc8] sm:$0xff]
      %v3165 = vld [vmem:[#allocation3 + $0xd0] sm:$0xff]
      %v3166 = vld [vmem:[#allocation3 + $0xd8] sm:$0xff]
      %v3167 = vld [vmem:[#allocation3 + $0xe0] sm:$0xff]
      %v3168 = vld [vmem:[#allocation3 + $0xe8] sm:$0xff]
      %v3170 = vsel %vm436, %v3138, 0
      %3172 = vmatprep.subr.mxu0 0.0
      %3173 = vmatpush1.msra.mxu0 0.0
      %3174 = vmatprep.subr.mxu0 0.0
      %3175 = vmatpush1.msra.mxu0 0.0
      %3176 = vmatprep.subr.mxu0 0.0
      %3177 = vmatpush1.msra.mxu0 0.0
      %3178 = vmatprep.subr.mxu0 0.0
      %3179 = vmatpush1.msra.mxu0 0.0
      %3180 = vmatprep.subr.mxu0 0.0
      %3181 = vmatpush1.msra.mxu0 0.0
      %3182 = vmatprep.subr.mxu0 0.0
      %3183 = vmatpush1.msra.mxu0 0.0
      %3184 = vmatprep.subr.mxu0 %v3167
      %3185 = vmatpush1.msra.mxu0 %v3166
      %3186 = vmatprep.subr.mxu0 %v3164
      %3187 = vmatpush1.msra.mxu0 %v3163
      %3188 = vmatprep.subr.mxu0 %v3161
      %3189 = vmatpush1.msra.mxu0 %v3160
      %3190 = vmatprep.subr.mxu0 %v3158
      %3191 = vmatpush1.msra.mxu0 %v3157
      %3192 = vmatprep.subr.mxu0 %v3155
      %3193 = vmatpush1.msra.mxu0 %v3154
      %3194 = vmatprep.subr.mxu0 %v3152
      %3195 = vmatpush1.msra.mxu0 %v3151
      %3196 = vmatprep.subr.mxu0 %v3149
      %3197 = vmatpush1.msra.mxu0 %v3148
      %3198 = vmatprep.subr.mxu0 %v3146
      %3199 = vmatpush1.msra.mxu0 %v3145
      %3200 = vmatprep.subr.mxu0 %v3143
      %3201 = vmatpush1.msra.mxu0 %v3142
      %3202 = vmatprep.subr.mxu0 %v3140
      %3203 = vmatpush1.msra.mxu0 %v3139
      %3204 = vmatprep.subr.mxu0 0.0
      %3205 = vmatpush2.msra.mxu0 0.0
      %3206 = vmatprep.subr.mxu0 0.0
      %3207 = vmatpush2.msra.mxu0 0.0
      %3208 = vmatprep.subr.mxu0 0.0
      %3209 = vmatpush2.msra.mxu0 0.0
      %3210 = vmatprep.subr.mxu0 0.0
      %3211 = vmatpush2.msra.mxu0 0.0
      %3212 = vmatprep.subr.mxu0 0.0
      %3213 = vmatpush2.msra.mxu0 0.0
      %3214 = vmatprep.subr.mxu0 0.0
      %3215 = vmatpush2.msra.mxu0 0.0
      %3216 = vmatprep.subr.mxu0 0.0
      %3217 = vmatpush2.msra.mxu0 0.0
      %3218 = vmatprep.subr.mxu0 0.0
      %3219 = vmatpush2.msra.mxu0 0.0
      %3220 = vmatprep.subr.mxu0 0.0
      %3221 = vmatpush2.msra.mxu0 0.0
      %3222 = vmatprep.subr.mxu0 0.0
      %3223 = vmatpush2.msra.mxu0 0.0
      %3224 = vmatprep.subr.mxu0 0.0
      %3225 = vmatpush2.msra.mxu0 0.0
      %3226 = vmatprep.subr.mxu0 0.0
      %3227 = vmatpush2.msra.mxu0 0.0
      %3228 = vmatprep.subr.mxu0 0.0
      %3229 = vmatpush2.msra.mxu0 0.0
      %3230 = vmatprep.subr.mxu0 0.0
      %3231 = vmatpush2.msra.mxu0 0.0
      %3232 = vmatprep.subr.mxu0 0.0
      %3233 = vmatpush2.msra.mxu0 0.0
      %3234 = vmatprep.subr.mxu0 0.0
      %3235 = vmatpush2.msra.mxu0 0.0
      %3236 = vmatprep.mubr.f32.mxu0 0.0
      %3237 = vmatmul.mubr.f32.gmra.mxu0 %v3170
      %v3238 = vpop.f32.mrf.mxu0
      %v3239 = vadd.f32 0.0, %v3238
      %v3240 = vpop.f32.mrf.mxu0
      %v3241 = vadd.f32 0.0, %v3240
      %3242 = vdwg.mxu0
      %3243 = vmatprep.subr.mxu0 0.0
      %3244 = vmatpush1.msra.mxu0 0.0
      %3245 = vmatprep.subr.mxu0 0.0
      %3246 = vmatpush1.msra.mxu0 0.0
      %3247 = vmatprep.subr.mxu0 0.0
      %3248 = vmatpush1.msra.mxu0 0.0
      %3249 = vmatprep.subr.mxu0 0.0
      %3250 = vmatpush1.msra.mxu0 0.0
      %3251 = vmatprep.subr.mxu0 0.0
      %3252 = vmatpush1.msra.mxu0 0.0
      %3253 = vmatprep.subr.mxu0 0.0
      %3254 = vmatpush1.msra.mxu0 0.0
      %3255 = vmatprep.subr.mxu0 0.0
      %3256 = vmatpush1.msra.mxu0 %v3168
      %3257 = vmatprep.subr.mxu0 0.0
      %3258 = vmatpush1.msra.mxu0 %v3165
      %3259 = vmatprep.subr.mxu0 0.0
      %3260 = vmatpush1.msra.mxu0 %v3162
      %3261 = vmatprep.subr.mxu0 0.0
      %3262 = vmatpush1.msra.mxu0 %v3159
      %3263 = vmatprep.subr.mxu0 0.0
      %3264 = vmatpush1.msra.mxu0 %v3156
      %3265 = vmatprep.subr.mxu0 0.0
      %3266 = vmatpush1.msra.mxu0 %v3153
      %3267 = vmatprep.subr.mxu0 0.0
      %3268 = vmatpush1.msra.mxu0 %v3150
      %3269 = vmatprep.subr.mxu0 0.0
      %3270 = vmatpush1.msra.mxu0 %v3147
      %3271 = vmatprep.subr.mxu0 0.0
      %3272 = vmatpush1.msra.mxu0 %v3144
      %3273 = vmatprep.subr.mxu0 0.0
      %3274 = vmatpush1.msra.mxu0 %v3141
      %3275 = vmatprep.subr.mxu0 0.0
      %3276 = vmatpush2.msra.mxu0 0.0
      %3277 = vmatprep.subr.mxu0 0.0
      %3278 = vmatpush2.msra.mxu0 0.0
      %3279 = vmatprep.subr.mxu0 0.0
      %3280 = vmatpush2.msra.mxu0 0.0
      %3281 = vmatprep.subr.mxu0 0.0
      %3282 = vmatpush2.msra.mxu0 0.0
      %3283 = vmatprep.subr.mxu0 0.0
      %3284 = vmatpush2.msra.mxu0 0.0
      %3285 = vmatprep.subr.mxu0 0.0
      %3286 = vmatpush2.msra.mxu0 0.0
      %3287 = vmatprep.subr.mxu0 0.0
      %3288 = vmatpush2.msra.mxu0 0.0
      %3289 = vmatprep.subr.mxu0 0.0
      %3290 = vmatpush2.msra.mxu0 0.0
      %3291 = vmatprep.subr.mxu0 0.0
      %3292 = vmatpush2.msra.mxu0 0.0
      %3293 = vmatprep.subr.mxu0 0.0
      %3294 = vmatpush2.msra.mxu0 0.0
      %3295 = vmatprep.subr.mxu0 0.0
      %3296 = vmatpush2.msra.mxu0 0.0
      %3297 = vmatprep.subr.mxu0 0.0
      %3298 = vmatpush2.msra.mxu0 0.0
      %3299 = vmatprep.subr.mxu0 0.0
      %3300 = vmatpush2.msra.mxu0 0.0
      %3301 = vmatprep.subr.mxu0 0.0
      %3302 = vmatpush2.msra.mxu0 0.0
      %3303 = vmatprep.subr.mxu0 0.0
      %3304 = vmatpush2.msra.mxu0 0.0
      %3305 = vmatprep.subr.mxu0 0.0
      %3306 = vmatpush2.msra.mxu0 0.0
      %3307 = vmatprep.mubr.f32.mxu0 0.0
      %3308 = vmatmul.mubr.f32.gmra.mxu0 %v3170
      %v3309 = vpop.f32.mrf.mxu0
      %v3310 = vadd.f32 0.0, %v3309
      %v3311 = vpop.f32.mrf.mxu0
      %3312 = vdwg.mxu0
      %v3313 = vmul.f32 %v3239, %v585
      %v3314 = vmul.f32 %v3241, %v589
      %v3315 = vmul.f32 %v3310, %v593
      %3316 = vst [vmem:[#allocation2 + $0x8] sm:$0xff] %v3313
      %3317 = vst [vmem:[#allocation2 + $0x10] sm:$0xff] %v3314
      %3318 = vst [vmem:[#allocation2 + $0x18] sm:$0xff] %v3315
      %v3319 = vld [vmem:[#allocation2 + $0x8] sm:$0xff]
      %v3320 = vld [vmem:[#allocation2 + $0x10] sm:$0xff]
      %v3321 = vld [vmem:[#allocation2 + $0x18] sm:$0xff]
      %3322 = vst [vmem:[%s170] sm:$0xff] %v3319
      %3323 = vst [vmem:[%s170 + $0x8] sm:$0xff] %v3320
      %3324 = vst [vmem:[%s170 + $0x10] sm:$0xff] %v3321
      %p3325 = scmp.lt.s32.totalorder %s14, 1
      %s3326 = scalar_select %p3325, %s14, 1
      %s3327 = smul.addr %s3326, 3
      %s3328 = smul.addr %s3327, 8
      %s3329 = scalar_lea.vmem %s3, %s3328
      // Predicated region
      $region33: #{conn4_pallas.1} parent=31 // pred_check
        %p3330 = pneg %p100
      $region34: #{conn4_pallas.1} parent=31 // pred_check_branch
        %3332 = sbr.rel (%p3330) target = $region36
      $region35: #{conn4_pallas.1} parent=31 // pred_region
        _
      $region36: #{conn4_pallas.1} parent=31 // pred_fallthru
        _
    $region32: #{conn4_pallas.1} parent=5 // pred_fallthru
      _
    %p3333 = scmp.le.s32.totalorder 2, %s9
    // Predicated region
    $region37: #{conn4_pallas.1} parent=5 // pred_check
      %p3334 = pneg %p3333
    $region38: #{conn4_pallas.1} parent=5 // pred_check_branch
      %3336 = sbr.rel (%p3334) target = $region40
    $region39: #{conn4_pallas.1} parent=5 // pred_region
      %s3337 = ssub.s32 %s9, 2
      // Predicated region
      $region41: #{conn4_pallas.1} parent=39 // pred_check
        %p3338 = pneg %p106
      $region42: #{conn4_pallas.1} parent=39 // pred_check_branch
        %3340 = sbr.rel (%p3338) target = $region44
      $region43: #{conn4_pallas.1} parent=39 // pred_region
        %p3341 = scmp.lt.s32.totalorder %s15, 1
        %s3342 = scalar_select %p3341, %s15, 1
        %s3343 = smul.addr %s3342, 3
        %s3344 = smul.addr %s3343, 8
        %s3345 = scalar_lea.vmem %s3, %s3344
      $region44: #{conn4_pallas.1} parent=39 // pred_fallthru
        _
    $region40: #{conn4_pallas.1} parent=5 // pred_fallthru
      _
  $region6: #{conn4_pallas.1} parent=0 // loop_footer
    %s13 = sadd.s32 1, %s9
  $region7: #{conn4_pallas.1} parent=0 // loop_footer_branch
    %8 = sbr.rel target = $region3
  $region8: #{conn4_pallas.1} parent=0 // loop_exit
    _

</llo_original>
